<compile_context>
chip_gen: v6e
topology: v6e:2x2x1
jax: 0.10.0
libtpu: 0.0.40
codegen_flags: <defaults>
</compile_context>

<pallas_src>
import math
import numpy as np
import jax
import jax.numpy as jnp
from jax.experimental import pallas as pl
from jax.experimental.pallas import tpu as pltpu

WINDOW_SIZE = 6
SIGMA = 1.5
C1 = 0.01 ** 2
C2 = 0.03 ** 2


def _gaussian_1d(window_size=WINDOW_SIZE, sigma=SIGMA):
    # Same construction as pytorch_ssim.gaussian (normalized 1D gaussian).
    g = np.array(
        [math.exp(-((i - window_size // 2) ** 2) / (2.0 * sigma ** 2))
         for i in range(window_size)],
        dtype=np.float64,
    )
    g = g / g.sum()
    return g.astype(np.float32)


_G1D = _gaussian_1d()
_WIN = np.outer(_G1D, _G1D).astype(np.float32)  # only used by the pure-JAX reference


def _choose_block_channels(BC, Hp, Wp, budget_bytes=20 * 1024 * 1024):
    """Pick how many channels per grid step so the working set stays well under VMEM.

    Rough per-channel live f32 bytes: 2 inputs x 2 pipeline buffers + ~10 conv-sized
    temporaries (mu/sigma/num/den/ssim_map and intermediates).
    """
    per_ch = 4 * (4 * Hp * Wp + 10 * Hp * Wp)
    tb = budget_bytes // max(per_ch, 1)
    return int(max(1, min(BC, tb)))


def _make_loss_kernel(TB, H, W, pad):
    ws = WINDOW_SIZE
    Hp, Wp = H + 2 * pad, W + 2 * pad
    Hout = Hp - ws + 1
    Wout = Wp - ws + 1
    g = [float(v) for v in _G1D]  # bake the deterministic 1D taps as constants

    def conv_sep(x):
        # Separable depthwise Gaussian conv: H pass (sublane shifts) then W pass (lane shifts).
        t = g[0] * x[:, 0:Hout, :]
        for i in range(1, ws):
            t = t + g[i] * x[:, i:i + Hout, :]
        o = g[0] * t[:, :, 0:Wout]
        for j in range(1, ws):
            o = o + g[j] * t[:, :, j:j + Wout]
        return o

    def kernel(img1_ref, img2_ref, part_ref):
        img1 = img1_ref[...]  # (TB, Hp, Wp) f32, zero padded spatially
        img2 = img2_ref[...]

        # --- MSE partial: pad ring is zero in BOTH inputs, so diff there is zero.
        diff = img1 - img2
        ssd = jnp.sum(diff * diff)

        # --- SSIM partial (pytorch_ssim semantics) ---
        mu1 = conv_sep(img1)
        mu2 = conv_sep(img2)
        mu1_sq = mu1 * mu1
        mu2_sq = mu2 * mu2
        mu1_mu2 = mu1 * mu2
        sigma1_sq = conv_sep(img1 * img1) - mu1_sq
        sigma2_sq = conv_sep(img2 * img2) - mu2_sq
        sigma12 = conv_sep(img1 * img2) - mu1_mu2

        num = (2.0 * mu1_mu2 + C1) * (2.0 * sigma12 + C2)
        den = (mu1_sq + mu2_sq + C1) * (sigma1_sq + sigma2_sq + C2)
        ssim_map = num * pl.reciprocal(den, approx=False)  # EUP, den >= C1*C2 > 0
        ssim_sum = jnp.sum(ssim_map)

        # Lane-dense partial-sum block: plane 0 = sum(diff^2), plane 1 = sum(ssim_map).
        sub = jax.lax.broadcasted_iota(jnp.int32, (1, 2, 128), 1)
        part_ref[...] = jnp.where(sub == 0, ssd, ssim_sum)

    return kernel


def custom_loss_for_autoencoder(reconstructed_images, images, window_size=WINDOW_SIZE):
    """Returns scalar loss = MSE - SSIM. Inputs are NCHW float arrays."""
    N, C, H, W = images.shape
    ws = window_size
    pad = ws // 2
    Hp, Wp = H + 2 * pad, W + 2 * pad
    Hout, Wout = Hp - ws + 1, Wp - ws + 1
    BC = N * C

    r = reconstructed_images.reshape(BC, H, W).astype(jnp.float32)
    x = images.reshape(BC, H, W).astype(jnp.float32)

    # TODO(synk): at production resolutions, skip this host-side spatial pad (DMA unpadded
    # tiles into a zero-filled VMEM scratch) and move the separable conv onto the MXU via a
    # constant Toeplitz matmul / lane-dense (H, W, BC) relayout; not worth it at 16x16.
    rp = jnp.pad(r, ((0, 0), (pad, pad), (pad, pad)))
    xp = jnp.pad(x, ((0, 0), (pad, pad), (pad, pad)))

    TB = _choose_block_channels(BC, Hp, Wp)
    nb = (BC + TB - 1) // TB
    n_pad_bc = nb * TB - BC
    if n_pad_bc:
        # Pad the channel axis with all-zero images so every block is full.
        rp = jnp.pad(rp, ((0, n_pad_bc), (0, 0), (0, 0)))
        xp = jnp.pad(xp, ((0, n_pad_bc), (0, 0), (0, 0)))

    kernel = _make_loss_kernel(TB, H, W, pad)
    partials = pl.pallas_call(
        kernel,
        out_shape=jax.ShapeDtypeStruct((nb, 2, 128), jnp.float32),
        grid=(nb,),
        in_specs=[
            pl.BlockSpec((TB, Hp, Wp), lambda i: (i, 0, 0)),
            pl.BlockSpec((TB, Hp, Wp), lambda i: (i, 0, 0)),
        ],
        out_specs=pl.BlockSpec((1, 2, 128), lambda i: (i, 0, 0)),
        compiler_params=pltpu.CompilerParams(
            dimension_semantics=("parallel",),
            vmem_limit_bytes=32 * 1024 * 1024,
        ),
    )(rp, xp)

    ssd_total = jnp.sum(partials[:, 0, 0])
    ssim_total = jnp.sum(partials[:, 1, 0])
    # Zero-padded channel blocks contribute exactly ssim_map == 1 per output pixel; remove.
    if n_pad_bc:
        ssim_total = ssim_total - float(n_pad_bc * Hout * Wout)

    mse = ssd_total / float(BC * H * W)
    ssim_mean = ssim_total / float(BC * Hout * Wout)
    return mse - ssim_mean


def _reference_loss(reconstructed_images, images, window_size=WINDOW_SIZE):
    """Pure-JAX reference (mirrors the PyTorch module) for correctness checking."""
    pad = window_size // 2
    N, C, H, W = images.shape
    r = reconstructed_images.astype(jnp.float32)
    x = images.astype(jnp.float32)
    mse = jnp.mean((r - x) ** 2)

    w = jnp.asarray(_WIN)[None, None, :, :]          # (1,1,ws,ws)
    w = jnp.tile(w, (C, 1, 1, 1))                    # (C,1,ws,ws) depthwise

    def dwconv(y):
        return jax.lax.conv_general_dilated(
            y, w, window_strides=(1, 1),
            padding=[(pad, pad), (pad, pad)],
            dimension_numbers=("NCHW", "OIHW", "NCHW"),
            feature_group_count=C,
        )

    mu1 = dwconv(r)
    mu2 = dwconv(x)
    mu1_sq, mu2_sq, mu1_mu2 = mu1 * mu1, mu2 * mu2, mu1 * mu2
    sigma1_sq = dwconv(r * r) - mu1_sq
    sigma2_sq = dwconv(x * x) - mu2_sq
    sigma12 = dwconv(r * x) - mu1_mu2
    ssim_map = ((2 * mu1_mu2 + C1) * (2 * sigma12 + C2)) / (
        (mu1_sq + mu2_sq + C1) * (sigma1_sq + sigma2_sq + C2)
    )
    return mse - jnp.mean(ssim_map)


if __name__ == "__main__":
    key = jax.random.PRNGKey(0)
    k1, k2 = jax.random.split(key)
    N, C, H, W = 2, 4, 16, 16
    images = jax.random.uniform(k1, (N, C, H, W), dtype=jnp.float32)
    reconstructed = jnp.clip(
        images + 0.05 * jax.random.normal(k2, (N, C, H, W), dtype=jnp.float32), 0.0, 1.0
    )

    loss = custom_loss_for_autoencoder(reconstructed, images)
    loss = jax.block_until_ready(loss)

    ref = jax.block_until_ready(_reference_loss(reconstructed, images))
    assert np.allclose(np.asarray(loss), np.asarray(ref), rtol=1e-4, atol=1e-5), (
        float(loss), float(ref)
    )
    print("KERNEL_OK")
</pallas_src>

<mosaic_0001>
module attributes {stable_mosaic.version = 11 : i64} {
  func.func @kernel(%arg0: i32, %arg1: memref<8x22x22xf32, #tpu.memory_space<vmem>>, %arg2: memref<8x22x22xf32, #tpu.memory_space<vmem>>, %arg3: memref<1x2x128xf32, #tpu.memory_space<vmem>>) attributes {dimension_semantics = [#tpu.dimension_semantics<parallel>], iteration_bounds = array<i64: 1>, scalar_prefetch = 0 : i64, scratch_operands = 0 : i64, tpu.core_type = #tpu.core_type<tc>, window_params = [{transform_indices = @transform_0, window_bounds = array<i64: 8, 22, 22>}, {transform_indices = @transform_1, window_bounds = array<i64: 8, 22, 22>}, {transform_indices = @transform_2, window_bounds = array<i64: 1, 2, 128>}]} {
    %c0 = arith.constant 0 : index
    %c0_0 = arith.constant 0 : index
    %c0_1 = arith.constant 0 : index
    %0 = vector.load %arg1[%c0, %c0_0, %c0_1] : memref<8x22x22xf32, #tpu.memory_space<vmem>>, vector<8x22x22xf32>
    %c0_2 = arith.constant 0 : index
    %c0_3 = arith.constant 0 : index
    %c0_4 = arith.constant 0 : index
    %1 = vector.load %arg2[%c0_2, %c0_3, %c0_4] : memref<8x22x22xf32, #tpu.memory_space<vmem>>, vector<8x22x22xf32>
    %2 = arith.subf %0, %1 : vector<8x22x22xf32>
    %3 = arith.mulf %2, %2 : vector<8x22x22xf32>
    %4 = vector.shape_cast %3 : vector<8x22x22xf32> to vector<1x8x22x22xf32>
    %cst = arith.constant dense<0.000000e+00> : vector<1xf32>
    %5 = vector.multi_reduction <add>, %4, %cst [1, 2, 3] : vector<1x8x22x22xf32> to vector<1xf32>
    %6 = vector.shape_cast %5 : vector<1xf32> to vector<1x1x1x1xf32>
    %7 = vector.extract %6[0, 0, 0, 0] : f32 from vector<1x1x1x1xf32>
    %8 = vector.extract_strided_slice %0 {offsets = [0, 0, 0], sizes = [8, 17, 22], strides = [1, 1, 1]} : vector<8x22x22xf32> to vector<8x17x22xf32>
    %cst_5 = arith.constant 0.0380258411 : f32
    %9 = vector.broadcast %cst_5 : f32 to vector<8x17x22xf32>
    %10 = arith.mulf %9, %8 : vector<8x17x22xf32>
    %11 = vector.extract_strided_slice %0 {offsets = [0, 1, 0], sizes = [8, 17, 22], strides = [1, 1, 1]} : vector<8x22x22xf32> to vector<8x17x22xf32>
    %cst_6 = arith.constant 0.115512304 : f32
    %12 = vector.broadcast %cst_6 : f32 to vector<8x17x22xf32>
    %13 = arith.mulf %12, %11 : vector<8x17x22xf32>
    %14 = arith.addf %10, %13 : vector<8x17x22xf32>
    %15 = vector.extract_strided_slice %0 {offsets = [0, 2, 0], sizes = [8, 17, 22], strides = [1, 1, 1]} : vector<8x22x22xf32> to vector<8x17x22xf32>
    %cst_7 = arith.constant 0.224987239 : f32
    %16 = vector.broadcast %cst_7 : f32 to vector<8x17x22xf32>
    %17 = arith.mulf %16, %15 : vector<8x17x22xf32>
    %18 = arith.addf %14, %17 : vector<8x17x22xf32>
    %19 = vector.extract_strided_slice %0 {offsets = [0, 3, 0], sizes = [8, 17, 22], strides = [1, 1, 1]} : vector<8x22x22xf32> to vector<8x17x22xf32>
    %cst_8 = arith.constant 0.280975074 : f32
    %20 = vector.broadcast %cst_8 : f32 to vector<8x17x22xf32>
    %21 = arith.mulf %20, %19 : vector<8x17x22xf32>
    %22 = arith.addf %18, %21 : vector<8x17x22xf32>
    %23 = vector.extract_strided_slice %0 {offsets = [0, 4, 0], sizes = [8, 17, 22], strides = [1, 1, 1]} : vector<8x22x22xf32> to vector<8x17x22xf32>
    %cst_9 = arith.constant 0.224987239 : f32
    %24 = vector.broadcast %cst_9 : f32 to vector<8x17x22xf32>
    %25 = arith.mulf %24, %23 : vector<8x17x22xf32>
    %26 = arith.addf %22, %25 : vector<8x17x22xf32>
    %27 = vector.extract_strided_slice %0 {offsets = [0, 5, 0], sizes = [8, 17, 22], strides = [1, 1, 1]} : vector<8x22x22xf32> to vector<8x17x22xf32>
    %cst_10 = arith.constant 0.115512304 : f32
    %28 = vector.broadcast %cst_10 : f32 to vector<8x17x22xf32>
    %29 = arith.mulf %28, %27 : vector<8x17x22xf32>
    %30 = arith.addf %26, %29 : vector<8x17x22xf32>
    %31 = vector.extract_strided_slice %30 {offsets = [0, 0, 0], sizes = [8, 17, 17], strides = [1, 1, 1]} : vector<8x17x22xf32> to vector<8x17x17xf32>
    %cst_11 = arith.constant 0.0380258411 : f32
    %32 = vector.broadcast %cst_11 : f32 to vector<8x17x17xf32>
    %33 = arith.mulf %32, %31 : vector<8x17x17xf32>
    %34 = vector.extract_strided_slice %30 {offsets = [0, 0, 1], sizes = [8, 17, 17], strides = [1, 1, 1]} : vector<8x17x22xf32> to vector<8x17x17xf32>
    %cst_12 = arith.constant 0.115512304 : f32
    %35 = vector.broadcast %cst_12 : f32 to vector<8x17x17xf32>
    %36 = arith.mulf %35, %34 : vector<8x17x17xf32>
    %37 = arith.addf %33, %36 : vector<8x17x17xf32>
    %38 = vector.extract_strided_slice %30 {offsets = [0, 0, 2], sizes = [8, 17, 17], strides = [1, 1, 1]} : vector<8x17x22xf32> to vector<8x17x17xf32>
    %cst_13 = arith.constant 0.224987239 : f32
    %39 = vector.broadcast %cst_13 : f32 to vector<8x17x17xf32>
    %40 = arith.mulf %39, %38 : vector<8x17x17xf32>
    %41 = arith.addf %37, %40 : vector<8x17x17xf32>
    %42 = vector.extract_strided_slice %30 {offsets = [0, 0, 3], sizes = [8, 17, 17], strides = [1, 1, 1]} : vector<8x17x22xf32> to vector<8x17x17xf32>
    %cst_14 = arith.constant 0.280975074 : f32
    %43 = vector.broadcast %cst_14 : f32 to vector<8x17x17xf32>
    %44 = arith.mulf %43, %42 : vector<8x17x17xf32>
    %45 = arith.addf %41, %44 : vector<8x17x17xf32>
    %46 = vector.extract_strided_slice %30 {offsets = [0, 0, 4], sizes = [8, 17, 17], strides = [1, 1, 1]} : vector<8x17x22xf32> to vector<8x17x17xf32>
    %cst_15 = arith.constant 0.224987239 : f32
    %47 = vector.broadcast %cst_15 : f32 to vector<8x17x17xf32>
    %48 = arith.mulf %47, %46 : vector<8x17x17xf32>
    %49 = arith.addf %45, %48 : vector<8x17x17xf32>
    %50 = vector.extract_strided_slice %30 {offsets = [0, 0, 5], sizes = [8, 17, 17], strides = [1, 1, 1]} : vector<8x17x22xf32> to vector<8x17x17xf32>
    %cst_16 = arith.constant 0.115512304 : f32
    %51 = vector.broadcast %cst_16 : f32 to vector<8x17x17xf32>
    %52 = arith.mulf %51, %50 : vector<8x17x17xf32>
    %53 = arith.addf %49, %52 : vector<8x17x17xf32>
    %54 = vector.extract_strided_slice %1 {offsets = [0, 0, 0], sizes = [8, 17, 22], strides = [1, 1, 1]} : vector<8x22x22xf32> to vector<8x17x22xf32>
    %cst_17 = arith.constant 0.0380258411 : f32
    %55 = vector.broadcast %cst_17 : f32 to vector<8x17x22xf32>
    %56 = arith.mulf %55, %54 : vector<8x17x22xf32>
    %57 = vector.extract_strided_slice %1 {offsets = [0, 1, 0], sizes = [8, 17, 22], strides = [1, 1, 1]} : vector<8x22x22xf32> to vector<8x17x22xf32>
    %cst_18 = arith.constant 0.115512304 : f32
    %58 = vector.broadcast %cst_18 : f32 to vector<8x17x22xf32>
    %59 = arith.mulf %58, %57 : vector<8x17x22xf32>
    %60 = arith.addf %56, %59 : vector<8x17x22xf32>
    %61 = vector.extract_strided_slice %1 {offsets = [0, 2, 0], sizes = [8, 17, 22], strides = [1, 1, 1]} : vector<8x22x22xf32> to vector<8x17x22xf32>
    %cst_19 = arith.constant 0.224987239 : f32
    %62 = vector.broadcast %cst_19 : f32 to vector<8x17x22xf32>
    %63 = arith.mulf %62, %61 : vector<8x17x22xf32>
    %64 = arith.addf %60, %63 : vector<8x17x22xf32>
    %65 = vector.extract_strided_slice %1 {offsets = [0, 3, 0], sizes = [8, 17, 22], strides = [1, 1, 1]} : vector<8x22x22xf32> to vector<8x17x22xf32>
    %cst_20 = arith.constant 0.280975074 : f32
    %66 = vector.broadcast %cst_20 : f32 to vector<8x17x22xf32>
    %67 = arith.mulf %66, %65 : vector<8x17x22xf32>
    %68 = arith.addf %64, %67 : vector<8x17x22xf32>
    %69 = vector.extract_strided_slice %1 {offsets = [0, 4, 0], sizes = [8, 17, 22], strides = [1, 1, 1]} : vector<8x22x22xf32> to vector<8x17x22xf32>
    %cst_21 = arith.constant 0.224987239 : f32
    %70 = vector.broadcast %cst_21 : f32 to vector<8x17x22xf32>
    %71 = arith.mulf %70, %69 : vector<8x17x22xf32>
    %72 = arith.addf %68, %71 : vector<8x17x22xf32>
    %73 = vector.extract_strided_slice %1 {offsets = [0, 5, 0], sizes = [8, 17, 22], strides = [1, 1, 1]} : vector<8x22x22xf32> to vector<8x17x22xf32>
    %cst_22 = arith.constant 0.115512304 : f32
    %74 = vector.broadcast %cst_22 : f32 to vector<8x17x22xf32>
    %75 = arith.mulf %74, %73 : vector<8x17x22xf32>
    %76 = arith.addf %72, %75 : vector<8x17x22xf32>
    %77 = vector.extract_strided_slice %76 {offsets = [0, 0, 0], sizes = [8, 17, 17], strides = [1, 1, 1]} : vector<8x17x22xf32> to vector<8x17x17xf32>
    %cst_23 = arith.constant 0.0380258411 : f32
    %78 = vector.broadcast %cst_23 : f32 to vector<8x17x17xf32>
    %79 = arith.mulf %78, %77 : vector<8x17x17xf32>
    %80 = vector.extract_strided_slice %76 {offsets = [0, 0, 1], sizes = [8, 17, 17], strides = [1, 1, 1]} : vector<8x17x22xf32> to vector<8x17x17xf32>
    %cst_24 = arith.constant 0.115512304 : f32
    %81 = vector.broadcast %cst_24 : f32 to vector<8x17x17xf32>
    %82 = arith.mulf %81, %80 : vector<8x17x17xf32>
    %83 = arith.addf %79, %82 : vector<8x17x17xf32>
    %84 = vector.extract_strided_slice %76 {offsets = [0, 0, 2], sizes = [8, 17, 17], strides = [1, 1, 1]} : vector<8x17x22xf32> to vector<8x17x17xf32>
    %cst_25 = arith.constant 0.224987239 : f32
    %85 = vector.broadcast %cst_25 : f32 to vector<8x17x17xf32>
    %86 = arith.mulf %85, %84 : vector<8x17x17xf32>
    %87 = arith.addf %83, %86 : vector<8x17x17xf32>
    %88 = vector.extract_strided_slice %76 {offsets = [0, 0, 3], sizes = [8, 17, 17], strides = [1, 1, 1]} : vector<8x17x22xf32> to vector<8x17x17xf32>
    %cst_26 = arith.constant 0.280975074 : f32
    %89 = vector.broadcast %cst_26 : f32 to vector<8x17x17xf32>
    %90 = arith.mulf %89, %88 : vector<8x17x17xf32>
    %91 = arith.addf %87, %90 : vector<8x17x17xf32>
    %92 = vector.extract_strided_slice %76 {offsets = [0, 0, 4], sizes = [8, 17, 17], strides = [1, 1, 1]} : vector<8x17x22xf32> to vector<8x17x17xf32>
    %cst_27 = arith.constant 0.224987239 : f32
    %93 = vector.broadcast %cst_27 : f32 to vector<8x17x17xf32>
    %94 = arith.mulf %93, %92 : vector<8x17x17xf32>
    %95 = arith.addf %91, %94 : vector<8x17x17xf32>
    %96 = vector.extract_strided_slice %76 {offsets = [0, 0, 5], sizes = [8, 17, 17], strides = [1, 1, 1]} : vector<8x17x22xf32> to vector<8x17x17xf32>
    %cst_28 = arith.constant 0.115512304 : f32
    %97 = vector.broadcast %cst_28 : f32 to vector<8x17x17xf32>
    %98 = arith.mulf %97, %96 : vector<8x17x17xf32>
    %99 = arith.addf %95, %98 : vector<8x17x17xf32>
    %100 = arith.mulf %53, %53 : vector<8x17x17xf32>
    %101 = arith.mulf %99, %99 : vector<8x17x17xf32>
    %102 = arith.mulf %53, %99 : vector<8x17x17xf32>
    %103 = arith.mulf %0, %0 : vector<8x22x22xf32>
    %104 = vector.extract_strided_slice %103 {offsets = [0, 0, 0], sizes = [8, 17, 22], strides = [1, 1, 1]} : vector<8x22x22xf32> to vector<8x17x22xf32>
    %cst_29 = arith.constant 0.0380258411 : f32
    %105 = vector.broadcast %cst_29 : f32 to vector<8x17x22xf32>
    %106 = arith.mulf %105, %104 : vector<8x17x22xf32>
    %107 = vector.extract_strided_slice %103 {offsets = [0, 1, 0], sizes = [8, 17, 22], strides = [1, 1, 1]} : vector<8x22x22xf32> to vector<8x17x22xf32>
    %cst_30 = arith.constant 0.115512304 : f32
    %108 = vector.broadcast %cst_30 : f32 to vector<8x17x22xf32>
    %109 = arith.mulf %108, %107 : vector<8x17x22xf32>
    %110 = arith.addf %106, %109 : vector<8x17x22xf32>
    %111 = vector.extract_strided_slice %103 {offsets = [0, 2, 0], sizes = [8, 17, 22], strides = [1, 1, 1]} : vector<8x22x22xf32> to vector<8x17x22xf32>
    %cst_31 = arith.constant 0.224987239 : f32
    %112 = vector.broadcast %cst_31 : f32 to vector<8x17x22xf32>
    %113 = arith.mulf %112, %111 : vector<8x17x22xf32>
    %114 = arith.addf %110, %113 : vector<8x17x22xf32>
    %115 = vector.extract_strided_slice %103 {offsets = [0, 3, 0], sizes = [8, 17, 22], strides = [1, 1, 1]} : vector<8x22x22xf32> to vector<8x17x22xf32>
    %cst_32 = arith.constant 0.280975074 : f32
    %116 = vector.broadcast %cst_32 : f32 to vector<8x17x22xf32>
    %117 = arith.mulf %116, %115 : vector<8x17x22xf32>
    %118 = arith.addf %114, %117 : vector<8x17x22xf32>
    %119 = vector.extract_strided_slice %103 {offsets = [0, 4, 0], sizes = [8, 17, 22], strides = [1, 1, 1]} : vector<8x22x22xf32> to vector<8x17x22xf32>
    %cst_33 = arith.constant 0.224987239 : f32
    %120 = vector.broadcast %cst_33 : f32 to vector<8x17x22xf32>
    %121 = arith.mulf %120, %119 : vector<8x17x22xf32>
    %122 = arith.addf %118, %121 : vector<8x17x22xf32>
    %123 = vector.extract_strided_slice %103 {offsets = [0, 5, 0], sizes = [8, 17, 22], strides = [1, 1, 1]} : vector<8x22x22xf32> to vector<8x17x22xf32>
    %cst_34 = arith.constant 0.115512304 : f32
    %124 = vector.broadcast %cst_34 : f32 to vector<8x17x22xf32>
    %125 = arith.mulf %124, %123 : vector<8x17x22xf32>
    %126 = arith.addf %122, %125 : vector<8x17x22xf32>
    %127 = vector.extract_strided_slice %126 {offsets = [0, 0, 0], sizes = [8, 17, 17], strides = [1, 1, 1]} : vector<8x17x22xf32> to vector<8x17x17xf32>
    %cst_35 = arith.constant 0.0380258411 : f32
    %128 = vector.broadcast %cst_35 : f32 to vector<8x17x17xf32>
    %129 = arith.mulf %128, %127 : vector<8x17x17xf32>
    %130 = vector.extract_strided_slice %126 {offsets = [0, 0, 1], sizes = [8, 17, 17], strides = [1, 1, 1]} : vector<8x17x22xf32> to vector<8x17x17xf32>
    %cst_36 = arith.constant 0.115512304 : f32
    %131 = vector.broadcast %cst_36 : f32 to vector<8x17x17xf32>
    %132 = arith.mulf %131, %130 : vector<8x17x17xf32>
    %133 = arith.addf %129, %132 : vector<8x17x17xf32>
    %134 = vector.extract_strided_slice %126 {offsets = [0, 0, 2], sizes = [8, 17, 17], strides = [1, 1, 1]} : vector<8x17x22xf32> to vector<8x17x17xf32>
    %cst_37 = arith.constant 0.224987239 : f32
    %135 = vector.broadcast %cst_37 : f32 to vector<8x17x17xf32>
    %136 = arith.mulf %135, %134 : vector<8x17x17xf32>
    %137 = arith.addf %133, %136 : vector<8x17x17xf32>
    %138 = vector.extract_strided_slice %126 {offsets = [0, 0, 3], sizes = [8, 17, 17], strides = [1, 1, 1]} : vector<8x17x22xf32> to vector<8x17x17xf32>
    %cst_38 = arith.constant 0.280975074 : f32
    %139 = vector.broadcast %cst_38 : f32 to vector<8x17x17xf32>
    %140 = arith.mulf %139, %138 : vector<8x17x17xf32>
    %141 = arith.addf %137, %140 : vector<8x17x17xf32>
    %142 = vector.extract_strided_slice %126 {offsets = [0, 0, 4], sizes = [8, 17, 17], strides = [1, 1, 1]} : vector<8x17x22xf32> to vector<8x17x17xf32>
    %cst_39 = arith.constant 0.224987239 : f32
    %143 = vector.broadcast %cst_39 : f32 to vector<8x17x17xf32>
    %144 = arith.mulf %143, %142 : vector<8x17x17xf32>
    %145 = arith.addf %141, %144 : vector<8x17x17xf32>
    %146 = vector.extract_strided_slice %126 {offsets = [0, 0, 5], sizes = [8, 17, 17], strides = [1, 1, 1]} : vector<8x17x22xf32> to vector<8x17x17xf32>
    %cst_40 = arith.constant 0.115512304 : f32
    %147 = vector.broadcast %cst_40 : f32 to vector<8x17x17xf32>
    %148 = arith.mulf %147, %146 : vector<8x17x17xf32>
    %149 = arith.addf %145, %148 : vector<8x17x17xf32>
    %150 = arith.subf %149, %100 : vector<8x17x17xf32>
    %151 = arith.mulf %1, %1 : vector<8x22x22xf32>
    %152 = vector.extract_strided_slice %151 {offsets = [0, 0, 0], sizes = [8, 17, 22], strides = [1, 1, 1]} : vector<8x22x22xf32> to vector<8x17x22xf32>
    %cst_41 = arith.constant 0.0380258411 : f32
    %153 = vector.broadcast %cst_41 : f32 to vector<8x17x22xf32>
    %154 = arith.mulf %153, %152 : vector<8x17x22xf32>
    %155 = vector.extract_strided_slice %151 {offsets = [0, 1, 0], sizes = [8, 17, 22], strides = [1, 1, 1]} : vector<8x22x22xf32> to vector<8x17x22xf32>
    %cst_42 = arith.constant 0.115512304 : f32
    %156 = vector.broadcast %cst_42 : f32 to vector<8x17x22xf32>
    %157 = arith.mulf %156, %155 : vector<8x17x22xf32>
    %158 = arith.addf %154, %157 : vector<8x17x22xf32>
    %159 = vector.extract_strided_slice %151 {offsets = [0, 2, 0], sizes = [8, 17, 22], strides = [1, 1, 1]} : vector<8x22x22xf32> to vector<8x17x22xf32>
    %cst_43 = arith.constant 0.224987239 : f32
    %160 = vector.broadcast %cst_43 : f32 to vector<8x17x22xf32>
    %161 = arith.mulf %160, %159 : vector<8x17x22xf32>
    %162 = arith.addf %158, %161 : vector<8x17x22xf32>
    %163 = vector.extract_strided_slice %151 {offsets = [0, 3, 0], sizes = [8, 17, 22], strides = [1, 1, 1]} : vector<8x22x22xf32> to vector<8x17x22xf32>
    %cst_44 = arith.constant 0.280975074 : f32
    %164 = vector.broadcast %cst_44 : f32 to vector<8x17x22xf32>
    %165 = arith.mulf %164, %163 : vector<8x17x22xf32>
    %166 = arith.addf %162, %165 : vector<8x17x22xf32>
    %167 = vector.extract_strided_slice %151 {offsets = [0, 4, 0], sizes = [8, 17, 22], strides = [1, 1, 1]} : vector<8x22x22xf32> to vector<8x17x22xf32>
    %cst_45 = arith.constant 0.224987239 : f32
    %168 = vector.broadcast %cst_45 : f32 to vector<8x17x22xf32>
    %169 = arith.mulf %168, %167 : vector<8x17x22xf32>
    %170 = arith.addf %166, %169 : vector<8x17x22xf32>
    %171 = vector.extract_strided_slice %151 {offsets = [0, 5, 0], sizes = [8, 17, 22], strides = [1, 1, 1]} : vector<8x22x22xf32> to vector<8x17x22xf32>
    %cst_46 = arith.constant 0.115512304 : f32
    %172 = vector.broadcast %cst_46 : f32 to vector<8x17x22xf32>
    %173 = arith.mulf %172, %171 : vector<8x17x22xf32>
    %174 = arith.addf %170, %173 : vector<8x17x22xf32>
    %175 = vector.extract_strided_slice %174 {offsets = [0, 0, 0], sizes = [8, 17, 17], strides = [1, 1, 1]} : vector<8x17x22xf32> to vector<8x17x17xf32>
    %cst_47 = arith.constant 0.0380258411 : f32
    %176 = vector.broadcast %cst_47 : f32 to vector<8x17x17xf32>
    %177 = arith.mulf %176, %175 : vector<8x17x17xf32>
    %178 = vector.extract_strided_slice %174 {offsets = [0, 0, 1], sizes = [8, 17, 17], strides = [1, 1, 1]} : vector<8x17x22xf32> to vector<8x17x17xf32>
    %cst_48 = arith.constant 0.115512304 : f32
    %179 = vector.broadcast %cst_48 : f32 to vector<8x17x17xf32>
    %180 = arith.mulf %179, %178 : vector<8x17x17xf32>
    %181 = arith.addf %177, %180 : vector<8x17x17xf32>
    %182 = vector.extract_strided_slice %174 {offsets = [0, 0, 2], sizes = [8, 17, 17], strides = [1, 1, 1]} : vector<8x17x22xf32> to vector<8x17x17xf32>
    %cst_49 = arith.constant 0.224987239 : f32
    %183 = vector.broadcast %cst_49 : f32 to vector<8x17x17xf32>
    %184 = arith.mulf %183, %182 : vector<8x17x17xf32>
    %185 = arith.addf %181, %184 : vector<8x17x17xf32>
    %186 = vector.extract_strided_slice %174 {offsets = [0, 0, 3], sizes = [8, 17, 17], strides = [1, 1, 1]} : vector<8x17x22xf32> to vector<8x17x17xf32>
    %cst_50 = arith.constant 0.280975074 : f32
    %187 = vector.broadcast %cst_50 : f32 to vector<8x17x17xf32>
    %188 = arith.mulf %187, %186 : vector<8x17x17xf32>
    %189 = arith.addf %185, %188 : vector<8x17x17xf32>
    %190 = vector.extract_strided_slice %174 {offsets = [0, 0, 4], sizes = [8, 17, 17], strides = [1, 1, 1]} : vector<8x17x22xf32> to vector<8x17x17xf32>
    %cst_51 = arith.constant 0.224987239 : f32
    %191 = vector.broadcast %cst_51 : f32 to vector<8x17x17xf32>
    %192 = arith.mulf %191, %190 : vector<8x17x17xf32>
    %193 = arith.addf %189, %192 : vector<8x17x17xf32>
    %194 = vector.extract_strided_slice %174 {offsets = [0, 0, 5], sizes = [8, 17, 17], strides = [1, 1, 1]} : vector<8x17x22xf32> to vector<8x17x17xf32>
    %cst_52 = arith.constant 0.115512304 : f32
    %195 = vector.broadcast %cst_52 : f32 to vector<8x17x17xf32>
    %196 = arith.mulf %195, %194 : vector<8x17x17xf32>
    %197 = arith.addf %193, %196 : vector<8x17x17xf32>
    %198 = arith.subf %197, %101 : vector<8x17x17xf32>
    %199 = arith.mulf %0, %1 : vector<8x22x22xf32>
    %200 = vector.extract_strided_slice %199 {offsets = [0, 0, 0], sizes = [8, 17, 22], strides = [1, 1, 1]} : vector<8x22x22xf32> to vector<8x17x22xf32>
    %cst_53 = arith.constant 0.0380258411 : f32
    %201 = vector.broadcast %cst_53 : f32 to vector<8x17x22xf32>
    %202 = arith.mulf %201, %200 : vector<8x17x22xf32>
    %203 = vector.extract_strided_slice %199 {offsets = [0, 1, 0], sizes = [8, 17, 22], strides = [1, 1, 1]} : vector<8x22x22xf32> to vector<8x17x22xf32>
    %cst_54 = arith.constant 0.115512304 : f32
    %204 = vector.broadcast %cst_54 : f32 to vector<8x17x22xf32>
    %205 = arith.mulf %204, %203 : vector<8x17x22xf32>
    %206 = arith.addf %202, %205 : vector<8x17x22xf32>
    %207 = vector.extract_strided_slice %199 {offsets = [0, 2, 0], sizes = [8, 17, 22], strides = [1, 1, 1]} : vector<8x22x22xf32> to vector<8x17x22xf32>
    %cst_55 = arith.constant 0.224987239 : f32
    %208 = vector.broadcast %cst_55 : f32 to vector<8x17x22xf32>
    %209 = arith.mulf %208, %207 : vector<8x17x22xf32>
    %210 = arith.addf %206, %209 : vector<8x17x22xf32>
    %211 = vector.extract_strided_slice %199 {offsets = [0, 3, 0], sizes = [8, 17, 22], strides = [1, 1, 1]} : vector<8x22x22xf32> to vector<8x17x22xf32>
    %cst_56 = arith.constant 0.280975074 : f32
    %212 = vector.broadcast %cst_56 : f32 to vector<8x17x22xf32>
    %213 = arith.mulf %212, %211 : vector<8x17x22xf32>
    %214 = arith.addf %210, %213 : vector<8x17x22xf32>
    %215 = vector.extract_strided_slice %199 {offsets = [0, 4, 0], sizes = [8, 17, 22], strides = [1, 1, 1]} : vector<8x22x22xf32> to vector<8x17x22xf32>
    %cst_57 = arith.constant 0.224987239 : f32
    %216 = vector.broadcast %cst_57 : f32 to vector<8x17x22xf32>
    %217 = arith.mulf %216, %215 : vector<8x17x22xf32>
    %218 = arith.addf %214, %217 : vector<8x17x22xf32>
    %219 = vector.extract_strided_slice %199 {offsets = [0, 5, 0], sizes = [8, 17, 22], strides = [1, 1, 1]} : vector<8x22x22xf32> to vector<8x17x22xf32>
    %cst_58 = arith.constant 0.115512304 : f32
    %220 = vector.broadcast %cst_58 : f32 to vector<8x17x22xf32>
    %221 = arith.mulf %220, %219 : vector<8x17x22xf32>
    %222 = arith.addf %218, %221 : vector<8x17x22xf32>
    %223 = vector.extract_strided_slice %222 {offsets = [0, 0, 0], sizes = [8, 17, 17], strides = [1, 1, 1]} : vector<8x17x22xf32> to vector<8x17x17xf32>
    %cst_59 = arith.constant 0.0380258411 : f32
    %224 = vector.broadcast %cst_59 : f32 to vector<8x17x17xf32>
    %225 = arith.mulf %224, %223 : vector<8x17x17xf32>
    %226 = vector.extract_strided_slice %222 {offsets = [0, 0, 1], sizes = [8, 17, 17], strides = [1, 1, 1]} : vector<8x17x22xf32> to vector<8x17x17xf32>
    %cst_60 = arith.constant 0.115512304 : f32
    %227 = vector.broadcast %cst_60 : f32 to vector<8x17x17xf32>
    %228 = arith.mulf %227, %226 : vector<8x17x17xf32>
    %229 = arith.addf %225, %228 : vector<8x17x17xf32>
    %230 = vector.extract_strided_slice %222 {offsets = [0, 0, 2], sizes = [8, 17, 17], strides = [1, 1, 1]} : vector<8x17x22xf32> to vector<8x17x17xf32>
    %cst_61 = arith.constant 0.224987239 : f32
    %231 = vector.broadcast %cst_61 : f32 to vector<8x17x17xf32>
    %232 = arith.mulf %231, %230 : vector<8x17x17xf32>
    %233 = arith.addf %229, %232 : vector<8x17x17xf32>
    %234 = vector.extract_strided_slice %222 {offsets = [0, 0, 3], sizes = [8, 17, 17], strides = [1, 1, 1]} : vector<8x17x22xf32> to vector<8x17x17xf32>
    %cst_62 = arith.constant 0.280975074 : f32
    %235 = vector.broadcast %cst_62 : f32 to vector<8x17x17xf32>
    %236 = arith.mulf %235, %234 : vector<8x17x17xf32>
    %237 = arith.addf %233, %236 : vector<8x17x17xf32>
    %238 = vector.extract_strided_slice %222 {offsets = [0, 0, 4], sizes = [8, 17, 17], strides = [1, 1, 1]} : vector<8x17x22xf32> to vector<8x17x17xf32>
    %cst_63 = arith.constant 0.224987239 : f32
    %239 = vector.broadcast %cst_63 : f32 to vector<8x17x17xf32>
    %240 = arith.mulf %239, %238 : vector<8x17x17xf32>
    %241 = arith.addf %237, %240 : vector<8x17x17xf32>
    %242 = vector.extract_strided_slice %222 {offsets = [0, 0, 5], sizes = [8, 17, 17], strides = [1, 1, 1]} : vector<8x17x22xf32> to vector<8x17x17xf32>
    %cst_64 = arith.constant 0.115512304 : f32
    %243 = vector.broadcast %cst_64 : f32 to vector<8x17x17xf32>
    %244 = arith.mulf %243, %242 : vector<8x17x17xf32>
    %245 = arith.addf %241, %244 : vector<8x17x17xf32>
    %246 = arith.subf %245, %102 : vector<8x17x17xf32>
    %cst_65 = arith.constant 2.000000e+00 : f32
    %247 = vector.broadcast %cst_65 : f32 to vector<8x17x17xf32>
    %248 = arith.mulf %247, %102 : vector<8x17x17xf32>
    %cst_66 = arith.constant 9.99999974E-5 : f32
    %249 = vector.broadcast %cst_66 : f32 to vector<8x17x17xf32>
    %250 = arith.addf %248, %249 : vector<8x17x17xf32>
    %cst_67 = arith.constant 2.000000e+00 : f32
    %251 = vector.broadcast %cst_67 : f32 to vector<8x17x17xf32>
    %252 = arith.mulf %251, %246 : vector<8x17x17xf32>
    %cst_68 = arith.constant 8.99999984E-4 : f32
    %253 = vector.broadcast %cst_68 : f32 to vector<8x17x17xf32>
    %254 = arith.addf %252, %253 : vector<8x17x17xf32>
    %255 = arith.mulf %250, %254 : vector<8x17x17xf32>
    %256 = arith.addf %100, %101 : vector<8x17x17xf32>
    %cst_69 = arith.constant 9.99999974E-5 : f32
    %257 = vector.broadcast %cst_69 : f32 to vector<8x17x17xf32>
    %258 = arith.addf %256, %257 : vector<8x17x17xf32>
    %259 = arith.addf %150, %198 : vector<8x17x17xf32>
    %cst_70 = arith.constant 8.99999984E-4 : f32
    %260 = vector.broadcast %cst_70 : f32 to vector<8x17x17xf32>
    %261 = arith.addf %259, %260 : vector<8x17x17xf32>
    %262 = arith.mulf %258, %261 : vector<8x17x17xf32>
    %263 = tpu.reciprocal %262 : vector<8x17x17xf32> -> vector<8x17x17xf32>
    %264 = arith.mulf %255, %263 : vector<8x17x17xf32>
    %265 = vector.shape_cast %264 : vector<8x17x17xf32> to vector<1x8x17x17xf32>
    %cst_71 = arith.constant dense<0.000000e+00> : vector<1xf32>
    %266 = vector.multi_reduction <add>, %265, %cst_71 [1, 2, 3] : vector<1x8x17x17xf32> to vector<1xf32>
    %267 = vector.shape_cast %266 : vector<1xf32> to vector<1x1x1x1xf32>
    %268 = vector.extract %267[0, 0, 0, 0] : f32 from vector<1x1x1x1xf32>
    %269 = tpu.iota {dimensions = array<i32: 1>} : vector<1x2x128xi32>
    %c0_i32 = arith.constant 0 : i32
    %270 = vector.broadcast %c0_i32 : i32 to vector<1x2x128xi32>
    %271 = arith.cmpi eq, %269, %270 : vector<1x2x128xi32>
    %272 = vector.broadcast %7 : f32 to vector<1x2x128xf32>
    %273 = vector.broadcast %268 : f32 to vector<1x2x128xf32>
    %274 = arith.select %271, %272, %273 : vector<1x2x128xi1>, vector<1x2x128xf32>
    %c0_72 = arith.constant 0 : index
    %c0_73 = arith.constant 0 : index
    %c0_74 = arith.constant 0 : index
    %275 = vector.load %arg3[%c0_72, %c0_73, %c0_74] : memref<1x2x128xf32, #tpu.memory_space<vmem>>, vector<1x2x128xf32>
    tpu.vector_store %arg3[%c0_72, %c0_73, %c0_74], %274 {strides = array<i32>} : memref<1x2x128xf32, #tpu.memory_space<vmem>>, vector<1x2x128xf32>,
    return
  }
  func.func @transform_0(%arg0: i32) -> (i32, i32, i32) {
    %c0_i32 = arith.constant 0 : i32
    %c0_i32_0 = arith.constant 0 : i32
    %c0_i32_1 = arith.constant 0 : i32
    return %arg0, %c0_i32, %c0_i32_0 : i32, i32, i32
  }
  func.func @transform_1(%arg0: i32) -> (i32, i32, i32) {
    %c0_i32 = arith.constant 0 : i32
    %c0_i32_0 = arith.constant 0 : i32
    %c0_i32_1 = arith.constant 0 : i32
    return %arg0, %c0_i32, %c0_i32_0 : i32, i32, i32
  }
  func.func @transform_2(%arg0: i32) -> (i32, i32, i32) {
    %c0_i32 = arith.constant 0 : i32
    %c0_i32_0 = arith.constant 0 : i32
    %c0_i32_1 = arith.constant 0 : i32
    return %arg0, %c0_i32, %c0_i32_0 : i32, i32, i32
  }
}

</mosaic_0001>

<llo_original>
// kernel: tpu_custom_call.1
$region0: #{tpu_custom_call.1}
  #allocation0 [shape = 'u32[]', space=smem, size = 0x4, offset = 0x4, fixed_abs, tag = 'smem constant byte address 0x4 - core index']
  #allocation1 [shape = 'u32[144,128]{1,0:T(1,128)}', space=vmem, size = 0x12000, scoped, tag = 'internal scratch']
  %s0 = inlined_call_operand.vmem [shape: f32[8,22,22], index: 0, kind: input, shape index: {}]
  %s1 = inlined_call_operand.vmem [shape: f32[8,22,22], index: 1, kind: input, shape index: {}]
  %s2 = inlined_call_operand.hbm [shape: f32[1,2,128], index: 2, kind: output, shape index: {}]
  %s3 = sld [smem:[#allocation0]]
  $region18: #{tpu_custom_call.1} parent=0
    _
  %s5 = ssub.s32 1, %s3
  %s6 = scalar_select 0, %s5, %s3
  $region1: #{tpu_custom_call.1} parent=0
    #allocation2 [shape = 'u8[1024]{0}', space=vmem, size = 0x400, scoped, tag = 'output window, operand 0, single buffered']
    #allocation3 [shape = 's32[1]{0}', space=sflag, size = 0x4, scoped, tag = 'scoped memory for tpu_custom_call.1']
    %7 = vsyncpa [#allocation3], 0
    // Predicated region
    $region2: #{tpu_custom_call.1} parent=1 // pred_check
      _
    $region3: #{tpu_custom_call.1} parent=1 // pred_check_branch
      %9 = sbr.rel (0) target = $region5
    $region4: #{tpu_custom_call.1} parent=1 // pred_region
      _
    $region5: #{tpu_custom_call.1} parent=1 // pred_fallthru
      _
    // Predicated region
    $region6: #{tpu_custom_call.1} parent=1 // pred_check
      _
    $region7: #{tpu_custom_call.1} parent=1 // pred_check_branch
      %11 = sbr.rel (0) target = $region9
    $region8: #{tpu_custom_call.1} parent=1 // pred_region
      _
    $region9: #{tpu_custom_call.1} parent=1 // pred_fallthru
      _
    %v12 = vld [vmem:[%s0] sm:$0xff]
    %v13 = vld [vmem:[%s0 + $0x8] sm:$0xff]
    %v14 = vld [vmem:[%s0 + $0x10] sm:$0x3f]
    %v15 = vld [vmem:[%s0 + $0x18] sm:$0xff]
    %v16 = vld [vmem:[%s0 + $0x20] sm:$0xff]
    %v17 = vld [vmem:[%s0 + $0x28] sm:$0x3f]
    %v18 = vld [vmem:[%s0 + $0x30] sm:$0xff]
    %v19 = vld [vmem:[%s0 + $0x38] sm:$0xff]
    %v20 = vld [vmem:[%s0 + $0x40] sm:$0x3f]
    %v21 = vld [vmem:[%s0 + $0x48] sm:$0xff]
    %v22 = vld [vmem:[%s0 + $0x50] sm:$0xff]
    %v23 = vld [vmem:[%s0 + $0x58] sm:$0x3f]
    %v24 = vld [vmem:[%s0 + $0x60] sm:$0xff]
    %v25 = vld [vmem:[%s0 + $0x68] sm:$0xff]
    %v26 = vld [vmem:[%s0 + $0x70] sm:$0x3f]
    %v27 = vld [vmem:[%s0 + $0x78] sm:$0xff]
    %v28 = vld [vmem:[%s0 + $0x80] sm:$0xff]
    %v29 = vld [vmem:[%s0 + $0x88] sm:$0x3f]
    %v30 = vld [vmem:[%s0 + $0x90] sm:$0xff]
    %v31 = vld [vmem:[%s0 + $0x98] sm:$0xff]
    %v32 = vld [vmem:[%s0 + $0xa0] sm:$0x3f]
    %v33 = vld [vmem:[%s0 + $0xa8] sm:$0xff]
    %v34 = vld [vmem:[%s0 + $0xb0] sm:$0xff]
    %v35 = vld [vmem:[%s0 + $0xb8] sm:$0x3f]
    %v36 = vld [vmem:[%s1] sm:$0xff]
    %v37 = vld [vmem:[%s1 + $0x8] sm:$0xff]
    %v38 = vld [vmem:[%s1 + $0x10] sm:$0x3f]
    %v39 = vld [vmem:[%s1 + $0x18] sm:$0xff]
    %v40 = vld [vmem:[%s1 + $0x20] sm:$0xff]
    %v41 = vld [vmem:[%s1 + $0x28] sm:$0x3f]
    %v42 = vld [vmem:[%s1 + $0x30] sm:$0xff]
    %v43 = vld [vmem:[%s1 + $0x38] sm:$0xff]
    %v44 = vld [vmem:[%s1 + $0x40] sm:$0x3f]
    %v45 = vld [vmem:[%s1 + $0x48] sm:$0xff]
    %v46 = vld [vmem:[%s1 + $0x50] sm:$0xff]
    %v47 = vld [vmem:[%s1 + $0x58] sm:$0x3f]
    %v48 = vld [vmem:[%s1 + $0x60] sm:$0xff]
    %v49 = vld [vmem:[%s1 + $0x68] sm:$0xff]
    %v50 = vld [vmem:[%s1 + $0x70] sm:$0x3f]
    %v51 = vld [vmem:[%s1 + $0x78] sm:$0xff]
    %v52 = vld [vmem:[%s1 + $0x80] sm:$0xff]
    %v53 = vld [vmem:[%s1 + $0x88] sm:$0x3f]
    %v54 = vld [vmem:[%s1 + $0x90] sm:$0xff]
    %v55 = vld [vmem:[%s1 + $0x98] sm:$0xff]
    %v56 = vld [vmem:[%s1 + $0xa0] sm:$0x3f]
    %v57 = vld [vmem:[%s1 + $0xa8] sm:$0xff]
    %v58 = vld [vmem:[%s1 + $0xb0] sm:$0xff]
    %v59 = vld [vmem:[%s1 + $0xb8] sm:$0x3f]
    %v60 = vsub.f32 %v12, %v36
    %v61 = vsub.f32 %v13, %v37
    %v62 = vsub.f32 %v14, %v38
    %v63 = vsub.f32 %v15, %v39
    %v64 = vsub.f32 %v16, %v40
    %v65 = vsub.f32 %v17, %v41
    %v66 = vsub.f32 %v18, %v42
    %v67 = vsub.f32 %v19, %v43
    %v68 = vsub.f32 %v20, %v44
    %v69 = vsub.f32 %v21, %v45
    %v70 = vsub.f32 %v22, %v46
    %v71 = vsub.f32 %v23, %v47
    %v72 = vsub.f32 %v24, %v48
    %v73 = vsub.f32 %v25, %v49
    %v74 = vsub.f32 %v26, %v50
    %v75 = vsub.f32 %v27, %v51
    %v76 = vsub.f32 %v28, %v52
    %v77 = vsub.f32 %v29, %v53
    %v78 = vsub.f32 %v30, %v54
    %v79 = vsub.f32 %v31, %v55
    %v80 = vsub.f32 %v32, %v56
    %v81 = vsub.f32 %v33, %v57
    %v82 = vsub.f32 %v34, %v58
    %v83 = vsub.f32 %v35, %v59
    %v84 = vmul.f32 %v60, %v60
    %v85 = vmul.f32 %v61, %v61
    %v86 = vmul.f32 %v62, %v62
    %v87 = vmul.f32 %v63, %v63
    %v88 = vmul.f32 %v64, %v64
    %v89 = vmul.f32 %v65, %v65
    %v90 = vmul.f32 %v66, %v66
    %v91 = vmul.f32 %v67, %v67
    %v92 = vmul.f32 %v68, %v68
    %v93 = vmul.f32 %v69, %v69
    %v94 = vmul.f32 %v70, %v70
    %v95 = vmul.f32 %v71, %v71
    %v96 = vmul.f32 %v72, %v72
    %v97 = vmul.f32 %v73, %v73
    %v98 = vmul.f32 %v74, %v74
    %v99 = vmul.f32 %v75, %v75
    %v100 = vmul.f32 %v76, %v76
    %v101 = vmul.f32 %v77, %v77
    %v102 = vmul.f32 %v78, %v78
    %v103 = vmul.f32 %v79, %v79
    %v104 = vmul.f32 %v80, %v80
    %v105 = vmul.f32 %v81, %v81
    %v106 = vmul.f32 %v82, %v82
    %v107 = vmul.f32 %v83, %v83
    %vm108 = vcmask 179200
    %v109 = vsel %vm108, %v84, 0.0
    %v110 = vsel %vm108, %v85, 0.0
    %v111 = vadd.f32 %v109, %v110
    %vm112 = vcmask 177152
    %v113 = vsel %vm112, %v86, 0.0
    %v114 = vadd.f32 %v111, %v113
    %v115 = vsel %vm108, %v87, 0.0
    %v116 = vadd.f32 %v114, %v115
    %v117 = vsel %vm108, %v88, 0.0
    %v118 = vadd.f32 %v116, %v117
    %v119 = vsel %vm112, %v89, 0.0
    %v120 = vadd.f32 %v118, %v119
    %v121 = vsel %vm108, %v90, 0.0
    %v122 = vadd.f32 %v120, %v121
    %v123 = vsel %vm108, %v91, 0.0
    %v124 = vadd.f32 %v122, %v123
    %v125 = vsel %vm112, %v92, 0.0
    %v126 = vadd.f32 %v124, %v125
    %v127 = vsel %vm108, %v93, 0.0
    %v128 = vadd.f32 %v126, %v127
    %v129 = vsel %vm108, %v94, 0.0
    %v130 = vadd.f32 %v128, %v129
    %v131 = vsel %vm112, %v95, 0.0
    %v132 = vadd.f32 %v130, %v131
    %v133 = vsel %vm108, %v96, 0.0
    %v134 = vadd.f32 %v132, %v133
    %v135 = vsel %vm108, %v97, 0.0
    %v136 = vadd.f32 %v134, %v135
    %v137 = vsel %vm112, %v98, 0.0
    %v138 = vadd.f32 %v136, %v137
    %v139 = vsel %vm108, %v99, 0.0
    %v140 = vadd.f32 %v138, %v139
    %v141 = vsel %vm108, %v100, 0.0
    %v142 = vadd.f32 %v140, %v141
    %v143 = vsel %vm112, %v101, 0.0
    %v144 = vadd.f32 %v142, %v143
    %v145 = vsel %vm108, %v102, 0.0
    %v146 = vadd.f32 %v144, %v145
    %v147 = vsel %vm108, %v103, 0.0
    %v148 = vadd.f32 %v146, %v147
    %v149 = vsel %vm112, %v104, 0.0
    %v150 = vadd.f32 %v148, %v149
    %v151 = vsel %vm108, %v105, 0.0
    %v152 = vadd.f32 %v150, %v151
    %v153 = vsel %vm108, %v106, 0.0
    %v154 = vadd.f32 %v152, %v153
    %v155 = vsel %vm112, %v107, 0.0
    %v156 = vadd.f32 %v154, %v155
    %157 = vadd.xlane.f32.xlu0 %v156
    %v158 = vpop.xlane.xlu0 %157
    %v159 = vrot.slane %v158, 4
    %v160 = vadd.f32 %v158, %v159
    %v161 = vrot.slane %v160, 2
    %v162 = vadd.f32 %v160, %v161
    %v163 = vrot.slane %v162, 1
    %v164 = vadd.f32 %v162, %v163
    %s165 = vtos %v164
    %v166 = vmul.f32 %v12, 0.03802584
    %v167 = vmul.f32 %v13, 0.03802584
    %v168 = vmul.f32 %v14, 0.03802584
    %v169 = vmul.f32 %v15, 0.03802584
    %v170 = vmul.f32 %v16, 0.03802584
    %v171 = vmul.f32 %v17, 0.03802584
    %v172 = vmul.f32 %v18, 0.03802584
    %v173 = vmul.f32 %v19, 0.03802584
    %v174 = vmul.f32 %v20, 0.03802584
    %v175 = vmul.f32 %v21, 0.03802584
    %v176 = vmul.f32 %v22, 0.03802584
    %v177 = vmul.f32 %v23, 0.03802584
    %v178 = vmul.f32 %v24, 0.03802584
    %v179 = vmul.f32 %v25, 0.03802584
    %v180 = vmul.f32 %v26, 0.03802584
    %v181 = vmul.f32 %v27, 0.03802584
    %v182 = vmul.f32 %v28, 0.03802584
    %v183 = vmul.f32 %v29, 0.03802584
    %v184 = vmul.f32 %v30, 0.03802584
    %v185 = vmul.f32 %v31, 0.03802584
    %v186 = vmul.f32 %v32, 0.03802584
    %v187 = vmul.f32 %v33, 0.03802584
    %v188 = vmul.f32 %v34, 0.03802584
    %v189 = vmul.f32 %v35, 0.03802584
    %v190 = vmul.f32 %v12, 0.115512304
    %v191 = vmul.f32 %v13, 0.115512304
    %v192 = vmul.f32 %v14, 0.115512304
    %v193 = vmul.f32 %v15, 0.115512304
    %v194 = vmul.f32 %v16, 0.115512304
    %v195 = vmul.f32 %v17, 0.115512304
    %v196 = vmul.f32 %v18, 0.115512304
    %v197 = vmul.f32 %v19, 0.115512304
    %v198 = vmul.f32 %v20, 0.115512304
    %v199 = vmul.f32 %v21, 0.115512304
    %v200 = vmul.f32 %v22, 0.115512304
    %v201 = vmul.f32 %v23, 0.115512304
    %v202 = vmul.f32 %v24, 0.115512304
    %v203 = vmul.f32 %v25, 0.115512304
    %v204 = vmul.f32 %v26, 0.115512304
    %v205 = vmul.f32 %v27, 0.115512304
    %v206 = vmul.f32 %v28, 0.115512304
    %v207 = vmul.f32 %v29, 0.115512304
    %v208 = vmul.f32 %v30, 0.115512304
    %v209 = vmul.f32 %v31, 0.115512304
    %v210 = vmul.f32 %v32, 0.115512304
    %v211 = vmul.f32 %v33, 0.115512304
    %v212 = vmul.f32 %v34, 0.115512304
    %v213 = vmul.f32 %v35, 0.115512304
    %vm238 = vcmask 1046528
    %v239 = vrot.slane %v190, 1
    %v240 = vrot.slane %v191, 1
    %v241 = vsel %vm238, %v239, %v240
    %v242 = vrot.slane %v192, 1
    %v243 = vsel %vm238, %v240, %v242
    %v244 = vrot.slane %v193, 1
    %v245 = vrot.slane %v194, 1
    %v246 = vsel %vm238, %v244, %v245
    %v247 = vrot.slane %v195, 1
    %v248 = vsel %vm238, %v245, %v247
    %v249 = vrot.slane %v196, 1
    %v250 = vrot.slane %v197, 1
    %v251 = vsel %vm238, %v249, %v250
    %v252 = vrot.slane %v198, 1
    %v253 = vsel %vm238, %v250, %v252
    %v254 = vrot.slane %v199, 1
    %v255 = vrot.slane %v200, 1
    %v256 = vsel %vm238, %v254, %v255
    %v257 = vrot.slane %v201, 1
    %v258 = vsel %vm238, %v255, %v257
    %v259 = vrot.slane %v202, 1
    %v260 = vrot.slane %v203, 1
    %v261 = vsel %vm238, %v259, %v260
    %v262 = vrot.slane %v204, 1
    %v263 = vsel %vm238, %v260, %v262
    %v264 = vrot.slane %v205, 1
    %v265 = vrot.slane %v206, 1
    %v266 = vsel %vm238, %v264, %v265
    %v267 = vrot.slane %v207, 1
    %v268 = vsel %vm238, %v265, %v267
    %v269 = vrot.slane %v208, 1
    %v270 = vrot.slane %v209, 1
    %v271 = vsel %vm238, %v269, %v270
    %v272 = vrot.slane %v210, 1
    %v273 = vsel %vm238, %v270, %v272
    %v274 = vrot.slane %v211, 1
    %v275 = vrot.slane %v212, 1
    %v276 = vsel %vm238, %v274, %v275
    %v277 = vrot.slane %v213, 1
    %v278 = vsel %vm238, %v275, %v277
    %v303 = vadd.f32 %v166, %v241
    %v304 = vadd.f32 %v167, %v243
    %v305 = vadd.f32 %v168, %v242
    %v306 = vadd.f32 %v169, %v246
    %v307 = vadd.f32 %v170, %v248
    %v308 = vadd.f32 %v171, %v247
    %v309 = vadd.f32 %v172, %v251
    %v310 = vadd.f32 %v173, %v253
    %v311 = vadd.f32 %v174, %v252
    %v312 = vadd.f32 %v175, %v256
    %v313 = vadd.f32 %v176, %v258
    %v314 = vadd.f32 %v177, %v257
    %v315 = vadd.f32 %v178, %v261
    %v316 = vadd.f32 %v179, %v263
    %v317 = vadd.f32 %v180, %v262
    %v318 = vadd.f32 %v181, %v266
    %v319 = vadd.f32 %v182, %v268
    %v320 = vadd.f32 %v183, %v267
    %v321 = vadd.f32 %v184, %v271
    %v322 = vadd.f32 %v185, %v273
    %v323 = vadd.f32 %v186, %v272
    %v324 = vadd.f32 %v187, %v276
    %v325 = vadd.f32 %v188, %v278
    %v326 = vadd.f32 %v189, %v277
    %v327 = vmul.f32 %v12, 0.22498724
    %v328 = vmul.f32 %v13, 0.22498724
    %v329 = vmul.f32 %v14, 0.22498724
    %v330 = vmul.f32 %v15, 0.22498724
    %v331 = vmul.f32 %v16, 0.22498724
    %v332 = vmul.f32 %v17, 0.22498724
    %v333 = vmul.f32 %v18, 0.22498724
    %v334 = vmul.f32 %v19, 0.22498724
    %v335 = vmul.f32 %v20, 0.22498724
    %v336 = vmul.f32 %v21, 0.22498724
    %v337 = vmul.f32 %v22, 0.22498724
    %v338 = vmul.f32 %v23, 0.22498724
    %v339 = vmul.f32 %v24, 0.22498724
    %v340 = vmul.f32 %v25, 0.22498724
    %v341 = vmul.f32 %v26, 0.22498724
    %v342 = vmul.f32 %v27, 0.22498724
    %v343 = vmul.f32 %v28, 0.22498724
    %v344 = vmul.f32 %v29, 0.22498724
    %v345 = vmul.f32 %v30, 0.22498724
    %v346 = vmul.f32 %v31, 0.22498724
    %v347 = vmul.f32 %v32, 0.22498724
    %v348 = vmul.f32 %v33, 0.22498724
    %v349 = vmul.f32 %v34, 0.22498724
    %v350 = vmul.f32 %v35, 0.22498724
    %vm375 = vcmask 1045504
    %v376 = vrot.slane %v327, 2
    %v377 = vrot.slane %v328, 2
    %v378 = vsel %vm375, %v376, %v377
    %v379 = vrot.slane %v329, 2
    %v380 = vsel %vm375, %v377, %v379
    %v381 = vrot.slane %v330, 2
    %v382 = vrot.slane %v331, 2
    %v383 = vsel %vm375, %v381, %v382
    %v384 = vrot.slane %v332, 2
    %v385 = vsel %vm375, %v382, %v384
    %v386 = vrot.slane %v333, 2
    %v387 = vrot.slane %v334, 2
    %v388 = vsel %vm375, %v386, %v387
    %v389 = vrot.slane %v335, 2
    %v390 = vsel %vm375, %v387, %v389
    %v391 = vrot.slane %v336, 2
    %v392 = vrot.slane %v337, 2
    %v393 = vsel %vm375, %v391, %v392
    %v394 = vrot.slane %v338, 2
    %v395 = vsel %vm375, %v392, %v394
    %v396 = vrot.slane %v339, 2
    %v397 = vrot.slane %v340, 2
    %v398 = vsel %vm375, %v396, %v397
    %v399 = vrot.slane %v341, 2
    %v400 = vsel %vm375, %v397, %v399
    %v401 = vrot.slane %v342, 2
    %v402 = vrot.slane %v343, 2
    %v403 = vsel %vm375, %v401, %v402
    %v404 = vrot.slane %v344, 2
    %v405 = vsel %vm375, %v402, %v404
    %v406 = vrot.slane %v345, 2
    %v407 = vrot.slane %v346, 2
    %v408 = vsel %vm375, %v406, %v407
    %v409 = vrot.slane %v347, 2
    %v410 = vsel %vm375, %v407, %v409
    %v411 = vrot.slane %v348, 2
    %v412 = vrot.slane %v349, 2
    %v413 = vsel %vm375, %v411, %v412
    %v414 = vrot.slane %v350, 2
    %v415 = vsel %vm375, %v412, %v414
    %v440 = vadd.f32 %v303, %v378
    %v441 = vadd.f32 %v304, %v380
    %v442 = vadd.f32 %v305, %v379
    %v443 = vadd.f32 %v306, %v383
    %v444 = vadd.f32 %v307, %v385
    %v445 = vadd.f32 %v308, %v384
    %v446 = vadd.f32 %v309, %v388
    %v447 = vadd.f32 %v310, %v390
    %v448 = vadd.f32 %v311, %v389
    %v449 = vadd.f32 %v312, %v393
    %v450 = vadd.f32 %v313, %v395
    %v451 = vadd.f32 %v314, %v394
    %v452 = vadd.f32 %v315, %v398
    %v453 = vadd.f32 %v316, %v400
    %v454 = vadd.f32 %v317, %v399
    %v455 = vadd.f32 %v318, %v403
    %v456 = vadd.f32 %v319, %v405
    %v457 = vadd.f32 %v320, %v404
    %v458 = vadd.f32 %v321, %v408
    %v459 = vadd.f32 %v322, %v410
    %v460 = vadd.f32 %v323, %v409
    %v461 = vadd.f32 %v324, %v413
    %v462 = vadd.f32 %v325, %v415
    %v463 = vadd.f32 %v326, %v414
    %v464 = vmul.f32 %v12, 0.28097507
    %v465 = vmul.f32 %v13, 0.28097507
    %v466 = vmul.f32 %v14, 0.28097507
    %v467 = vmul.f32 %v15, 0.28097507
    %v468 = vmul.f32 %v16, 0.28097507
    %v469 = vmul.f32 %v17, 0.28097507
    %v470 = vmul.f32 %v18, 0.28097507
    %v471 = vmul.f32 %v19, 0.28097507
    %v472 = vmul.f32 %v20, 0.28097507
    %v473 = vmul.f32 %v21, 0.28097507
    %v474 = vmul.f32 %v22, 0.28097507
    %v475 = vmul.f32 %v23, 0.28097507
    %v476 = vmul.f32 %v24, 0.28097507
    %v477 = vmul.f32 %v25, 0.28097507
    %v478 = vmul.f32 %v26, 0.28097507
    %v479 = vmul.f32 %v27, 0.28097507
    %v480 = vmul.f32 %v28, 0.28097507
    %v481 = vmul.f32 %v29, 0.28097507
    %v482 = vmul.f32 %v30, 0.28097507
    %v483 = vmul.f32 %v31, 0.28097507
    %v484 = vmul.f32 %v32, 0.28097507
    %v485 = vmul.f32 %v33, 0.28097507
    %v486 = vmul.f32 %v34, 0.28097507
    %v487 = vmul.f32 %v35, 0.28097507
    %vm512 = vcmask 1044480
    %v513 = vrot.slane %v464, 3
    %v514 = vrot.slane %v465, 3
    %v515 = vsel %vm512, %v513, %v514
    %v516 = vrot.slane %v466, 3
    %v517 = vsel %vm512, %v514, %v516
    %v518 = vrot.slane %v467, 3
    %v519 = vrot.slane %v468, 3
    %v520 = vsel %vm512, %v518, %v519
    %v521 = vrot.slane %v469, 3
    %v522 = vsel %vm512, %v519, %v521
    %v523 = vrot.slane %v470, 3
    %v524 = vrot.slane %v471, 3
    %v525 = vsel %vm512, %v523, %v524
    %v526 = vrot.slane %v472, 3
    %v527 = vsel %vm512, %v524, %v526
    %v528 = vrot.slane %v473, 3
    %v529 = vrot.slane %v474, 3
    %v530 = vsel %vm512, %v528, %v529
    %v531 = vrot.slane %v475, 3
    %v532 = vsel %vm512, %v529, %v531
    %v533 = vrot.slane %v476, 3
    %v534 = vrot.slane %v477, 3
    %v535 = vsel %vm512, %v533, %v534
    %v536 = vrot.slane %v478, 3
    %v537 = vsel %vm512, %v534, %v536
    %v538 = vrot.slane %v479, 3
    %v539 = vrot.slane %v480, 3
    %v540 = vsel %vm512, %v538, %v539
    %v541 = vrot.slane %v481, 3
    %v542 = vsel %vm512, %v539, %v541
    %v543 = vrot.slane %v482, 3
    %v544 = vrot.slane %v483, 3
    %v545 = vsel %vm512, %v543, %v544
    %v546 = vrot.slane %v484, 3
    %v547 = vsel %vm512, %v544, %v546
    %v548 = vrot.slane %v485, 3
    %v549 = vrot.slane %v486, 3
    %v550 = vsel %vm512, %v548, %v549
    %v551 = vrot.slane %v487, 3
    %v552 = vsel %vm512, %v549, %v551
    %v577 = vadd.f32 %v440, %v515
    %v578 = vadd.f32 %v441, %v517
    %v579 = vadd.f32 %v442, %v516
    %v580 = vadd.f32 %v443, %v520
    %v581 = vadd.f32 %v444, %v522
    %v582 = vadd.f32 %v445, %v521
    %v583 = vadd.f32 %v446, %v525
    %v584 = vadd.f32 %v447, %v527
    %v585 = vadd.f32 %v448, %v526
    %v586 = vadd.f32 %v449, %v530
    %v587 = vadd.f32 %v450, %v532
    %v588 = vadd.f32 %v451, %v531
    %v589 = vadd.f32 %v452, %v535
    %v590 = vadd.f32 %v453, %v537
    %v591 = vadd.f32 %v454, %v536
    %v592 = vadd.f32 %v455, %v540
    %v593 = vadd.f32 %v456, %v542
    %v594 = vadd.f32 %v457, %v541
    %v595 = vadd.f32 %v458, %v545
    %v596 = vadd.f32 %v459, %v547
    %v597 = vadd.f32 %v460, %v546
    %v598 = vadd.f32 %v461, %v550
    %v599 = vadd.f32 %v462, %v552
    %v600 = vadd.f32 %v463, %v551
    %vm601 = vcmask 1043456
    %v602 = vrot.slane %v327, 4
    %v603 = vrot.slane %v328, 4
    %v604 = vsel %vm601, %v602, %v603
    %v605 = vrot.slane %v329, 4
    %v606 = vsel %vm601, %v603, %v605
    %v607 = vrot.slane %v330, 4
    %v608 = vrot.slane %v331, 4
    %v609 = vsel %vm601, %v607, %v608
    %v610 = vrot.slane %v332, 4
    %v611 = vsel %vm601, %v608, %v610
    %v612 = vrot.slane %v333, 4
    %v613 = vrot.slane %v334, 4
    %v614 = vsel %vm601, %v612, %v613
    %v615 = vrot.slane %v335, 4
    %v616 = vsel %vm601, %v613, %v615
    %v617 = vrot.slane %v336, 4
    %v618 = vrot.slane %v337, 4
    %v619 = vsel %vm601, %v617, %v618
    %v620 = vrot.slane %v338, 4
    %v621 = vsel %vm601, %v618, %v620
    %v622 = vrot.slane %v339, 4
    %v623 = vrot.slane %v340, 4
    %v624 = vsel %vm601, %v622, %v623
    %v625 = vrot.slane %v341, 4
    %v626 = vsel %vm601, %v623, %v625
    %v627 = vrot.slane %v342, 4
    %v628 = vrot.slane %v343, 4
    %v629 = vsel %vm601, %v627, %v628
    %v630 = vrot.slane %v344, 4
    %v631 = vsel %vm601, %v628, %v630
    %v632 = vrot.slane %v345, 4
    %v633 = vrot.slane %v346, 4
    %v634 = vsel %vm601, %v632, %v633
    %v635 = vrot.slane %v347, 4
    %v636 = vsel %vm601, %v633, %v635
    %v637 = vrot.slane %v348, 4
    %v638 = vrot.slane %v349, 4
    %v639 = vsel %vm601, %v637, %v638
    %v640 = vrot.slane %v350, 4
    %v641 = vsel %vm601, %v638, %v640
    %v666 = vadd.f32 %v577, %v604
    %v667 = vadd.f32 %v578, %v606
    %v668 = vadd.f32 %v579, %v605
    %v669 = vadd.f32 %v580, %v609
    %v670 = vadd.f32 %v581, %v611
    %v671 = vadd.f32 %v582, %v610
    %v672 = vadd.f32 %v583, %v614
    %v673 = vadd.f32 %v584, %v616
    %v674 = vadd.f32 %v585, %v615
    %v675 = vadd.f32 %v586, %v619
    %v676 = vadd.f32 %v587, %v621
    %v677 = vadd.f32 %v588, %v620
    %v678 = vadd.f32 %v589, %v624
    %v679 = vadd.f32 %v590, %v626
    %v680 = vadd.f32 %v591, %v625
    %v681 = vadd.f32 %v592, %v629
    %v682 = vadd.f32 %v593, %v631
    %v683 = vadd.f32 %v594, %v630
    %v684 = vadd.f32 %v595, %v634
    %v685 = vadd.f32 %v596, %v636
    %v686 = vadd.f32 %v597, %v635
    %v687 = vadd.f32 %v598, %v639
    %v688 = vadd.f32 %v599, %v641
    %v689 = vadd.f32 %v600, %v640
    %vm690 = vcmask 1042432
    %v691 = vrot.slane %v190, 5
    %v692 = vrot.slane %v191, 5
    %v693 = vsel %vm690, %v691, %v692
    %v694 = vrot.slane %v192, 5
    %v695 = vsel %vm690, %v692, %v694
    %v696 = vrot.slane %v193, 5
    %v697 = vrot.slane %v194, 5
    %v698 = vsel %vm690, %v696, %v697
    %v699 = vrot.slane %v195, 5
    %v700 = vsel %vm690, %v697, %v699
    %v701 = vrot.slane %v196, 5
    %v702 = vrot.slane %v197, 5
    %v703 = vsel %vm690, %v701, %v702
    %v704 = vrot.slane %v198, 5
    %v705 = vsel %vm690, %v702, %v704
    %v706 = vrot.slane %v199, 5
    %v707 = vrot.slane %v200, 5
    %v708 = vsel %vm690, %v706, %v707
    %v709 = vrot.slane %v201, 5
    %v710 = vsel %vm690, %v707, %v709
    %v711 = vrot.slane %v202, 5
    %v712 = vrot.slane %v203, 5
    %v713 = vsel %vm690, %v711, %v712
    %v714 = vrot.slane %v204, 5
    %v715 = vsel %vm690, %v712, %v714
    %v716 = vrot.slane %v205, 5
    %v717 = vrot.slane %v206, 5
    %v718 = vsel %vm690, %v716, %v717
    %v719 = vrot.slane %v207, 5
    %v720 = vsel %vm690, %v717, %v719
    %v721 = vrot.slane %v208, 5
    %v722 = vrot.slane %v209, 5
    %v723 = vsel %vm690, %v721, %v722
    %v724 = vrot.slane %v210, 5
    %v725 = vsel %vm690, %v722, %v724
    %v726 = vrot.slane %v211, 5
    %v727 = vrot.slane %v212, 5
    %v728 = vsel %vm690, %v726, %v727
    %v729 = vrot.slane %v213, 5
    %v730 = vsel %vm690, %v727, %v729
    %v755 = vadd.f32 %v666, %v693
    %v756 = vadd.f32 %v667, %v695
    %v757 = vadd.f32 %v668, %v694
    %v758 = vadd.f32 %v669, %v698
    %v759 = vadd.f32 %v670, %v700
    %v760 = vadd.f32 %v671, %v699
    %v761 = vadd.f32 %v672, %v703
    %v762 = vadd.f32 %v673, %v705
    %v763 = vadd.f32 %v674, %v704
    %v764 = vadd.f32 %v675, %v708
    %v765 = vadd.f32 %v676, %v710
    %v766 = vadd.f32 %v677, %v709
    %v767 = vadd.f32 %v678, %v713
    %v768 = vadd.f32 %v679, %v715
    %v769 = vadd.f32 %v680, %v714
    %v770 = vadd.f32 %v681, %v718
    %v771 = vadd.f32 %v682, %v720
    %v772 = vadd.f32 %v683, %v719
    %v773 = vadd.f32 %v684, %v723
    %v774 = vadd.f32 %v685, %v725
    %v775 = vadd.f32 %v686, %v724
    %v776 = vadd.f32 %v687, %v728
    %v777 = vadd.f32 %v688, %v730
    %v778 = vadd.f32 %v689, %v729
    %v779 = vmul.f32 %v755, 0.03802584
    %v780 = vmul.f32 %v756, 0.03802584
    %v781 = vmul.f32 %v757, 0.03802584
    %v782 = vmul.f32 %v758, 0.03802584
    %v783 = vmul.f32 %v759, 0.03802584
    %v784 = vmul.f32 %v760, 0.03802584
    %v785 = vmul.f32 %v761, 0.03802584
    %v786 = vmul.f32 %v762, 0.03802584
    %v787 = vmul.f32 %v763, 0.03802584
    %v788 = vmul.f32 %v764, 0.03802584
    %v789 = vmul.f32 %v765, 0.03802584
    %v790 = vmul.f32 %v766, 0.03802584
    %v791 = vmul.f32 %v767, 0.03802584
    %v792 = vmul.f32 %v768, 0.03802584
    %v793 = vmul.f32 %v769, 0.03802584
    %v794 = vmul.f32 %v770, 0.03802584
    %v795 = vmul.f32 %v771, 0.03802584
    %v796 = vmul.f32 %v772, 0.03802584
    %v797 = vmul.f32 %v773, 0.03802584
    %v798 = vmul.f32 %v774, 0.03802584
    %v799 = vmul.f32 %v775, 0.03802584
    %v800 = vmul.f32 %v776, 0.03802584
    %v801 = vmul.f32 %v777, 0.03802584
    %v802 = vmul.f32 %v778, 0.03802584
    %v803 = vmul.f32 %v755, 0.115512304
    %v804 = vmul.f32 %v756, 0.115512304
    %v805 = vmul.f32 %v757, 0.115512304
    %v806 = vmul.f32 %v758, 0.115512304
    %v807 = vmul.f32 %v759, 0.115512304
    %v808 = vmul.f32 %v760, 0.115512304
    %v809 = vmul.f32 %v761, 0.115512304
    %v810 = vmul.f32 %v762, 0.115512304
    %v811 = vmul.f32 %v763, 0.115512304
    %v812 = vmul.f32 %v764, 0.115512304
    %v813 = vmul.f32 %v765, 0.115512304
    %v814 = vmul.f32 %v766, 0.115512304
    %v815 = vmul.f32 %v767, 0.115512304
    %v816 = vmul.f32 %v768, 0.115512304
    %v817 = vmul.f32 %v769, 0.115512304
    %v818 = vmul.f32 %v770, 0.115512304
    %v819 = vmul.f32 %v771, 0.115512304
    %v820 = vmul.f32 %v772, 0.115512304
    %v821 = vmul.f32 %v773, 0.115512304
    %v822 = vmul.f32 %v774, 0.115512304
    %v823 = vmul.f32 %v775, 0.115512304
    %v824 = vmul.f32 %v776, 0.115512304
    %v825 = vmul.f32 %v777, 0.115512304
    %v826 = vmul.f32 %v778, 0.115512304
    %851 = vrot.lane.b32.xlu0 %v803, 127
    %v852 = vpop.permute.xlu0 %851
    %853 = vrot.lane.b32.xlu0 %v804, 127
    %v854 = vpop.permute.xlu0 %853
    %855 = vrot.lane.b32.xlu0 %v805, 127
    %v856 = vpop.permute.xlu0 %855
    %857 = vrot.lane.b32.xlu0 %v806, 127
    %v858 = vpop.permute.xlu0 %857
    %859 = vrot.lane.b32.xlu0 %v807, 127
    %v860 = vpop.permute.xlu0 %859
    %861 = vrot.lane.b32.xlu0 %v808, 127
    %v862 = vpop.permute.xlu0 %861
    %863 = vrot.lane.b32.xlu0 %v809, 127
    %v864 = vpop.permute.xlu0 %863
    %865 = vrot.lane.b32.xlu0 %v810, 127
    %v866 = vpop.permute.xlu0 %865
    %867 = vrot.lane.b32.xlu0 %v811, 127
    %v868 = vpop.permute.xlu0 %867
    %869 = vrot.lane.b32.xlu0 %v812, 127
    %v870 = vpop.permute.xlu0 %869
    %871 = vrot.lane.b32.xlu0 %v813, 127
    %v872 = vpop.permute.xlu0 %871
    %873 = vrot.lane.b32.xlu0 %v814, 127
    %v874 = vpop.permute.xlu0 %873
    %875 = vrot.lane.b32.xlu0 %v815, 127
    %v876 = vpop.permute.xlu0 %875
    %877 = vrot.lane.b32.xlu0 %v816, 127
    %v878 = vpop.permute.xlu0 %877
    %879 = vrot.lane.b32.xlu0 %v817, 127
    %v880 = vpop.permute.xlu0 %879
    %881 = vrot.lane.b32.xlu0 %v818, 127
    %v882 = vpop.permute.xlu0 %881
    %883 = vrot.lane.b32.xlu0 %v819, 127
    %v884 = vpop.permute.xlu0 %883
    %885 = vrot.lane.b32.xlu0 %v820, 127
    %v886 = vpop.permute.xlu0 %885
    %887 = vrot.lane.b32.xlu0 %v821, 127
    %v888 = vpop.permute.xlu0 %887
    %889 = vrot.lane.b32.xlu0 %v822, 127
    %v890 = vpop.permute.xlu0 %889
    %891 = vrot.lane.b32.xlu0 %v823, 127
    %v892 = vpop.permute.xlu0 %891
    %893 = vrot.lane.b32.xlu0 %v824, 127
    %v894 = vpop.permute.xlu0 %893
    %895 = vrot.lane.b32.xlu0 %v825, 127
    %v896 = vpop.permute.xlu0 %895
    %897 = vrot.lane.b32.xlu0 %v826, 127
    %v898 = vpop.permute.xlu0 %897
    %v923 = vadd.f32 %v779, %v852
    %v924 = vadd.f32 %v780, %v854
    %v925 = vadd.f32 %v781, %v856
    %v926 = vadd.f32 %v782, %v858
    %v927 = vadd.f32 %v783, %v860
    %v928 = vadd.f32 %v784, %v862
    %v929 = vadd.f32 %v785, %v864
    %v930 = vadd.f32 %v786, %v866
    %v931 = vadd.f32 %v787, %v868
    %v932 = vadd.f32 %v788, %v870
    %v933 = vadd.f32 %v789, %v872
    %v934 = vadd.f32 %v790, %v874
    %v935 = vadd.f32 %v791, %v876
    %v936 = vadd.f32 %v792, %v878
    %v937 = vadd.f32 %v793, %v880
    %v938 = vadd.f32 %v794, %v882
    %v939 = vadd.f32 %v795, %v884
    %v940 = vadd.f32 %v796, %v886
    %v941 = vadd.f32 %v797, %v888
    %v942 = vadd.f32 %v798, %v890
    %v943 = vadd.f32 %v799, %v892
    %v944 = vadd.f32 %v800, %v894
    %v945 = vadd.f32 %v801, %v896
    %v946 = vadd.f32 %v802, %v898
    %v947 = vmul.f32 %v755, 0.22498724
    %v948 = vmul.f32 %v756, 0.22498724
    %v949 = vmul.f32 %v757, 0.22498724
    %v950 = vmul.f32 %v758, 0.22498724
    %v951 = vmul.f32 %v759, 0.22498724
    %v952 = vmul.f32 %v760, 0.22498724
    %v953 = vmul.f32 %v761, 0.22498724
    %v954 = vmul.f32 %v762, 0.22498724
    %v955 = vmul.f32 %v763, 0.22498724
    %v956 = vmul.f32 %v764, 0.22498724
    %v957 = vmul.f32 %v765, 0.22498724
    %v958 = vmul.f32 %v766, 0.22498724
    %v959 = vmul.f32 %v767, 0.22498724
    %v960 = vmul.f32 %v768, 0.22498724
    %v961 = vmul.f32 %v769, 0.22498724
    %v962 = vmul.f32 %v770, 0.22498724
    %v963 = vmul.f32 %v771, 0.22498724
    %v964 = vmul.f32 %v772, 0.22498724
    %v965 = vmul.f32 %v773, 0.22498724
    %v966 = vmul.f32 %v774, 0.22498724
    %v967 = vmul.f32 %v775, 0.22498724
    %v968 = vmul.f32 %v776, 0.22498724
    %v969 = vmul.f32 %v777, 0.22498724
    %v970 = vmul.f32 %v778, 0.22498724
    %995 = vrot.lane.b32.xlu0 %v947, 126
    %v996 = vpop.permute.xlu0 %995
    %997 = vrot.lane.b32.xlu0 %v948, 126
    %v998 = vpop.permute.xlu0 %997
    %999 = vrot.lane.b32.xlu0 %v949, 126
    %v1000 = vpop.permute.xlu0 %999
    %1001 = vrot.lane.b32.xlu0 %v950, 126
    %v1002 = vpop.permute.xlu0 %1001
    %1003 = vrot.lane.b32.xlu0 %v951, 126
    %v1004 = vpop.permute.xlu0 %1003
    %1005 = vrot.lane.b32.xlu0 %v952, 126
    %v1006 = vpop.permute.xlu0 %1005
    %1007 = vrot.lane.b32.xlu0 %v953, 126
    %v1008 = vpop.permute.xlu0 %1007
    %1009 = vrot.lane.b32.xlu0 %v954, 126
    %v1010 = vpop.permute.xlu0 %1009
    %1011 = vrot.lane.b32.xlu0 %v955, 126
    %v1012 = vpop.permute.xlu0 %1011
    %1013 = vrot.lane.b32.xlu0 %v956, 126
    %v1014 = vpop.permute.xlu0 %1013
    %1015 = vrot.lane.b32.xlu0 %v957, 126
    %v1016 = vpop.permute.xlu0 %1015
    %1017 = vrot.lane.b32.xlu0 %v958, 126
    %v1018 = vpop.permute.xlu0 %1017
    %1019 = vrot.lane.b32.xlu0 %v959, 126
    %v1020 = vpop.permute.xlu0 %1019
    %1021 = vrot.lane.b32.xlu0 %v960, 126
    %v1022 = vpop.permute.xlu0 %1021
    %1023 = vrot.lane.b32.xlu0 %v961, 126
    %v1024 = vpop.permute.xlu0 %1023
    %1025 = vrot.lane.b32.xlu0 %v962, 126
    %v1026 = vpop.permute.xlu0 %1025
    %1027 = vrot.lane.b32.xlu0 %v963, 126
    %v1028 = vpop.permute.xlu0 %1027
    %1029 = vrot.lane.b32.xlu0 %v964, 126
    %v1030 = vpop.permute.xlu0 %1029
    %1031 = vrot.lane.b32.xlu0 %v965, 126
    %v1032 = vpop.permute.xlu0 %1031
    %1033 = vrot.lane.b32.xlu0 %v966, 126
    %v1034 = vpop.permute.xlu0 %1033
    %1035 = vrot.lane.b32.xlu0 %v967, 126
    %v1036 = vpop.permute.xlu0 %1035
    %1037 = vrot.lane.b32.xlu0 %v968, 126
    %v1038 = vpop.permute.xlu0 %1037
    %1039 = vrot.lane.b32.xlu0 %v969, 126
    %v1040 = vpop.permute.xlu0 %1039
    %1041 = vrot.lane.b32.xlu0 %v970, 126
    %v1042 = vpop.permute.xlu0 %1041
    %v1067 = vadd.f32 %v923, %v996
    %v1068 = vadd.f32 %v924, %v998
    %v1069 = vadd.f32 %v925, %v1000
    %v1070 = vadd.f32 %v926, %v1002
    %v1071 = vadd.f32 %v927, %v1004
    %v1072 = vadd.f32 %v928, %v1006
    %v1073 = vadd.f32 %v929, %v1008
    %v1074 = vadd.f32 %v930, %v1010
    %v1075 = vadd.f32 %v931, %v1012
    %v1076 = vadd.f32 %v932, %v1014
    %v1077 = vadd.f32 %v933, %v1016
    %v1078 = vadd.f32 %v934, %v1018
    %v1079 = vadd.f32 %v935, %v1020
    %v1080 = vadd.f32 %v936, %v1022
    %v1081 = vadd.f32 %v937, %v1024
    %v1082 = vadd.f32 %v938, %v1026
    %v1083 = vadd.f32 %v939, %v1028
    %v1084 = vadd.f32 %v940, %v1030
    %v1085 = vadd.f32 %v941, %v1032
    %v1086 = vadd.f32 %v942, %v1034
    %v1087 = vadd.f32 %v943, %v1036
    %v1088 = vadd.f32 %v944, %v1038
    %v1089 = vadd.f32 %v945, %v1040
    %v1090 = vadd.f32 %v946, %v1042
    %v1091 = vmul.f32 %v755, 0.28097507
    %v1092 = vmul.f32 %v756, 0.28097507
    %v1093 = vmul.f32 %v757, 0.28097507
    %v1094 = vmul.f32 %v758, 0.28097507
    %v1095 = vmul.f32 %v759, 0.28097507
    %v1096 = vmul.f32 %v760, 0.28097507
    %v1097 = vmul.f32 %v761, 0.28097507
    %v1098 = vmul.f32 %v762, 0.28097507
    %v1099 = vmul.f32 %v763, 0.28097507
    %v1100 = vmul.f32 %v764, 0.28097507
    %v1101 = vmul.f32 %v765, 0.28097507
    %v1102 = vmul.f32 %v766, 0.28097507
    %v1103 = vmul.f32 %v767, 0.28097507
    %v1104 = vmul.f32 %v768, 0.28097507
    %v1105 = vmul.f32 %v769, 0.28097507
    %v1106 = vmul.f32 %v770, 0.28097507
    %v1107 = vmul.f32 %v771, 0.28097507
    %v1108 = vmul.f32 %v772, 0.28097507
    %v1109 = vmul.f32 %v773, 0.28097507
    %v1110 = vmul.f32 %v774, 0.28097507
    %v1111 = vmul.f32 %v775, 0.28097507
    %v1112 = vmul.f32 %v776, 0.28097507
    %v1113 = vmul.f32 %v777, 0.28097507
    %v1114 = vmul.f32 %v778, 0.28097507
    %1139 = vrot.lane.b32.xlu0 %v1091, 125
    %v1140 = vpop.permute.xlu0 %1139
    %1141 = vrot.lane.b32.xlu0 %v1092, 125
    %v1142 = vpop.permute.xlu0 %1141
    %1143 = vrot.lane.b32.xlu0 %v1093, 125
    %v1144 = vpop.permute.xlu0 %1143
    %1145 = vrot.lane.b32.xlu0 %v1094, 125
    %v1146 = vpop.permute.xlu0 %1145
    %1147 = vrot.lane.b32.xlu0 %v1095, 125
    %v1148 = vpop.permute.xlu0 %1147
    %1149 = vrot.lane.b32.xlu0 %v1096, 125
    %v1150 = vpop.permute.xlu0 %1149
    %1151 = vrot.lane.b32.xlu0 %v1097, 125
    %v1152 = vpop.permute.xlu0 %1151
    %1153 = vrot.lane.b32.xlu0 %v1098, 125
    %v1154 = vpop.permute.xlu0 %1153
    %1155 = vrot.lane.b32.xlu0 %v1099, 125
    %v1156 = vpop.permute.xlu0 %1155
    %1157 = vrot.lane.b32.xlu0 %v1100, 125
    %v1158 = vpop.permute.xlu0 %1157
    %1159 = vrot.lane.b32.xlu0 %v1101, 125
    %v1160 = vpop.permute.xlu0 %1159
    %1161 = vrot.lane.b32.xlu0 %v1102, 125
    %v1162 = vpop.permute.xlu0 %1161
    %1163 = vrot.lane.b32.xlu0 %v1103, 125
    %v1164 = vpop.permute.xlu0 %1163
    %1165 = vrot.lane.b32.xlu0 %v1104, 125
    %v1166 = vpop.permute.xlu0 %1165
    %1167 = vrot.lane.b32.xlu0 %v1105, 125
    %v1168 = vpop.permute.xlu0 %1167
    %1169 = vrot.lane.b32.xlu0 %v1106, 125
    %v1170 = vpop.permute.xlu0 %1169
    %1171 = vrot.lane.b32.xlu0 %v1107, 125
    %v1172 = vpop.permute.xlu0 %1171
    %1173 = vrot.lane.b32.xlu0 %v1108, 125
    %v1174 = vpop.permute.xlu0 %1173
    %1175 = vrot.lane.b32.xlu0 %v1109, 125
    %v1176 = vpop.permute.xlu0 %1175
    %1177 = vrot.lane.b32.xlu0 %v1110, 125
    %v1178 = vpop.permute.xlu0 %1177
    %1179 = vrot.lane.b32.xlu0 %v1111, 125
    %v1180 = vpop.permute.xlu0 %1179
    %1181 = vrot.lane.b32.xlu0 %v1112, 125
    %v1182 = vpop.permute.xlu0 %1181
    %1183 = vrot.lane.b32.xlu0 %v1113, 125
    %v1184 = vpop.permute.xlu0 %1183
    %1185 = vrot.lane.b32.xlu0 %v1114, 125
    %v1186 = vpop.permute.xlu0 %1185
    %v1211 = vadd.f32 %v1067, %v1140
    %v1212 = vadd.f32 %v1068, %v1142
    %v1213 = vadd.f32 %v1069, %v1144
    %v1214 = vadd.f32 %v1070, %v1146
    %v1215 = vadd.f32 %v1071, %v1148
    %v1216 = vadd.f32 %v1072, %v1150
    %v1217 = vadd.f32 %v1073, %v1152
    %v1218 = vadd.f32 %v1074, %v1154
    %v1219 = vadd.f32 %v1075, %v1156
    %v1220 = vadd.f32 %v1076, %v1158
    %v1221 = vadd.f32 %v1077, %v1160
    %v1222 = vadd.f32 %v1078, %v1162
    %v1223 = vadd.f32 %v1079, %v1164
    %v1224 = vadd.f32 %v1080, %v1166
    %v1225 = vadd.f32 %v1081, %v1168
    %v1226 = vadd.f32 %v1082, %v1170
    %v1227 = vadd.f32 %v1083, %v1172
    %v1228 = vadd.f32 %v1084, %v1174
    %v1229 = vadd.f32 %v1085, %v1176
    %v1230 = vadd.f32 %v1086, %v1178
    %v1231 = vadd.f32 %v1087, %v1180
    %v1232 = vadd.f32 %v1088, %v1182
    %v1233 = vadd.f32 %v1089, %v1184
    %v1234 = vadd.f32 %v1090, %v1186
    %1235 = vrot.lane.b32.xlu0 %v947, 124
    %v1236 = vpop.permute.xlu0 %1235
    %1237 = vrot.lane.b32.xlu0 %v948, 124
    %v1238 = vpop.permute.xlu0 %1237
    %1239 = vrot.lane.b32.xlu0 %v949, 124
    %v1240 = vpop.permute.xlu0 %1239
    %1241 = vrot.lane.b32.xlu0 %v950, 124
    %v1242 = vpop.permute.xlu0 %1241
    %1243 = vrot.lane.b32.xlu0 %v951, 124
    %v1244 = vpop.permute.xlu0 %1243
    %1245 = vrot.lane.b32.xlu0 %v952, 124
    %v1246 = vpop.permute.xlu0 %1245
    %1247 = vrot.lane.b32.xlu0 %v953, 124
    %v1248 = vpop.permute.xlu0 %1247
    %1249 = vrot.lane.b32.xlu0 %v954, 124
    %v1250 = vpop.permute.xlu0 %1249
    %1251 = vrot.lane.b32.xlu0 %v955, 124
    %v1252 = vpop.permute.xlu0 %1251
    %1253 = vrot.lane.b32.xlu0 %v956, 124
    %v1254 = vpop.permute.xlu0 %1253
    %1255 = vrot.lane.b32.xlu0 %v957, 124
    %v1256 = vpop.permute.xlu0 %1255
    %1257 = vrot.lane.b32.xlu0 %v958, 124
    %v1258 = vpop.permute.xlu0 %1257
    %1259 = vrot.lane.b32.xlu0 %v959, 124
    %v1260 = vpop.permute.xlu0 %1259
    %1261 = vrot.lane.b32.xlu0 %v960, 124
    %v1262 = vpop.permute.xlu0 %1261
    %1263 = vrot.lane.b32.xlu0 %v961, 124
    %v1264 = vpop.permute.xlu0 %1263
    %1265 = vrot.lane.b32.xlu0 %v962, 124
    %v1266 = vpop.permute.xlu0 %1265
    %1267 = vrot.lane.b32.xlu0 %v963, 124
    %v1268 = vpop.permute.xlu0 %1267
    %1269 = vrot.lane.b32.xlu0 %v964, 124
    %v1270 = vpop.permute.xlu0 %1269
    %1271 = vrot.lane.b32.xlu0 %v965, 124
    %v1272 = vpop.permute.xlu0 %1271
    %1273 = vrot.lane.b32.xlu0 %v966, 124
    %v1274 = vpop.permute.xlu0 %1273
    %1275 = vrot.lane.b32.xlu0 %v967, 124
    %v1276 = vpop.permute.xlu0 %1275
    %1277 = vrot.lane.b32.xlu0 %v968, 124
    %v1278 = vpop.permute.xlu0 %1277
    %1279 = vrot.lane.b32.xlu0 %v969, 124
    %v1280 = vpop.permute.xlu0 %1279
    %1281 = vrot.lane.b32.xlu0 %v970, 124
    %v1282 = vpop.permute.xlu0 %1281
    %v1307 = vadd.f32 %v1211, %v1236
    %v1308 = vadd.f32 %v1212, %v1238
    %v1309 = vadd.f32 %v1213, %v1240
    %v1310 = vadd.f32 %v1214, %v1242
    %v1311 = vadd.f32 %v1215, %v1244
    %v1312 = vadd.f32 %v1216, %v1246
    %v1313 = vadd.f32 %v1217, %v1248
    %v1314 = vadd.f32 %v1218, %v1250
    %v1315 = vadd.f32 %v1219, %v1252
    %v1316 = vadd.f32 %v1220, %v1254
    %v1317 = vadd.f32 %v1221, %v1256
    %v1318 = vadd.f32 %v1222, %v1258
    %v1319 = vadd.f32 %v1223, %v1260
    %v1320 = vadd.f32 %v1224, %v1262
    %v1321 = vadd.f32 %v1225, %v1264
    %v1322 = vadd.f32 %v1226, %v1266
    %v1323 = vadd.f32 %v1227, %v1268
    %v1324 = vadd.f32 %v1228, %v1270
    %v1325 = vadd.f32 %v1229, %v1272
    %v1326 = vadd.f32 %v1230, %v1274
    %v1327 = vadd.f32 %v1231, %v1276
    %v1328 = vadd.f32 %v1232, %v1278
    %v1329 = vadd.f32 %v1233, %v1280
    %v1330 = vadd.f32 %v1234, %v1282
    %1331 = vrot.lane.b32.xlu0 %v803, 123
    %v1332 = vpop.permute.xlu0 %1331
    %1333 = vrot.lane.b32.xlu0 %v804, 123
    %v1334 = vpop.permute.xlu0 %1333
    %1335 = vrot.lane.b32.xlu0 %v805, 123
    %v1336 = vpop.permute.xlu0 %1335
    %1337 = vrot.lane.b32.xlu0 %v806, 123
    %v1338 = vpop.permute.xlu0 %1337
    %1339 = vrot.lane.b32.xlu0 %v807, 123
    %v1340 = vpop.permute.xlu0 %1339
    %1341 = vrot.lane.b32.xlu0 %v808, 123
    %v1342 = vpop.permute.xlu0 %1341
    %1343 = vrot.lane.b32.xlu0 %v809, 123
    %v1344 = vpop.permute.xlu0 %1343
    %1345 = vrot.lane.b32.xlu0 %v810, 123
    %v1346 = vpop.permute.xlu0 %1345
    %1347 = vrot.lane.b32.xlu0 %v811, 123
    %v1348 = vpop.permute.xlu0 %1347
    %1349 = vrot.lane.b32.xlu0 %v812, 123
    %v1350 = vpop.permute.xlu0 %1349
    %1351 = vrot.lane.b32.xlu0 %v813, 123
    %v1352 = vpop.permute.xlu0 %1351
    %1353 = vrot.lane.b32.xlu0 %v814, 123
    %v1354 = vpop.permute.xlu0 %1353
    %1355 = vrot.lane.b32.xlu0 %v815, 123
    %v1356 = vpop.permute.xlu0 %1355
    %1357 = vrot.lane.b32.xlu0 %v816, 123
    %v1358 = vpop.permute.xlu0 %1357
    %1359 = vrot.lane.b32.xlu0 %v817, 123
    %v1360 = vpop.permute.xlu0 %1359
    %1361 = vrot.lane.b32.xlu0 %v818, 123
    %v1362 = vpop.permute.xlu0 %1361
    %1363 = vrot.lane.b32.xlu0 %v819, 123
    %v1364 = vpop.permute.xlu0 %1363
    %1365 = vrot.lane.b32.xlu0 %v820, 123
    %v1366 = vpop.permute.xlu0 %1365
    %1367 = vrot.lane.b32.xlu0 %v821, 123
    %v1368 = vpop.permute.xlu0 %1367
    %1369 = vrot.lane.b32.xlu0 %v822, 123
    %v1370 = vpop.permute.xlu0 %1369
    %1371 = vrot.lane.b32.xlu0 %v823, 123
    %v1372 = vpop.permute.xlu0 %1371
    %1373 = vrot.lane.b32.xlu0 %v824, 123
    %v1374 = vpop.permute.xlu0 %1373
    %1375 = vrot.lane.b32.xlu0 %v825, 123
    %v1376 = vpop.permute.xlu0 %1375
    %1377 = vrot.lane.b32.xlu0 %v826, 123
    %v1378 = vpop.permute.xlu0 %1377
    %v1403 = vadd.f32 %v1307, %v1332
    %v1404 = vadd.f32 %v1308, %v1334
    %v1405 = vadd.f32 %v1309, %v1336
    %v1406 = vadd.f32 %v1310, %v1338
    %v1407 = vadd.f32 %v1311, %v1340
    %v1408 = vadd.f32 %v1312, %v1342
    %v1409 = vadd.f32 %v1313, %v1344
    %v1410 = vadd.f32 %v1314, %v1346
    %v1411 = vadd.f32 %v1315, %v1348
    %v1412 = vadd.f32 %v1316, %v1350
    %v1413 = vadd.f32 %v1317, %v1352
    %v1414 = vadd.f32 %v1318, %v1354
    %v1415 = vadd.f32 %v1319, %v1356
    %v1416 = vadd.f32 %v1320, %v1358
    %v1417 = vadd.f32 %v1321, %v1360
    %v1418 = vadd.f32 %v1322, %v1362
    %v1419 = vadd.f32 %v1323, %v1364
    %v1420 = vadd.f32 %v1324, %v1366
    %v1421 = vadd.f32 %v1325, %v1368
    %v1422 = vadd.f32 %v1326, %v1370
    %v1423 = vadd.f32 %v1327, %v1372
    %v1424 = vadd.f32 %v1328, %v1374
    %v1425 = vadd.f32 %v1329, %v1376
    %v1426 = vadd.f32 %v1330, %v1378
    %v1427 = vmul.f32 %v36, 0.03802584
    %v1428 = vmul.f32 %v37, 0.03802584
    %v1429 = vmul.f32 %v38, 0.03802584
    %v1430 = vmul.f32 %v39, 0.03802584
    %v1431 = vmul.f32 %v40, 0.03802584
    %v1432 = vmul.f32 %v41, 0.03802584
    %v1433 = vmul.f32 %v42, 0.03802584
    %v1434 = vmul.f32 %v43, 0.03802584
    %v1435 = vmul.f32 %v44, 0.03802584
    %v1436 = vmul.f32 %v45, 0.03802584
    %v1437 = vmul.f32 %v46, 0.03802584
    %v1438 = vmul.f32 %v47, 0.03802584
    %v1439 = vmul.f32 %v48, 0.03802584
    %v1440 = vmul.f32 %v49, 0.03802584
    %v1441 = vmul.f32 %v50, 0.03802584
    %v1442 = vmul.f32 %v51, 0.03802584
    %v1443 = vmul.f32 %v52, 0.03802584
    %v1444 = vmul.f32 %v53, 0.03802584
    %v1445 = vmul.f32 %v54, 0.03802584
    %v1446 = vmul.f32 %v55, 0.03802584
    %v1447 = vmul.f32 %v56, 0.03802584
    %v1448 = vmul.f32 %v57, 0.03802584
    %v1449 = vmul.f32 %v58, 0.03802584
    %v1450 = vmul.f32 %v59, 0.03802584
    %v1451 = vmul.f32 %v36, 0.115512304
    %v1452 = vmul.f32 %v37, 0.115512304
    %v1453 = vmul.f32 %v38, 0.115512304
    %v1454 = vmul.f32 %v39, 0.115512304
    %v1455 = vmul.f32 %v40, 0.115512304
    %v1456 = vmul.f32 %v41, 0.115512304
    %v1457 = vmul.f32 %v42, 0.115512304
    %v1458 = vmul.f32 %v43, 0.115512304
    %v1459 = vmul.f32 %v44, 0.115512304
    %v1460 = vmul.f32 %v45, 0.115512304
    %v1461 = vmul.f32 %v46, 0.115512304
    %v1462 = vmul.f32 %v47, 0.115512304
    %v1463 = vmul.f32 %v48, 0.115512304
    %v1464 = vmul.f32 %v49, 0.115512304
    %v1465 = vmul.f32 %v50, 0.115512304
    %v1466 = vmul.f32 %v51, 0.115512304
    %v1467 = vmul.f32 %v52, 0.115512304
    %v1468 = vmul.f32 %v53, 0.115512304
    %v1469 = vmul.f32 %v54, 0.115512304
    %v1470 = vmul.f32 %v55, 0.115512304
    %v1471 = vmul.f32 %v56, 0.115512304
    %v1472 = vmul.f32 %v57, 0.115512304
    %v1473 = vmul.f32 %v58, 0.115512304
    %v1474 = vmul.f32 %v59, 0.115512304
    %v1499 = vrot.slane %v1451, 1
    %v1500 = vrot.slane %v1452, 1
    %v1501 = vsel %vm238, %v1499, %v1500
    %v1502 = vrot.slane %v1453, 1
    %v1503 = vsel %vm238, %v1500, %v1502
    %v1504 = vrot.slane %v1454, 1
    %v1505 = vrot.slane %v1455, 1
    %v1506 = vsel %vm238, %v1504, %v1505
    %v1507 = vrot.slane %v1456, 1
    %v1508 = vsel %vm238, %v1505, %v1507
    %v1509 = vrot.slane %v1457, 1
    %v1510 = vrot.slane %v1458, 1
    %v1511 = vsel %vm238, %v1509, %v1510
    %v1512 = vrot.slane %v1459, 1
    %v1513 = vsel %vm238, %v1510, %v1512
    %v1514 = vrot.slane %v1460, 1
    %v1515 = vrot.slane %v1461, 1
    %v1516 = vsel %vm238, %v1514, %v1515
    %v1517 = vrot.slane %v1462, 1
    %v1518 = vsel %vm238, %v1515, %v1517
    %v1519 = vrot.slane %v1463, 1
    %v1520 = vrot.slane %v1464, 1
    %v1521 = vsel %vm238, %v1519, %v1520
    %v1522 = vrot.slane %v1465, 1
    %v1523 = vsel %vm238, %v1520, %v1522
    %v1524 = vrot.slane %v1466, 1
    %v1525 = vrot.slane %v1467, 1
    %v1526 = vsel %vm238, %v1524, %v1525
    %v1527 = vrot.slane %v1468, 1
    %v1528 = vsel %vm238, %v1525, %v1527
    %v1529 = vrot.slane %v1469, 1
    %v1530 = vrot.slane %v1470, 1
    %v1531 = vsel %vm238, %v1529, %v1530
    %v1532 = vrot.slane %v1471, 1
    %v1533 = vsel %vm238, %v1530, %v1532
    %v1534 = vrot.slane %v1472, 1
    %v1535 = vrot.slane %v1473, 1
    %v1536 = vsel %vm238, %v1534, %v1535
    %v1537 = vrot.slane %v1474, 1
    %v1538 = vsel %vm238, %v1535, %v1537
    %v1563 = vadd.f32 %v1427, %v1501
    %v1564 = vadd.f32 %v1428, %v1503
    %v1565 = vadd.f32 %v1429, %v1502
    %v1566 = vadd.f32 %v1430, %v1506
    %v1567 = vadd.f32 %v1431, %v1508
    %v1568 = vadd.f32 %v1432, %v1507
    %v1569 = vadd.f32 %v1433, %v1511
    %v1570 = vadd.f32 %v1434, %v1513
    %v1571 = vadd.f32 %v1435, %v1512
    %v1572 = vadd.f32 %v1436, %v1516
    %v1573 = vadd.f32 %v1437, %v1518
    %v1574 = vadd.f32 %v1438, %v1517
    %v1575 = vadd.f32 %v1439, %v1521
    %v1576 = vadd.f32 %v1440, %v1523
    %v1577 = vadd.f32 %v1441, %v1522
    %v1578 = vadd.f32 %v1442, %v1526
    %v1579 = vadd.f32 %v1443, %v1528
    %v1580 = vadd.f32 %v1444, %v1527
    %v1581 = vadd.f32 %v1445, %v1531
    %v1582 = vadd.f32 %v1446, %v1533
    %v1583 = vadd.f32 %v1447, %v1532
    %v1584 = vadd.f32 %v1448, %v1536
    %v1585 = vadd.f32 %v1449, %v1538
    %v1586 = vadd.f32 %v1450, %v1537
    %v1587 = vmul.f32 %v36, 0.22498724
    %v1588 = vmul.f32 %v37, 0.22498724
    %v1589 = vmul.f32 %v38, 0.22498724
    %v1590 = vmul.f32 %v39, 0.22498724
    %v1591 = vmul.f32 %v40, 0.22498724
    %v1592 = vmul.f32 %v41, 0.22498724
    %v1593 = vmul.f32 %v42, 0.22498724
    %v1594 = vmul.f32 %v43, 0.22498724
    %v1595 = vmul.f32 %v44, 0.22498724
    %v1596 = vmul.f32 %v45, 0.22498724
    %v1597 = vmul.f32 %v46, 0.22498724
    %v1598 = vmul.f32 %v47, 0.22498724
    %v1599 = vmul.f32 %v48, 0.22498724
    %v1600 = vmul.f32 %v49, 0.22498724
    %v1601 = vmul.f32 %v50, 0.22498724
    %v1602 = vmul.f32 %v51, 0.22498724
    %v1603 = vmul.f32 %v52, 0.22498724
    %v1604 = vmul.f32 %v53, 0.22498724
    %v1605 = vmul.f32 %v54, 0.22498724
    %v1606 = vmul.f32 %v55, 0.22498724
    %v1607 = vmul.f32 %v56, 0.22498724
    %v1608 = vmul.f32 %v57, 0.22498724
    %v1609 = vmul.f32 %v58, 0.22498724
    %v1610 = vmul.f32 %v59, 0.22498724
    %v1635 = vrot.slane %v1587, 2
    %v1636 = vrot.slane %v1588, 2
    %v1637 = vsel %vm375, %v1635, %v1636
    %v1638 = vrot.slane %v1589, 2
    %v1639 = vsel %vm375, %v1636, %v1638
    %v1640 = vrot.slane %v1590, 2
    %v1641 = vrot.slane %v1591, 2
    %v1642 = vsel %vm375, %v1640, %v1641
    %v1643 = vrot.slane %v1592, 2
    %v1644 = vsel %vm375, %v1641, %v1643
    %v1645 = vrot.slane %v1593, 2
    %v1646 = vrot.slane %v1594, 2
    %v1647 = vsel %vm375, %v1645, %v1646
    %v1648 = vrot.slane %v1595, 2
    %v1649 = vsel %vm375, %v1646, %v1648
    %v1650 = vrot.slane %v1596, 2
    %v1651 = vrot.slane %v1597, 2
    %v1652 = vsel %vm375, %v1650, %v1651
    %v1653 = vrot.slane %v1598, 2
    %v1654 = vsel %vm375, %v1651, %v1653
    %v1655 = vrot.slane %v1599, 2
    %v1656 = vrot.slane %v1600, 2
    %v1657 = vsel %vm375, %v1655, %v1656
    %v1658 = vrot.slane %v1601, 2
    %v1659 = vsel %vm375, %v1656, %v1658
    %v1660 = vrot.slane %v1602, 2
    %v1661 = vrot.slane %v1603, 2
    %v1662 = vsel %vm375, %v1660, %v1661
    %v1663 = vrot.slane %v1604, 2
    %v1664 = vsel %vm375, %v1661, %v1663
    %v1665 = vrot.slane %v1605, 2
    %v1666 = vrot.slane %v1606, 2
    %v1667 = vsel %vm375, %v1665, %v1666
    %v1668 = vrot.slane %v1607, 2
    %v1669 = vsel %vm375, %v1666, %v1668
    %v1670 = vrot.slane %v1608, 2
    %v1671 = vrot.slane %v1609, 2
    %v1672 = vsel %vm375, %v1670, %v1671
    %v1673 = vrot.slane %v1610, 2
    %v1674 = vsel %vm375, %v1671, %v1673
    %v1699 = vadd.f32 %v1563, %v1637
    %v1700 = vadd.f32 %v1564, %v1639
    %v1701 = vadd.f32 %v1565, %v1638
    %v1702 = vadd.f32 %v1566, %v1642
    %v1703 = vadd.f32 %v1567, %v1644
    %v1704 = vadd.f32 %v1568, %v1643
    %v1705 = vadd.f32 %v1569, %v1647
    %v1706 = vadd.f32 %v1570, %v1649
    %v1707 = vadd.f32 %v1571, %v1648
    %v1708 = vadd.f32 %v1572, %v1652
    %v1709 = vadd.f32 %v1573, %v1654
    %v1710 = vadd.f32 %v1574, %v1653
    %v1711 = vadd.f32 %v1575, %v1657
    %v1712 = vadd.f32 %v1576, %v1659
    %v1713 = vadd.f32 %v1577, %v1658
    %v1714 = vadd.f32 %v1578, %v1662
    %v1715 = vadd.f32 %v1579, %v1664
    %v1716 = vadd.f32 %v1580, %v1663
    %v1717 = vadd.f32 %v1581, %v1667
    %v1718 = vadd.f32 %v1582, %v1669
    %v1719 = vadd.f32 %v1583, %v1668
    %v1720 = vadd.f32 %v1584, %v1672
    %v1721 = vadd.f32 %v1585, %v1674
    %v1722 = vadd.f32 %v1586, %v1673
    %v1723 = vmul.f32 %v36, 0.28097507
    %v1724 = vmul.f32 %v37, 0.28097507
    %v1725 = vmul.f32 %v38, 0.28097507
    %v1726 = vmul.f32 %v39, 0.28097507
    %v1727 = vmul.f32 %v40, 0.28097507
    %v1728 = vmul.f32 %v41, 0.28097507
    %v1729 = vmul.f32 %v42, 0.28097507
    %v1730 = vmul.f32 %v43, 0.28097507
    %v1731 = vmul.f32 %v44, 0.28097507
    %v1732 = vmul.f32 %v45, 0.28097507
    %v1733 = vmul.f32 %v46, 0.28097507
    %v1734 = vmul.f32 %v47, 0.28097507
    %v1735 = vmul.f32 %v48, 0.28097507
    %v1736 = vmul.f32 %v49, 0.28097507
    %v1737 = vmul.f32 %v50, 0.28097507
    %v1738 = vmul.f32 %v51, 0.28097507
    %v1739 = vmul.f32 %v52, 0.28097507
    %v1740 = vmul.f32 %v53, 0.28097507
    %v1741 = vmul.f32 %v54, 0.28097507
    %v1742 = vmul.f32 %v55, 0.28097507
    %v1743 = vmul.f32 %v56, 0.28097507
    %v1744 = vmul.f32 %v57, 0.28097507
    %v1745 = vmul.f32 %v58, 0.28097507
    %v1746 = vmul.f32 %v59, 0.28097507
    %v1771 = vrot.slane %v1723, 3
    %v1772 = vrot.slane %v1724, 3
    %v1773 = vsel %vm512, %v1771, %v1772
    %v1774 = vrot.slane %v1725, 3
    %v1775 = vsel %vm512, %v1772, %v1774
    %v1776 = vrot.slane %v1726, 3
    %v1777 = vrot.slane %v1727, 3
    %v1778 = vsel %vm512, %v1776, %v1777
    %v1779 = vrot.slane %v1728, 3
    %v1780 = vsel %vm512, %v1777, %v1779
    %v1781 = vrot.slane %v1729, 3
    %v1782 = vrot.slane %v1730, 3
    %v1783 = vsel %vm512, %v1781, %v1782
    %v1784 = vrot.slane %v1731, 3
    %v1785 = vsel %vm512, %v1782, %v1784
    %v1786 = vrot.slane %v1732, 3
    %v1787 = vrot.slane %v1733, 3
    %v1788 = vsel %vm512, %v1786, %v1787
    %v1789 = vrot.slane %v1734, 3
    %v1790 = vsel %vm512, %v1787, %v1789
    %v1791 = vrot.slane %v1735, 3
    %v1792 = vrot.slane %v1736, 3
    %v1793 = vsel %vm512, %v1791, %v1792
    %v1794 = vrot.slane %v1737, 3
    %v1795 = vsel %vm512, %v1792, %v1794
    %v1796 = vrot.slane %v1738, 3
    %v1797 = vrot.slane %v1739, 3
    %v1798 = vsel %vm512, %v1796, %v1797
    %v1799 = vrot.slane %v1740, 3
    %v1800 = vsel %vm512, %v1797, %v1799
    %v1801 = vrot.slane %v1741, 3
    %v1802 = vrot.slane %v1742, 3
    %v1803 = vsel %vm512, %v1801, %v1802
    %v1804 = vrot.slane %v1743, 3
    %v1805 = vsel %vm512, %v1802, %v1804
    %v1806 = vrot.slane %v1744, 3
    %v1807 = vrot.slane %v1745, 3
    %v1808 = vsel %vm512, %v1806, %v1807
    %v1809 = vrot.slane %v1746, 3
    %v1810 = vsel %vm512, %v1807, %v1809
    %v1835 = vadd.f32 %v1699, %v1773
    %v1836 = vadd.f32 %v1700, %v1775
    %v1837 = vadd.f32 %v1701, %v1774
    %v1838 = vadd.f32 %v1702, %v1778
    %v1839 = vadd.f32 %v1703, %v1780
    %v1840 = vadd.f32 %v1704, %v1779
    %v1841 = vadd.f32 %v1705, %v1783
    %v1842 = vadd.f32 %v1706, %v1785
    %v1843 = vadd.f32 %v1707, %v1784
    %v1844 = vadd.f32 %v1708, %v1788
    %v1845 = vadd.f32 %v1709, %v1790
    %v1846 = vadd.f32 %v1710, %v1789
    %v1847 = vadd.f32 %v1711, %v1793
    %v1848 = vadd.f32 %v1712, %v1795
    %v1849 = vadd.f32 %v1713, %v1794
    %v1850 = vadd.f32 %v1714, %v1798
    %v1851 = vadd.f32 %v1715, %v1800
    %v1852 = vadd.f32 %v1716, %v1799
    %v1853 = vadd.f32 %v1717, %v1803
    %v1854 = vadd.f32 %v1718, %v1805
    %v1855 = vadd.f32 %v1719, %v1804
    %v1856 = vadd.f32 %v1720, %v1808
    %v1857 = vadd.f32 %v1721, %v1810
    %v1858 = vadd.f32 %v1722, %v1809
    %v1859 = vrot.slane %v1587, 4
    %v1860 = vrot.slane %v1588, 4
    %v1861 = vsel %vm601, %v1859, %v1860
    %v1862 = vrot.slane %v1589, 4
    %v1863 = vsel %vm601, %v1860, %v1862
    %v1864 = vrot.slane %v1590, 4
    %v1865 = vrot.slane %v1591, 4
    %v1866 = vsel %vm601, %v1864, %v1865
    %v1867 = vrot.slane %v1592, 4
    %v1868 = vsel %vm601, %v1865, %v1867
    %v1869 = vrot.slane %v1593, 4
    %v1870 = vrot.slane %v1594, 4
    %v1871 = vsel %vm601, %v1869, %v1870
    %v1872 = vrot.slane %v1595, 4
    %v1873 = vsel %vm601, %v1870, %v1872
    %v1874 = vrot.slane %v1596, 4
    %v1875 = vrot.slane %v1597, 4
    %v1876 = vsel %vm601, %v1874, %v1875
    %v1877 = vrot.slane %v1598, 4
    %v1878 = vsel %vm601, %v1875, %v1877
    %v1879 = vrot.slane %v1599, 4
    %v1880 = vrot.slane %v1600, 4
    %v1881 = vsel %vm601, %v1879, %v1880
    %v1882 = vrot.slane %v1601, 4
    %v1883 = vsel %vm601, %v1880, %v1882
    %v1884 = vrot.slane %v1602, 4
    %v1885 = vrot.slane %v1603, 4
    %v1886 = vsel %vm601, %v1884, %v1885
    %v1887 = vrot.slane %v1604, 4
    %v1888 = vsel %vm601, %v1885, %v1887
    %v1889 = vrot.slane %v1605, 4
    %v1890 = vrot.slane %v1606, 4
    %v1891 = vsel %vm601, %v1889, %v1890
    %v1892 = vrot.slane %v1607, 4
    %v1893 = vsel %vm601, %v1890, %v1892
    %v1894 = vrot.slane %v1608, 4
    %v1895 = vrot.slane %v1609, 4
    %v1896 = vsel %vm601, %v1894, %v1895
    %v1897 = vrot.slane %v1610, 4
    %v1898 = vsel %vm601, %v1895, %v1897
    %v1923 = vadd.f32 %v1835, %v1861
    %v1924 = vadd.f32 %v1836, %v1863
    %v1925 = vadd.f32 %v1837, %v1862
    %v1926 = vadd.f32 %v1838, %v1866
    %v1927 = vadd.f32 %v1839, %v1868
    %v1928 = vadd.f32 %v1840, %v1867
    %v1929 = vadd.f32 %v1841, %v1871
    %v1930 = vadd.f32 %v1842, %v1873
    %v1931 = vadd.f32 %v1843, %v1872
    %v1932 = vadd.f32 %v1844, %v1876
    %v1933 = vadd.f32 %v1845, %v1878
    %v1934 = vadd.f32 %v1846, %v1877
    %v1935 = vadd.f32 %v1847, %v1881
    %v1936 = vadd.f32 %v1848, %v1883
    %v1937 = vadd.f32 %v1849, %v1882
    %v1938 = vadd.f32 %v1850, %v1886
    %v1939 = vadd.f32 %v1851, %v1888
    %v1940 = vadd.f32 %v1852, %v1887
    %v1941 = vadd.f32 %v1853, %v1891
    %v1942 = vadd.f32 %v1854, %v1893
    %v1943 = vadd.f32 %v1855, %v1892
    %v1944 = vadd.f32 %v1856, %v1896
    %v1945 = vadd.f32 %v1857, %v1898
    %v1946 = vadd.f32 %v1858, %v1897
    %v1947 = vrot.slane %v1451, 5
    %v1948 = vrot.slane %v1452, 5
    %v1949 = vsel %vm690, %v1947, %v1948
    %v1950 = vrot.slane %v1453, 5
    %v1951 = vsel %vm690, %v1948, %v1950
    %v1952 = vrot.slane %v1454, 5
    %v1953 = vrot.slane %v1455, 5
    %v1954 = vsel %vm690, %v1952, %v1953
    %v1955 = vrot.slane %v1456, 5
    %v1956 = vsel %vm690, %v1953, %v1955
    %v1957 = vrot.slane %v1457, 5
    %v1958 = vrot.slane %v1458, 5
    %v1959 = vsel %vm690, %v1957, %v1958
    %v1960 = vrot.slane %v1459, 5
    %v1961 = vsel %vm690, %v1958, %v1960
    %v1962 = vrot.slane %v1460, 5
    %v1963 = vrot.slane %v1461, 5
    %v1964 = vsel %vm690, %v1962, %v1963
    %v1965 = vrot.slane %v1462, 5
    %v1966 = vsel %vm690, %v1963, %v1965
    %v1967 = vrot.slane %v1463, 5
    %v1968 = vrot.slane %v1464, 5
    %v1969 = vsel %vm690, %v1967, %v1968
    %v1970 = vrot.slane %v1465, 5
    %v1971 = vsel %vm690, %v1968, %v1970
    %v1972 = vrot.slane %v1466, 5
    %v1973 = vrot.slane %v1467, 5
    %v1974 = vsel %vm690, %v1972, %v1973
    %v1975 = vrot.slane %v1468, 5
    %v1976 = vsel %vm690, %v1973, %v1975
    %v1977 = vrot.slane %v1469, 5
    %v1978 = vrot.slane %v1470, 5
    %v1979 = vsel %vm690, %v1977, %v1978
    %v1980 = vrot.slane %v1471, 5
    %v1981 = vsel %vm690, %v1978, %v1980
    %v1982 = vrot.slane %v1472, 5
    %v1983 = vrot.slane %v1473, 5
    %v1984 = vsel %vm690, %v1982, %v1983
    %v1985 = vrot.slane %v1474, 5
    %v1986 = vsel %vm690, %v1983, %v1985
    %v2011 = vadd.f32 %v1923, %v1949
    %v2012 = vadd.f32 %v1924, %v1951
    %v2013 = vadd.f32 %v1925, %v1950
    %v2014 = vadd.f32 %v1926, %v1954
    %v2015 = vadd.f32 %v1927, %v1956
    %v2016 = vadd.f32 %v1928, %v1955
    %v2017 = vadd.f32 %v1929, %v1959
    %v2018 = vadd.f32 %v1930, %v1961
    %v2019 = vadd.f32 %v1931, %v1960
    %v2020 = vadd.f32 %v1932, %v1964
    %v2021 = vadd.f32 %v1933, %v1966
    %v2022 = vadd.f32 %v1934, %v1965
    %v2023 = vadd.f32 %v1935, %v1969
    %v2024 = vadd.f32 %v1936, %v1971
    %v2025 = vadd.f32 %v1937, %v1970
    %v2026 = vadd.f32 %v1938, %v1974
    %v2027 = vadd.f32 %v1939, %v1976
    %v2028 = vadd.f32 %v1940, %v1975
    %v2029 = vadd.f32 %v1941, %v1979
    %v2030 = vadd.f32 %v1942, %v1981
    %v2031 = vadd.f32 %v1943, %v1980
    %v2032 = vadd.f32 %v1944, %v1984
    %v2033 = vadd.f32 %v1945, %v1986
    %v2034 = vadd.f32 %v1946, %v1985
    %v2035 = vmul.f32 %v2011, 0.03802584
    %v2036 = vmul.f32 %v2012, 0.03802584
    %v2037 = vmul.f32 %v2013, 0.03802584
    %v2038 = vmul.f32 %v2014, 0.03802584
    %v2039 = vmul.f32 %v2015, 0.03802584
    %v2040 = vmul.f32 %v2016, 0.03802584
    %v2041 = vmul.f32 %v2017, 0.03802584
    %v2042 = vmul.f32 %v2018, 0.03802584
    %v2043 = vmul.f32 %v2019, 0.03802584
    %v2044 = vmul.f32 %v2020, 0.03802584
    %v2045 = vmul.f32 %v2021, 0.03802584
    %v2046 = vmul.f32 %v2022, 0.03802584
    %v2047 = vmul.f32 %v2023, 0.03802584
    %v2048 = vmul.f32 %v2024, 0.03802584
    %v2049 = vmul.f32 %v2025, 0.03802584
    %v2050 = vmul.f32 %v2026, 0.03802584
    %v2051 = vmul.f32 %v2027, 0.03802584
    %v2052 = vmul.f32 %v2028, 0.03802584
    %v2053 = vmul.f32 %v2029, 0.03802584
    %v2054 = vmul.f32 %v2030, 0.03802584
    %v2055 = vmul.f32 %v2031, 0.03802584
    %v2056 = vmul.f32 %v2032, 0.03802584
    %v2057 = vmul.f32 %v2033, 0.03802584
    %v2058 = vmul.f32 %v2034, 0.03802584
    %v2059 = vmul.f32 %v2011, 0.115512304
    %v2060 = vmul.f32 %v2012, 0.115512304
    %v2061 = vmul.f32 %v2013, 0.115512304
    %v2062 = vmul.f32 %v2014, 0.115512304
    %v2063 = vmul.f32 %v2015, 0.115512304
    %v2064 = vmul.f32 %v2016, 0.115512304
    %v2065 = vmul.f32 %v2017, 0.115512304
    %v2066 = vmul.f32 %v2018, 0.115512304
    %v2067 = vmul.f32 %v2019, 0.115512304
    %v2068 = vmul.f32 %v2020, 0.115512304
    %v2069 = vmul.f32 %v2021, 0.115512304
    %v2070 = vmul.f32 %v2022, 0.115512304
    %v2071 = vmul.f32 %v2023, 0.115512304
    %v2072 = vmul.f32 %v2024, 0.115512304
    %v2073 = vmul.f32 %v2025, 0.115512304
    %v2074 = vmul.f32 %v2026, 0.115512304
    %v2075 = vmul.f32 %v2027, 0.115512304
    %v2076 = vmul.f32 %v2028, 0.115512304
    %v2077 = vmul.f32 %v2029, 0.115512304
    %v2078 = vmul.f32 %v2030, 0.115512304
    %v2079 = vmul.f32 %v2031, 0.115512304
    %v2080 = vmul.f32 %v2032, 0.115512304
    %v2081 = vmul.f32 %v2033, 0.115512304
    %v2082 = vmul.f32 %v2034, 0.115512304
    %2107 = vrot.lane.b32.xlu0 %v2059, 127
    %v2108 = vpop.permute.xlu0 %2107
    %2109 = vrot.lane.b32.xlu0 %v2060, 127
    %v2110 = vpop.permute.xlu0 %2109
    %2111 = vrot.lane.b32.xlu0 %v2061, 127
    %v2112 = vpop.permute.xlu0 %2111
    %2113 = vrot.lane.b32.xlu0 %v2062, 127
    %v2114 = vpop.permute.xlu0 %2113
    %2115 = vrot.lane.b32.xlu0 %v2063, 127
    %v2116 = vpop.permute.xlu0 %2115
    %2117 = vrot.lane.b32.xlu0 %v2064, 127
    %v2118 = vpop.permute.xlu0 %2117
    %2119 = vrot.lane.b32.xlu0 %v2065, 127
    %v2120 = vpop.permute.xlu0 %2119
    %2121 = vrot.lane.b32.xlu0 %v2066, 127
    %v2122 = vpop.permute.xlu0 %2121
    %2123 = vrot.lane.b32.xlu0 %v2067, 127
    %v2124 = vpop.permute.xlu0 %2123
    %2125 = vrot.lane.b32.xlu0 %v2068, 127
    %v2126 = vpop.permute.xlu0 %2125
    %2127 = vrot.lane.b32.xlu0 %v2069, 127
    %v2128 = vpop.permute.xlu0 %2127
    %2129 = vrot.lane.b32.xlu0 %v2070, 127
    %v2130 = vpop.permute.xlu0 %2129
    %2131 = vrot.lane.b32.xlu0 %v2071, 127
    %v2132 = vpop.permute.xlu0 %2131
    %2133 = vrot.lane.b32.xlu0 %v2072, 127
    %v2134 = vpop.permute.xlu0 %2133
    %2135 = vrot.lane.b32.xlu0 %v2073, 127
    %v2136 = vpop.permute.xlu0 %2135
    %2137 = vrot.lane.b32.xlu0 %v2074, 127
    %v2138 = vpop.permute.xlu0 %2137
    %2139 = vrot.lane.b32.xlu0 %v2075, 127
    %v2140 = vpop.permute.xlu0 %2139
    %2141 = vrot.lane.b32.xlu0 %v2076, 127
    %v2142 = vpop.permute.xlu0 %2141
    %2143 = vrot.lane.b32.xlu0 %v2077, 127
    %v2144 = vpop.permute.xlu0 %2143
    %2145 = vrot.lane.b32.xlu0 %v2078, 127
    %v2146 = vpop.permute.xlu0 %2145
    %2147 = vrot.lane.b32.xlu0 %v2079, 127
    %v2148 = vpop.permute.xlu0 %2147
    %2149 = vrot.lane.b32.xlu0 %v2080, 127
    %v2150 = vpop.permute.xlu0 %2149
    %2151 = vrot.lane.b32.xlu0 %v2081, 127
    %v2152 = vpop.permute.xlu0 %2151
    %2153 = vrot.lane.b32.xlu0 %v2082, 127
    %v2154 = vpop.permute.xlu0 %2153
    %v2179 = vadd.f32 %v2035, %v2108
    %v2180 = vadd.f32 %v2036, %v2110
    %v2181 = vadd.f32 %v2037, %v2112
    %v2182 = vadd.f32 %v2038, %v2114
    %v2183 = vadd.f32 %v2039, %v2116
    %v2184 = vadd.f32 %v2040, %v2118
    %v2185 = vadd.f32 %v2041, %v2120
    %v2186 = vadd.f32 %v2042, %v2122
    %v2187 = vadd.f32 %v2043, %v2124
    %v2188 = vadd.f32 %v2044, %v2126
    %v2189 = vadd.f32 %v2045, %v2128
    %v2190 = vadd.f32 %v2046, %v2130
    %v2191 = vadd.f32 %v2047, %v2132
    %v2192 = vadd.f32 %v2048, %v2134
    %v2193 = vadd.f32 %v2049, %v2136
    %v2194 = vadd.f32 %v2050, %v2138
    %v2195 = vadd.f32 %v2051, %v2140
    %v2196 = vadd.f32 %v2052, %v2142
    %v2197 = vadd.f32 %v2053, %v2144
    %v2198 = vadd.f32 %v2054, %v2146
    %v2199 = vadd.f32 %v2055, %v2148
    %v2200 = vadd.f32 %v2056, %v2150
    %v2201 = vadd.f32 %v2057, %v2152
    %v2202 = vadd.f32 %v2058, %v2154
    %v2203 = vmul.f32 %v2011, 0.22498724
    %v2204 = vmul.f32 %v2012, 0.22498724
    %v2205 = vmul.f32 %v2013, 0.22498724
    %v2206 = vmul.f32 %v2014, 0.22498724
    %v2207 = vmul.f32 %v2015, 0.22498724
    %v2208 = vmul.f32 %v2016, 0.22498724
    %v2209 = vmul.f32 %v2017, 0.22498724
    %v2210 = vmul.f32 %v2018, 0.22498724
    %v2211 = vmul.f32 %v2019, 0.22498724
    %v2212 = vmul.f32 %v2020, 0.22498724
    %v2213 = vmul.f32 %v2021, 0.22498724
    %v2214 = vmul.f32 %v2022, 0.22498724
    %v2215 = vmul.f32 %v2023, 0.22498724
    %v2216 = vmul.f32 %v2024, 0.22498724
    %v2217 = vmul.f32 %v2025, 0.22498724
    %v2218 = vmul.f32 %v2026, 0.22498724
    %v2219 = vmul.f32 %v2027, 0.22498724
    %v2220 = vmul.f32 %v2028, 0.22498724
    %v2221 = vmul.f32 %v2029, 0.22498724
    %v2222 = vmul.f32 %v2030, 0.22498724
    %v2223 = vmul.f32 %v2031, 0.22498724
    %v2224 = vmul.f32 %v2032, 0.22498724
    %v2225 = vmul.f32 %v2033, 0.22498724
    %v2226 = vmul.f32 %v2034, 0.22498724
    %2251 = vrot.lane.b32.xlu0 %v2203, 126
    %v2252 = vpop.permute.xlu0 %2251
    %2253 = vrot.lane.b32.xlu0 %v2204, 126
    %v2254 = vpop.permute.xlu0 %2253
    %2255 = vrot.lane.b32.xlu0 %v2205, 126
    %v2256 = vpop.permute.xlu0 %2255
    %2257 = vrot.lane.b32.xlu0 %v2206, 126
    %v2258 = vpop.permute.xlu0 %2257
    %2259 = vrot.lane.b32.xlu0 %v2207, 126
    %v2260 = vpop.permute.xlu0 %2259
    %2261 = vrot.lane.b32.xlu0 %v2208, 126
    %v2262 = vpop.permute.xlu0 %2261
    %2263 = vrot.lane.b32.xlu0 %v2209, 126
    %v2264 = vpop.permute.xlu0 %2263
    %2265 = vrot.lane.b32.xlu0 %v2210, 126
    %v2266 = vpop.permute.xlu0 %2265
    %2267 = vrot.lane.b32.xlu0 %v2211, 126
    %v2268 = vpop.permute.xlu0 %2267
    %2269 = vrot.lane.b32.xlu0 %v2212, 126
    %v2270 = vpop.permute.xlu0 %2269
    %2271 = vrot.lane.b32.xlu0 %v2213, 126
    %v2272 = vpop.permute.xlu0 %2271
    %2273 = vrot.lane.b32.xlu0 %v2214, 126
    %v2274 = vpop.permute.xlu0 %2273
    %2275 = vrot.lane.b32.xlu0 %v2215, 126
    %v2276 = vpop.permute.xlu0 %2275
    %2277 = vrot.lane.b32.xlu0 %v2216, 126
    %v2278 = vpop.permute.xlu0 %2277
    %2279 = vrot.lane.b32.xlu0 %v2217, 126
    %v2280 = vpop.permute.xlu0 %2279
    %2281 = vrot.lane.b32.xlu0 %v2218, 126
    %v2282 = vpop.permute.xlu0 %2281
    %2283 = vrot.lane.b32.xlu0 %v2219, 126
    %v2284 = vpop.permute.xlu0 %2283
    %2285 = vrot.lane.b32.xlu0 %v2220, 126
    %v2286 = vpop.permute.xlu0 %2285
    %2287 = vrot.lane.b32.xlu0 %v2221, 126
    %v2288 = vpop.permute.xlu0 %2287
    %2289 = vrot.lane.b32.xlu0 %v2222, 126
    %v2290 = vpop.permute.xlu0 %2289
    %2291 = vrot.lane.b32.xlu0 %v2223, 126
    %v2292 = vpop.permute.xlu0 %2291
    %2293 = vrot.lane.b32.xlu0 %v2224, 126
    %v2294 = vpop.permute.xlu0 %2293
    %2295 = vrot.lane.b32.xlu0 %v2225, 126
    %v2296 = vpop.permute.xlu0 %2295
    %2297 = vrot.lane.b32.xlu0 %v2226, 126
    %v2298 = vpop.permute.xlu0 %2297
    %v2323 = vadd.f32 %v2179, %v2252
    %v2324 = vadd.f32 %v2180, %v2254
    %v2325 = vadd.f32 %v2181, %v2256
    %v2326 = vadd.f32 %v2182, %v2258
    %v2327 = vadd.f32 %v2183, %v2260
    %v2328 = vadd.f32 %v2184, %v2262
    %v2329 = vadd.f32 %v2185, %v2264
    %v2330 = vadd.f32 %v2186, %v2266
    %v2331 = vadd.f32 %v2187, %v2268
    %v2332 = vadd.f32 %v2188, %v2270
    %v2333 = vadd.f32 %v2189, %v2272
    %v2334 = vadd.f32 %v2190, %v2274
    %v2335 = vadd.f32 %v2191, %v2276
    %v2336 = vadd.f32 %v2192, %v2278
    %v2337 = vadd.f32 %v2193, %v2280
    %v2338 = vadd.f32 %v2194, %v2282
    %v2339 = vadd.f32 %v2195, %v2284
    %v2340 = vadd.f32 %v2196, %v2286
    %v2341 = vadd.f32 %v2197, %v2288
    %v2342 = vadd.f32 %v2198, %v2290
    %v2343 = vadd.f32 %v2199, %v2292
    %v2344 = vadd.f32 %v2200, %v2294
    %v2345 = vadd.f32 %v2201, %v2296
    %v2346 = vadd.f32 %v2202, %v2298
    %v2347 = vmul.f32 %v2011, 0.28097507
    %v2348 = vmul.f32 %v2012, 0.28097507
    %v2349 = vmul.f32 %v2013, 0.28097507
    %v2350 = vmul.f32 %v2014, 0.28097507
    %v2351 = vmul.f32 %v2015, 0.28097507
    %v2352 = vmul.f32 %v2016, 0.28097507
    %v2353 = vmul.f32 %v2017, 0.28097507
    %v2354 = vmul.f32 %v2018, 0.28097507
    %v2355 = vmul.f32 %v2019, 0.28097507
    %v2356 = vmul.f32 %v2020, 0.28097507
    %v2357 = vmul.f32 %v2021, 0.28097507
    %v2358 = vmul.f32 %v2022, 0.28097507
    %v2359 = vmul.f32 %v2023, 0.28097507
    %v2360 = vmul.f32 %v2024, 0.28097507
    %v2361 = vmul.f32 %v2025, 0.28097507
    %v2362 = vmul.f32 %v2026, 0.28097507
    %v2363 = vmul.f32 %v2027, 0.28097507
    %v2364 = vmul.f32 %v2028, 0.28097507
    %v2365 = vmul.f32 %v2029, 0.28097507
    %v2366 = vmul.f32 %v2030, 0.28097507
    %v2367 = vmul.f32 %v2031, 0.28097507
    %v2368 = vmul.f32 %v2032, 0.28097507
    %v2369 = vmul.f32 %v2033, 0.28097507
    %v2370 = vmul.f32 %v2034, 0.28097507
    %2395 = vrot.lane.b32.xlu0 %v2347, 125
    %v2396 = vpop.permute.xlu0 %2395
    %2397 = vrot.lane.b32.xlu0 %v2348, 125
    %v2398 = vpop.permute.xlu0 %2397
    %2399 = vrot.lane.b32.xlu0 %v2349, 125
    %v2400 = vpop.permute.xlu0 %2399
    %2401 = vrot.lane.b32.xlu0 %v2350, 125
    %v2402 = vpop.permute.xlu0 %2401
    %2403 = vrot.lane.b32.xlu0 %v2351, 125
    %v2404 = vpop.permute.xlu0 %2403
    %2405 = vrot.lane.b32.xlu0 %v2352, 125
    %v2406 = vpop.permute.xlu0 %2405
    %2407 = vrot.lane.b32.xlu0 %v2353, 125
    %v2408 = vpop.permute.xlu0 %2407
    %2409 = vrot.lane.b32.xlu0 %v2354, 125
    %v2410 = vpop.permute.xlu0 %2409
    %2411 = vrot.lane.b32.xlu0 %v2355, 125
    %v2412 = vpop.permute.xlu0 %2411
    %2413 = vrot.lane.b32.xlu0 %v2356, 125
    %v2414 = vpop.permute.xlu0 %2413
    %2415 = vrot.lane.b32.xlu0 %v2357, 125
    %v2416 = vpop.permute.xlu0 %2415
    %2417 = vrot.lane.b32.xlu0 %v2358, 125
    %v2418 = vpop.permute.xlu0 %2417
    %2419 = vrot.lane.b32.xlu0 %v2359, 125
    %v2420 = vpop.permute.xlu0 %2419
    %2421 = vrot.lane.b32.xlu0 %v2360, 125
    %v2422 = vpop.permute.xlu0 %2421
    %2423 = vrot.lane.b32.xlu0 %v2361, 125
    %v2424 = vpop.permute.xlu0 %2423
    %2425 = vrot.lane.b32.xlu0 %v2362, 125
    %v2426 = vpop.permute.xlu0 %2425
    %2427 = vrot.lane.b32.xlu0 %v2363, 125
    %v2428 = vpop.permute.xlu0 %2427
    %2429 = vrot.lane.b32.xlu0 %v2364, 125
    %v2430 = vpop.permute.xlu0 %2429
    %2431 = vrot.lane.b32.xlu0 %v2365, 125
    %v2432 = vpop.permute.xlu0 %2431
    %2433 = vrot.lane.b32.xlu0 %v2366, 125
    %v2434 = vpop.permute.xlu0 %2433
    %2435 = vrot.lane.b32.xlu0 %v2367, 125
    %v2436 = vpop.permute.xlu0 %2435
    %2437 = vrot.lane.b32.xlu0 %v2368, 125
    %v2438 = vpop.permute.xlu0 %2437
    %2439 = vrot.lane.b32.xlu0 %v2369, 125
    %v2440 = vpop.permute.xlu0 %2439
    %2441 = vrot.lane.b32.xlu0 %v2370, 125
    %v2442 = vpop.permute.xlu0 %2441
    %v2467 = vadd.f32 %v2323, %v2396
    %v2468 = vadd.f32 %v2324, %v2398
    %v2469 = vadd.f32 %v2325, %v2400
    %v2470 = vadd.f32 %v2326, %v2402
    %v2471 = vadd.f32 %v2327, %v2404
    %v2472 = vadd.f32 %v2328, %v2406
    %v2473 = vadd.f32 %v2329, %v2408
    %v2474 = vadd.f32 %v2330, %v2410
    %v2475 = vadd.f32 %v2331, %v2412
    %v2476 = vadd.f32 %v2332, %v2414
    %v2477 = vadd.f32 %v2333, %v2416
    %v2478 = vadd.f32 %v2334, %v2418
    %v2479 = vadd.f32 %v2335, %v2420
    %v2480 = vadd.f32 %v2336, %v2422
    %v2481 = vadd.f32 %v2337, %v2424
    %v2482 = vadd.f32 %v2338, %v2426
    %v2483 = vadd.f32 %v2339, %v2428
    %v2484 = vadd.f32 %v2340, %v2430
    %v2485 = vadd.f32 %v2341, %v2432
    %v2486 = vadd.f32 %v2342, %v2434
    %v2487 = vadd.f32 %v2343, %v2436
    %v2488 = vadd.f32 %v2344, %v2438
    %v2489 = vadd.f32 %v2345, %v2440
    %v2490 = vadd.f32 %v2346, %v2442
    %2491 = vrot.lane.b32.xlu0 %v2203, 124
    %v2492 = vpop.permute.xlu0 %2491
    %2493 = vrot.lane.b32.xlu0 %v2204, 124
    %v2494 = vpop.permute.xlu0 %2493
    %2495 = vrot.lane.b32.xlu0 %v2205, 124
    %v2496 = vpop.permute.xlu0 %2495
    %2497 = vrot.lane.b32.xlu0 %v2206, 124
    %v2498 = vpop.permute.xlu0 %2497
    %2499 = vrot.lane.b32.xlu0 %v2207, 124
    %v2500 = vpop.permute.xlu0 %2499
    %2501 = vrot.lane.b32.xlu0 %v2208, 124
    %v2502 = vpop.permute.xlu0 %2501
    %2503 = vrot.lane.b32.xlu0 %v2209, 124
    %v2504 = vpop.permute.xlu0 %2503
    %2505 = vrot.lane.b32.xlu0 %v2210, 124
    %v2506 = vpop.permute.xlu0 %2505
    %2507 = vrot.lane.b32.xlu0 %v2211, 124
    %v2508 = vpop.permute.xlu0 %2507
    %2509 = vrot.lane.b32.xlu0 %v2212, 124
    %v2510 = vpop.permute.xlu0 %2509
    %2511 = vrot.lane.b32.xlu0 %v2213, 124
    %v2512 = vpop.permute.xlu0 %2511
    %2513 = vrot.lane.b32.xlu0 %v2214, 124
    %v2514 = vpop.permute.xlu0 %2513
    %2515 = vrot.lane.b32.xlu0 %v2215, 124
    %v2516 = vpop.permute.xlu0 %2515
    %2517 = vrot.lane.b32.xlu0 %v2216, 124
    %v2518 = vpop.permute.xlu0 %2517
    %2519 = vrot.lane.b32.xlu0 %v2217, 124
    %v2520 = vpop.permute.xlu0 %2519
    %2521 = vrot.lane.b32.xlu0 %v2218, 124
    %v2522 = vpop.permute.xlu0 %2521
    %2523 = vrot.lane.b32.xlu0 %v2219, 124
    %v2524 = vpop.permute.xlu0 %2523
    %2525 = vrot.lane.b32.xlu0 %v2220, 124
    %v2526 = vpop.permute.xlu0 %2525
    %2527 = vrot.lane.b32.xlu0 %v2221, 124
    %v2528 = vpop.permute.xlu0 %2527
    %2529 = vrot.lane.b32.xlu0 %v2222, 124
    %v2530 = vpop.permute.xlu0 %2529
    %2531 = vrot.lane.b32.xlu0 %v2223, 124
    %v2532 = vpop.permute.xlu0 %2531
    %2533 = vrot.lane.b32.xlu0 %v2224, 124
    %v2534 = vpop.permute.xlu0 %2533
    %2535 = vrot.lane.b32.xlu0 %v2225, 124
    %v2536 = vpop.permute.xlu0 %2535
    %2537 = vrot.lane.b32.xlu0 %v2226, 124
    %v2538 = vpop.permute.xlu0 %2537
    %v2563 = vadd.f32 %v2467, %v2492
    %v2564 = vadd.f32 %v2468, %v2494
    %v2565 = vadd.f32 %v2469, %v2496
    %v2566 = vadd.f32 %v2470, %v2498
    %v2567 = vadd.f32 %v2471, %v2500
    %v2568 = vadd.f32 %v2472, %v2502
    %v2569 = vadd.f32 %v2473, %v2504
    %v2570 = vadd.f32 %v2474, %v2506
    %v2571 = vadd.f32 %v2475, %v2508
    %v2572 = vadd.f32 %v2476, %v2510
    %v2573 = vadd.f32 %v2477, %v2512
    %v2574 = vadd.f32 %v2478, %v2514
    %v2575 = vadd.f32 %v2479, %v2516
    %v2576 = vadd.f32 %v2480, %v2518
    %v2577 = vadd.f32 %v2481, %v2520
    %v2578 = vadd.f32 %v2482, %v2522
    %v2579 = vadd.f32 %v2483, %v2524
    %v2580 = vadd.f32 %v2484, %v2526
    %v2581 = vadd.f32 %v2485, %v2528
    %v2582 = vadd.f32 %v2486, %v2530
    %v2583 = vadd.f32 %v2487, %v2532
    %v2584 = vadd.f32 %v2488, %v2534
    %v2585 = vadd.f32 %v2489, %v2536
    %v2586 = vadd.f32 %v2490, %v2538
    %2587 = vrot.lane.b32.xlu0 %v2059, 123
    %v2588 = vpop.permute.xlu0 %2587
    %2589 = vrot.lane.b32.xlu0 %v2060, 123
    %v2590 = vpop.permute.xlu0 %2589
    %2591 = vrot.lane.b32.xlu0 %v2061, 123
    %v2592 = vpop.permute.xlu0 %2591
    %2593 = vrot.lane.b32.xlu0 %v2062, 123
    %v2594 = vpop.permute.xlu0 %2593
    %2595 = vrot.lane.b32.xlu0 %v2063, 123
    %v2596 = vpop.permute.xlu0 %2595
    %2597 = vrot.lane.b32.xlu0 %v2064, 123
    %v2598 = vpop.permute.xlu0 %2597
    %2599 = vrot.lane.b32.xlu0 %v2065, 123
    %v2600 = vpop.permute.xlu0 %2599
    %2601 = vrot.lane.b32.xlu0 %v2066, 123
    %v2602 = vpop.permute.xlu0 %2601
    %2603 = vrot.lane.b32.xlu0 %v2067, 123
    %v2604 = vpop.permute.xlu0 %2603
    %2605 = vrot.lane.b32.xlu0 %v2068, 123
    %v2606 = vpop.permute.xlu0 %2605
    %2607 = vrot.lane.b32.xlu0 %v2069, 123
    %v2608 = vpop.permute.xlu0 %2607
    %2609 = vrot.lane.b32.xlu0 %v2070, 123
    %v2610 = vpop.permute.xlu0 %2609
    %2611 = vrot.lane.b32.xlu0 %v2071, 123
    %v2612 = vpop.permute.xlu0 %2611
    %2613 = vrot.lane.b32.xlu0 %v2072, 123
    %v2614 = vpop.permute.xlu0 %2613
    %2615 = vrot.lane.b32.xlu0 %v2073, 123
    %v2616 = vpop.permute.xlu0 %2615
    %2617 = vrot.lane.b32.xlu0 %v2074, 123
    %v2618 = vpop.permute.xlu0 %2617
    %2619 = vrot.lane.b32.xlu0 %v2075, 123
    %v2620 = vpop.permute.xlu0 %2619
    %2621 = vrot.lane.b32.xlu0 %v2076, 123
    %v2622 = vpop.permute.xlu0 %2621
    %2623 = vrot.lane.b32.xlu0 %v2077, 123
    %v2624 = vpop.permute.xlu0 %2623
    %2625 = vrot.lane.b32.xlu0 %v2078, 123
    %v2626 = vpop.permute.xlu0 %2625
    %2627 = vrot.lane.b32.xlu0 %v2079, 123
    %v2628 = vpop.permute.xlu0 %2627
    %2629 = vrot.lane.b32.xlu0 %v2080, 123
    %v2630 = vpop.permute.xlu0 %2629
    %2631 = vrot.lane.b32.xlu0 %v2081, 123
    %v2632 = vpop.permute.xlu0 %2631
    %2633 = vrot.lane.b32.xlu0 %v2082, 123
    %v2634 = vpop.permute.xlu0 %2633
    %v2659 = vadd.f32 %v2563, %v2588
    %v2660 = vadd.f32 %v2564, %v2590
    %v2661 = vadd.f32 %v2565, %v2592
    %v2662 = vadd.f32 %v2566, %v2594
    %v2663 = vadd.f32 %v2567, %v2596
    %v2664 = vadd.f32 %v2568, %v2598
    %v2665 = vadd.f32 %v2569, %v2600
    %v2666 = vadd.f32 %v2570, %v2602
    %v2667 = vadd.f32 %v2571, %v2604
    %v2668 = vadd.f32 %v2572, %v2606
    %v2669 = vadd.f32 %v2573, %v2608
    %v2670 = vadd.f32 %v2574, %v2610
    %v2671 = vadd.f32 %v2575, %v2612
    %v2672 = vadd.f32 %v2576, %v2614
    %v2673 = vadd.f32 %v2577, %v2616
    %v2674 = vadd.f32 %v2578, %v2618
    %v2675 = vadd.f32 %v2579, %v2620
    %v2676 = vadd.f32 %v2580, %v2622
    %v2677 = vadd.f32 %v2581, %v2624
    %v2678 = vadd.f32 %v2582, %v2626
    %v2679 = vadd.f32 %v2583, %v2628
    %v2680 = vadd.f32 %v2584, %v2630
    %v2681 = vadd.f32 %v2585, %v2632
    %v2682 = vadd.f32 %v2586, %v2634
    %v2683 = vmul.f32 %v1403, %v1403
    %v2684 = vmul.f32 %v1404, %v1404
    %v2685 = vmul.f32 %v1405, %v1405
    %v2686 = vmul.f32 %v1406, %v1406
    %v2687 = vmul.f32 %v1407, %v1407
    %v2688 = vmul.f32 %v1408, %v1408
    %v2689 = vmul.f32 %v1409, %v1409
    %v2690 = vmul.f32 %v1410, %v1410
    %v2691 = vmul.f32 %v1411, %v1411
    %v2692 = vmul.f32 %v1412, %v1412
    %v2693 = vmul.f32 %v1413, %v1413
    %v2694 = vmul.f32 %v1414, %v1414
    %v2695 = vmul.f32 %v1415, %v1415
    %v2696 = vmul.f32 %v1416, %v1416
    %v2697 = vmul.f32 %v1417, %v1417
    %v2698 = vmul.f32 %v1418, %v1418
    %v2699 = vmul.f32 %v1419, %v1419
    %v2700 = vmul.f32 %v1420, %v1420
    %v2701 = vmul.f32 %v1421, %v1421
    %v2702 = vmul.f32 %v1422, %v1422
    %v2703 = vmul.f32 %v1423, %v1423
    %v2704 = vmul.f32 %v1424, %v1424
    %v2705 = vmul.f32 %v1425, %v1425
    %v2706 = vmul.f32 %v1426, %v1426
    %v2707 = vmul.f32 %v2659, %v2659
    %v2708 = vmul.f32 %v2660, %v2660
    %v2709 = vmul.f32 %v2661, %v2661
    %v2710 = vmul.f32 %v2662, %v2662
    %v2711 = vmul.f32 %v2663, %v2663
    %v2712 = vmul.f32 %v2664, %v2664
    %v2713 = vmul.f32 %v2665, %v2665
    %v2714 = vmul.f32 %v2666, %v2666
    %v2715 = vmul.f32 %v2667, %v2667
    %v2716 = vmul.f32 %v2668, %v2668
    %v2717 = vmul.f32 %v2669, %v2669
    %v2718 = vmul.f32 %v2670, %v2670
    %v2719 = vmul.f32 %v2671, %v2671
    %v2720 = vmul.f32 %v2672, %v2672
    %v2721 = vmul.f32 %v2673, %v2673
    %v2722 = vmul.f32 %v2674, %v2674
    %v2723 = vmul.f32 %v2675, %v2675
    %v2724 = vmul.f32 %v2676, %v2676
    %v2725 = vmul.f32 %v2677, %v2677
    %v2726 = vmul.f32 %v2678, %v2678
    %v2727 = vmul.f32 %v2679, %v2679
    %v2728 = vmul.f32 %v2680, %v2680
    %v2729 = vmul.f32 %v2681, %v2681
    %v2730 = vmul.f32 %v2682, %v2682
    %v2731 = vmul.f32 %v1403, %v2659
    %v2732 = vmul.f32 %v1404, %v2660
    %v2733 = vmul.f32 %v1405, %v2661
    %v2734 = vmul.f32 %v1406, %v2662
    %v2735 = vmul.f32 %v1407, %v2663
    %v2736 = vmul.f32 %v1408, %v2664
    %v2737 = vmul.f32 %v1409, %v2665
    %v2738 = vmul.f32 %v1410, %v2666
    %v2739 = vmul.f32 %v1411, %v2667
    %v2740 = vmul.f32 %v1412, %v2668
    %v2741 = vmul.f32 %v1413, %v2669
    %v2742 = vmul.f32 %v1414, %v2670
    %v2743 = vmul.f32 %v1415, %v2671
    %v2744 = vmul.f32 %v1416, %v2672
    %v2745 = vmul.f32 %v1417, %v2673
    %v2746 = vmul.f32 %v1418, %v2674
    %v2747 = vmul.f32 %v1419, %v2675
    %v2748 = vmul.f32 %v1420, %v2676
    %v2749 = vmul.f32 %v1421, %v2677
    %v2750 = vmul.f32 %v1422, %v2678
    %v2751 = vmul.f32 %v1423, %v2679
    %v2752 = vmul.f32 %v1424, %v2680
    %v2753 = vmul.f32 %v1425, %v2681
    %v2754 = vmul.f32 %v1426, %v2682
    %v2755 = vmul.f32 %v12, %v12
    %v2756 = vmul.f32 %v13, %v13
    %v2757 = vmul.f32 %v14, %v14
    %v2758 = vmul.f32 %v15, %v15
    %v2759 = vmul.f32 %v16, %v16
    %v2760 = vmul.f32 %v17, %v17
    %v2761 = vmul.f32 %v18, %v18
    %v2762 = vmul.f32 %v19, %v19
    %v2763 = vmul.f32 %v20, %v20
    %v2764 = vmul.f32 %v21, %v21
    %v2765 = vmul.f32 %v22, %v22
    %v2766 = vmul.f32 %v23, %v23
    %v2767 = vmul.f32 %v24, %v24
    %v2768 = vmul.f32 %v25, %v25
    %v2769 = vmul.f32 %v26, %v26
    %v2770 = vmul.f32 %v27, %v27
    %v2771 = vmul.f32 %v28, %v28
    %v2772 = vmul.f32 %v29, %v29
    %v2773 = vmul.f32 %v30, %v30
    %v2774 = vmul.f32 %v31, %v31
    %v2775 = vmul.f32 %v32, %v32
    %v2776 = vmul.f32 %v33, %v33
    %v2777 = vmul.f32 %v34, %v34
    %v2778 = vmul.f32 %v35, %v35
    %v2779 = vmul.f32 %v2755, 0.03802584
    %v2780 = vmul.f32 %v2756, 0.03802584
    %v2781 = vmul.f32 %v2757, 0.03802584
    %v2782 = vmul.f32 %v2758, 0.03802584
    %v2783 = vmul.f32 %v2759, 0.03802584
    %v2784 = vmul.f32 %v2760, 0.03802584
    %v2785 = vmul.f32 %v2761, 0.03802584
    %v2786 = vmul.f32 %v2762, 0.03802584
    %v2787 = vmul.f32 %v2763, 0.03802584
    %v2788 = vmul.f32 %v2764, 0.03802584
    %v2789 = vmul.f32 %v2765, 0.03802584
    %v2790 = vmul.f32 %v2766, 0.03802584
    %v2791 = vmul.f32 %v2767, 0.03802584
    %v2792 = vmul.f32 %v2768, 0.03802584
    %v2793 = vmul.f32 %v2769, 0.03802584
    %v2794 = vmul.f32 %v2770, 0.03802584
    %v2795 = vmul.f32 %v2771, 0.03802584
    %v2796 = vmul.f32 %v2772, 0.03802584
    %v2797 = vmul.f32 %v2773, 0.03802584
    %v2798 = vmul.f32 %v2774, 0.03802584
    %v2799 = vmul.f32 %v2775, 0.03802584
    %v2800 = vmul.f32 %v2776, 0.03802584
    %v2801 = vmul.f32 %v2777, 0.03802584
    %v2802 = vmul.f32 %v2778, 0.03802584
    %v2803 = vmul.f32 %v2755, 0.115512304
    %v2804 = vmul.f32 %v2756, 0.115512304
    %v2805 = vmul.f32 %v2757, 0.115512304
    %v2806 = vmul.f32 %v2758, 0.115512304
    %v2807 = vmul.f32 %v2759, 0.115512304
    %v2808 = vmul.f32 %v2760, 0.115512304
    %v2809 = vmul.f32 %v2761, 0.115512304
    %v2810 = vmul.f32 %v2762, 0.115512304
    %v2811 = vmul.f32 %v2763, 0.115512304
    %v2812 = vmul.f32 %v2764, 0.115512304
    %v2813 = vmul.f32 %v2765, 0.115512304
    %v2814 = vmul.f32 %v2766, 0.115512304
    %v2815 = vmul.f32 %v2767, 0.115512304
    %v2816 = vmul.f32 %v2768, 0.115512304
    %v2817 = vmul.f32 %v2769, 0.115512304
    %v2818 = vmul.f32 %v2770, 0.115512304
    %v2819 = vmul.f32 %v2771, 0.115512304
    %v2820 = vmul.f32 %v2772, 0.115512304
    %v2821 = vmul.f32 %v2773, 0.115512304
    %v2822 = vmul.f32 %v2774, 0.115512304
    %v2823 = vmul.f32 %v2775, 0.115512304
    %v2824 = vmul.f32 %v2776, 0.115512304
    %v2825 = vmul.f32 %v2777, 0.115512304
    %v2826 = vmul.f32 %v2778, 0.115512304
    %v2851 = vrot.slane %v2803, 1
    %v2852 = vrot.slane %v2804, 1
    %v2853 = vsel %vm238, %v2851, %v2852
    %v2854 = vrot.slane %v2805, 1
    %v2855 = vsel %vm238, %v2852, %v2854
    %v2856 = vrot.slane %v2806, 1
    %v2857 = vrot.slane %v2807, 1
    %v2858 = vsel %vm238, %v2856, %v2857
    %v2859 = vrot.slane %v2808, 1
    %v2860 = vsel %vm238, %v2857, %v2859
    %v2861 = vrot.slane %v2809, 1
    %v2862 = vrot.slane %v2810, 1
    %v2863 = vsel %vm238, %v2861, %v2862
    %v2864 = vrot.slane %v2811, 1
    %v2865 = vsel %vm238, %v2862, %v2864
    %v2866 = vrot.slane %v2812, 1
    %v2867 = vrot.slane %v2813, 1
    %v2868 = vsel %vm238, %v2866, %v2867
    %v2869 = vrot.slane %v2814, 1
    %v2870 = vsel %vm238, %v2867, %v2869
    %v2871 = vrot.slane %v2815, 1
    %v2872 = vrot.slane %v2816, 1
    %v2873 = vsel %vm238, %v2871, %v2872
    %v2874 = vrot.slane %v2817, 1
    %v2875 = vsel %vm238, %v2872, %v2874
    %v2876 = vrot.slane %v2818, 1
    %v2877 = vrot.slane %v2819, 1
    %v2878 = vsel %vm238, %v2876, %v2877
    %v2879 = vrot.slane %v2820, 1
    %v2880 = vsel %vm238, %v2877, %v2879
    %v2881 = vrot.slane %v2821, 1
    %v2882 = vrot.slane %v2822, 1
    %v2883 = vsel %vm238, %v2881, %v2882
    %v2884 = vrot.slane %v2823, 1
    %v2885 = vsel %vm238, %v2882, %v2884
    %v2886 = vrot.slane %v2824, 1
    %v2887 = vrot.slane %v2825, 1
    %v2888 = vsel %vm238, %v2886, %v2887
    %v2889 = vrot.slane %v2826, 1
    %v2890 = vsel %vm238, %v2887, %v2889
    %v2915 = vadd.f32 %v2779, %v2853
    %v2916 = vadd.f32 %v2780, %v2855
    %v2917 = vadd.f32 %v2781, %v2854
    %v2918 = vadd.f32 %v2782, %v2858
    %v2919 = vadd.f32 %v2783, %v2860
    %v2920 = vadd.f32 %v2784, %v2859
    %v2921 = vadd.f32 %v2785, %v2863
    %v2922 = vadd.f32 %v2786, %v2865
    %v2923 = vadd.f32 %v2787, %v2864
    %v2924 = vadd.f32 %v2788, %v2868
    %v2925 = vadd.f32 %v2789, %v2870
    %v2926 = vadd.f32 %v2790, %v2869
    %v2927 = vadd.f32 %v2791, %v2873
    %v2928 = vadd.f32 %v2792, %v2875
    %v2929 = vadd.f32 %v2793, %v2874
    %v2930 = vadd.f32 %v2794, %v2878
    %v2931 = vadd.f32 %v2795, %v2880
    %v2932 = vadd.f32 %v2796, %v2879
    %v2933 = vadd.f32 %v2797, %v2883
    %v2934 = vadd.f32 %v2798, %v2885
    %v2935 = vadd.f32 %v2799, %v2884
    %v2936 = vadd.f32 %v2800, %v2888
    %v2937 = vadd.f32 %v2801, %v2890
    %v2938 = vadd.f32 %v2802, %v2889
    %v2939 = vmul.f32 %v2755, 0.22498724
    %v2940 = vmul.f32 %v2756, 0.22498724
    %v2941 = vmul.f32 %v2757, 0.22498724
    %v2942 = vmul.f32 %v2758, 0.22498724
    %v2943 = vmul.f32 %v2759, 0.22498724
    %v2944 = vmul.f32 %v2760, 0.22498724
    %v2945 = vmul.f32 %v2761, 0.22498724
    %v2946 = vmul.f32 %v2762, 0.22498724
    %v2947 = vmul.f32 %v2763, 0.22498724
    %v2948 = vmul.f32 %v2764, 0.22498724
    %v2949 = vmul.f32 %v2765, 0.22498724
    %v2950 = vmul.f32 %v2766, 0.22498724
    %v2951 = vmul.f32 %v2767, 0.22498724
    %v2952 = vmul.f32 %v2768, 0.22498724
    %v2953 = vmul.f32 %v2769, 0.22498724
    %v2954 = vmul.f32 %v2770, 0.22498724
    %v2955 = vmul.f32 %v2771, 0.22498724
    %v2956 = vmul.f32 %v2772, 0.22498724
    %v2957 = vmul.f32 %v2773, 0.22498724
    %v2958 = vmul.f32 %v2774, 0.22498724
    %v2959 = vmul.f32 %v2775, 0.22498724
    %v2960 = vmul.f32 %v2776, 0.22498724
    %v2961 = vmul.f32 %v2777, 0.22498724
    %v2962 = vmul.f32 %v2778, 0.22498724
    %v2987 = vrot.slane %v2939, 2
    %v2988 = vrot.slane %v2940, 2
    %v2989 = vsel %vm375, %v2987, %v2988
    %v2990 = vrot.slane %v2941, 2
    %v2991 = vsel %vm375, %v2988, %v2990
    %v2992 = vrot.slane %v2942, 2
    %v2993 = vrot.slane %v2943, 2
    %v2994 = vsel %vm375, %v2992, %v2993
    %v2995 = vrot.slane %v2944, 2
    %v2996 = vsel %vm375, %v2993, %v2995
    %v2997 = vrot.slane %v2945, 2
    %v2998 = vrot.slane %v2946, 2
    %v2999 = vsel %vm375, %v2997, %v2998
    %v3000 = vrot.slane %v2947, 2
    %v3001 = vsel %vm375, %v2998, %v3000
    %v3002 = vrot.slane %v2948, 2
    %v3003 = vrot.slane %v2949, 2
    %v3004 = vsel %vm375, %v3002, %v3003
    %v3005 = vrot.slane %v2950, 2
    %v3006 = vsel %vm375, %v3003, %v3005
    %v3007 = vrot.slane %v2951, 2
    %v3008 = vrot.slane %v2952, 2
    %v3009 = vsel %vm375, %v3007, %v3008
    %v3010 = vrot.slane %v2953, 2
    %v3011 = vsel %vm375, %v3008, %v3010
    %v3012 = vrot.slane %v2954, 2
    %v3013 = vrot.slane %v2955, 2
    %v3014 = vsel %vm375, %v3012, %v3013
    %v3015 = vrot.slane %v2956, 2
    %v3016 = vsel %vm375, %v3013, %v3015
    %v3017 = vrot.slane %v2957, 2
    %v3018 = vrot.slane %v2958, 2
    %v3019 = vsel %vm375, %v3017, %v3018
    %v3020 = vrot.slane %v2959, 2
    %v3021 = vsel %vm375, %v3018, %v3020
    %v3022 = vrot.slane %v2960, 2
    %v3023 = vrot.slane %v2961, 2
    %v3024 = vsel %vm375, %v3022, %v3023
    %v3025 = vrot.slane %v2962, 2
    %v3026 = vsel %vm375, %v3023, %v3025
    %v3051 = vadd.f32 %v2915, %v2989
    %v3052 = vadd.f32 %v2916, %v2991
    %v3053 = vadd.f32 %v2917, %v2990
    %v3054 = vadd.f32 %v2918, %v2994
    %v3055 = vadd.f32 %v2919, %v2996
    %v3056 = vadd.f32 %v2920, %v2995
    %v3057 = vadd.f32 %v2921, %v2999
    %v3058 = vadd.f32 %v2922, %v3001
    %v3059 = vadd.f32 %v2923, %v3000
    %v3060 = vadd.f32 %v2924, %v3004
    %v3061 = vadd.f32 %v2925, %v3006
    %v3062 = vadd.f32 %v2926, %v3005
    %v3063 = vadd.f32 %v2927, %v3009
    %v3064 = vadd.f32 %v2928, %v3011
    %v3065 = vadd.f32 %v2929, %v3010
    %v3066 = vadd.f32 %v2930, %v3014
    %v3067 = vadd.f32 %v2931, %v3016
    %v3068 = vadd.f32 %v2932, %v3015
    %v3069 = vadd.f32 %v2933, %v3019
    %v3070 = vadd.f32 %v2934, %v3021
    %v3071 = vadd.f32 %v2935, %v3020
    %v3072 = vadd.f32 %v2936, %v3024
    %v3073 = vadd.f32 %v2937, %v3026
    %v3074 = vadd.f32 %v2938, %v3025
    %v3075 = vmul.f32 %v2755, 0.28097507
    %v3076 = vmul.f32 %v2756, 0.28097507
    %v3077 = vmul.f32 %v2757, 0.28097507
    %v3078 = vmul.f32 %v2758, 0.28097507
    %v3079 = vmul.f32 %v2759, 0.28097507
    %v3080 = vmul.f32 %v2760, 0.28097507
    %v3081 = vmul.f32 %v2761, 0.28097507
    %v3082 = vmul.f32 %v2762, 0.28097507
    %v3083 = vmul.f32 %v2763, 0.28097507
    %v3084 = vmul.f32 %v2764, 0.28097507
    %v3085 = vmul.f32 %v2765, 0.28097507
    %v3086 = vmul.f32 %v2766, 0.28097507
    %v3087 = vmul.f32 %v2767, 0.28097507
    %v3088 = vmul.f32 %v2768, 0.28097507
    %v3089 = vmul.f32 %v2769, 0.28097507
    %v3090 = vmul.f32 %v2770, 0.28097507
    %v3091 = vmul.f32 %v2771, 0.28097507
    %v3092 = vmul.f32 %v2772, 0.28097507
    %v3093 = vmul.f32 %v2773, 0.28097507
    %v3094 = vmul.f32 %v2774, 0.28097507
    %v3095 = vmul.f32 %v2775, 0.28097507
    %v3096 = vmul.f32 %v2776, 0.28097507
    %v3097 = vmul.f32 %v2777, 0.28097507
    %v3098 = vmul.f32 %v2778, 0.28097507
    %v3123 = vrot.slane %v3075, 3
    %v3124 = vrot.slane %v3076, 3
    %v3125 = vsel %vm512, %v3123, %v3124
    %v3126 = vrot.slane %v3077, 3
    %v3127 = vsel %vm512, %v3124, %v3126
    %v3128 = vrot.slane %v3078, 3
    %v3129 = vrot.slane %v3079, 3
    %v3130 = vsel %vm512, %v3128, %v3129
    %v3131 = vrot.slane %v3080, 3
    %v3132 = vsel %vm512, %v3129, %v3131
    %v3133 = vrot.slane %v3081, 3
    %v3134 = vrot.slane %v3082, 3
    %v3135 = vsel %vm512, %v3133, %v3134
    %v3136 = vrot.slane %v3083, 3
    %v3137 = vsel %vm512, %v3134, %v3136
    %v3138 = vrot.slane %v3084, 3
    %v3139 = vrot.slane %v3085, 3
    %v3140 = vsel %vm512, %v3138, %v3139
    %v3141 = vrot.slane %v3086, 3
    %v3142 = vsel %vm512, %v3139, %v3141
    %v3143 = vrot.slane %v3087, 3
    %v3144 = vrot.slane %v3088, 3
    %v3145 = vsel %vm512, %v3143, %v3144
    %v3146 = vrot.slane %v3089, 3
    %v3147 = vsel %vm512, %v3144, %v3146
    %v3148 = vrot.slane %v3090, 3
    %v3149 = vrot.slane %v3091, 3
    %v3150 = vsel %vm512, %v3148, %v3149
    %v3151 = vrot.slane %v3092, 3
    %v3152 = vsel %vm512, %v3149, %v3151
    %v3153 = vrot.slane %v3093, 3
    %v3154 = vrot.slane %v3094, 3
    %v3155 = vsel %vm512, %v3153, %v3154
    %v3156 = vrot.slane %v3095, 3
    %v3157 = vsel %vm512, %v3154, %v3156
    %v3158 = vrot.slane %v3096, 3
    %v3159 = vrot.slane %v3097, 3
    %v3160 = vsel %vm512, %v3158, %v3159
    %v3161 = vrot.slane %v3098, 3
    %v3162 = vsel %vm512, %v3159, %v3161
    %v3187 = vadd.f32 %v3051, %v3125
    %v3188 = vadd.f32 %v3052, %v3127
    %v3189 = vadd.f32 %v3053, %v3126
    %v3190 = vadd.f32 %v3054, %v3130
    %v3191 = vadd.f32 %v3055, %v3132
    %v3192 = vadd.f32 %v3056, %v3131
    %v3193 = vadd.f32 %v3057, %v3135
    %v3194 = vadd.f32 %v3058, %v3137
    %v3195 = vadd.f32 %v3059, %v3136
    %v3196 = vadd.f32 %v3060, %v3140
    %v3197 = vadd.f32 %v3061, %v3142
    %v3198 = vadd.f32 %v3062, %v3141
    %v3199 = vadd.f32 %v3063, %v3145
    %v3200 = vadd.f32 %v3064, %v3147
    %v3201 = vadd.f32 %v3065, %v3146
    %v3202 = vadd.f32 %v3066, %v3150
    %v3203 = vadd.f32 %v3067, %v3152
    %v3204 = vadd.f32 %v3068, %v3151
    %v3205 = vadd.f32 %v3069, %v3155
    %v3206 = vadd.f32 %v3070, %v3157
    %v3207 = vadd.f32 %v3071, %v3156
    %v3208 = vadd.f32 %v3072, %v3160
    %v3209 = vadd.f32 %v3073, %v3162
    %v3210 = vadd.f32 %v3074, %v3161
    %v3211 = vrot.slane %v2939, 4
    %v3212 = vrot.slane %v2940, 4
    %v3213 = vsel %vm601, %v3211, %v3212
    %v3214 = vrot.slane %v2941, 4
    %v3215 = vsel %vm601, %v3212, %v3214
    %v3216 = vrot.slane %v2942, 4
    %v3217 = vrot.slane %v2943, 4
    %v3218 = vsel %vm601, %v3216, %v3217
    %v3219 = vrot.slane %v2944, 4
    %v3220 = vsel %vm601, %v3217, %v3219
    %v3221 = vrot.slane %v2945, 4
    %v3222 = vrot.slane %v2946, 4
    %v3223 = vsel %vm601, %v3221, %v3222
    %v3224 = vrot.slane %v2947, 4
    %v3225 = vsel %vm601, %v3222, %v3224
    %v3226 = vrot.slane %v2948, 4
    %v3227 = vrot.slane %v2949, 4
    %v3228 = vsel %vm601, %v3226, %v3227
    %v3229 = vrot.slane %v2950, 4
    %v3230 = vsel %vm601, %v3227, %v3229
    %v3231 = vrot.slane %v2951, 4
    %v3232 = vrot.slane %v2952, 4
    %v3233 = vsel %vm601, %v3231, %v3232
    %v3234 = vrot.slane %v2953, 4
    %v3235 = vsel %vm601, %v3232, %v3234
    %v3236 = vrot.slane %v2954, 4
    %v3237 = vrot.slane %v2955, 4
    %v3238 = vsel %vm601, %v3236, %v3237
    %v3239 = vrot.slane %v2956, 4
    %v3240 = vsel %vm601, %v3237, %v3239
    %v3241 = vrot.slane %v2957, 4
    %v3242 = vrot.slane %v2958, 4
    %v3243 = vsel %vm601, %v3241, %v3242
    %v3244 = vrot.slane %v2959, 4
    %v3245 = vsel %vm601, %v3242, %v3244
    %v3246 = vrot.slane %v2960, 4
    %v3247 = vrot.slane %v2961, 4
    %v3248 = vsel %vm601, %v3246, %v3247
    %v3249 = vrot.slane %v2962, 4
    %v3250 = vsel %vm601, %v3247, %v3249
    %v3275 = vadd.f32 %v3187, %v3213
    %v3276 = vadd.f32 %v3188, %v3215
    %v3277 = vadd.f32 %v3189, %v3214
    %v3278 = vadd.f32 %v3190, %v3218
    %v3279 = vadd.f32 %v3191, %v3220
    %v3280 = vadd.f32 %v3192, %v3219
    %v3281 = vadd.f32 %v3193, %v3223
    %v3282 = vadd.f32 %v3194, %v3225
    %v3283 = vadd.f32 %v3195, %v3224
    %v3284 = vadd.f32 %v3196, %v3228
    %v3285 = vadd.f32 %v3197, %v3230
    %v3286 = vadd.f32 %v3198, %v3229
    %v3287 = vadd.f32 %v3199, %v3233
    %v3288 = vadd.f32 %v3200, %v3235
    %v3289 = vadd.f32 %v3201, %v3234
    %v3290 = vadd.f32 %v3202, %v3238
    %v3291 = vadd.f32 %v3203, %v3240
    %v3292 = vadd.f32 %v3204, %v3239
    %v3293 = vadd.f32 %v3205, %v3243
    %v3294 = vadd.f32 %v3206, %v3245
    %v3295 = vadd.f32 %v3207, %v3244
    %v3296 = vadd.f32 %v3208, %v3248
    %v3297 = vadd.f32 %v3209, %v3250
    %v3298 = vadd.f32 %v3210, %v3249
    %v3299 = vrot.slane %v2803, 5
    %v3300 = vrot.slane %v2804, 5
    %v3301 = vsel %vm690, %v3299, %v3300
    %v3302 = vrot.slane %v2805, 5
    %v3303 = vsel %vm690, %v3300, %v3302
    %v3304 = vrot.slane %v2806, 5
    %v3305 = vrot.slane %v2807, 5
    %v3306 = vsel %vm690, %v3304, %v3305
    %v3307 = vrot.slane %v2808, 5
    %v3308 = vsel %vm690, %v3305, %v3307
    %v3309 = vrot.slane %v2809, 5
    %v3310 = vrot.slane %v2810, 5
    %v3311 = vsel %vm690, %v3309, %v3310
    %v3312 = vrot.slane %v2811, 5
    %v3313 = vsel %vm690, %v3310, %v3312
    %v3314 = vrot.slane %v2812, 5
    %v3315 = vrot.slane %v2813, 5
    %v3316 = vsel %vm690, %v3314, %v3315
    %v3317 = vrot.slane %v2814, 5
    %v3318 = vsel %vm690, %v3315, %v3317
    %v3319 = vrot.slane %v2815, 5
    %v3320 = vrot.slane %v2816, 5
    %v3321 = vsel %vm690, %v3319, %v3320
    %v3322 = vrot.slane %v2817, 5
    %v3323 = vsel %vm690, %v3320, %v3322
    %v3324 = vrot.slane %v2818, 5
    %v3325 = vrot.slane %v2819, 5
    %v3326 = vsel %vm690, %v3324, %v3325
    %v3327 = vrot.slane %v2820, 5
    %v3328 = vsel %vm690, %v3325, %v3327
    %v3329 = vrot.slane %v2821, 5
    %v3330 = vrot.slane %v2822, 5
    %v3331 = vsel %vm690, %v3329, %v3330
    %v3332 = vrot.slane %v2823, 5
    %v3333 = vsel %vm690, %v3330, %v3332
    %v3334 = vrot.slane %v2824, 5
    %v3335 = vrot.slane %v2825, 5
    %v3336 = vsel %vm690, %v3334, %v3335
    %v3337 = vrot.slane %v2826, 5
    %v3338 = vsel %vm690, %v3335, %v3337
    %v3363 = vadd.f32 %v3275, %v3301
    %v3364 = vadd.f32 %v3276, %v3303
    %v3365 = vadd.f32 %v3277, %v3302
    %v3366 = vadd.f32 %v3278, %v3306
    %v3367 = vadd.f32 %v3279, %v3308
    %v3368 = vadd.f32 %v3280, %v3307
    %v3369 = vadd.f32 %v3281, %v3311
    %v3370 = vadd.f32 %v3282, %v3313
    %v3371 = vadd.f32 %v3283, %v3312
    %v3372 = vadd.f32 %v3284, %v3316
    %v3373 = vadd.f32 %v3285, %v3318
    %v3374 = vadd.f32 %v3286, %v3317
    %v3375 = vadd.f32 %v3287, %v3321
    %v3376 = vadd.f32 %v3288, %v3323
    %v3377 = vadd.f32 %v3289, %v3322
    %v3378 = vadd.f32 %v3290, %v3326
    %v3379 = vadd.f32 %v3291, %v3328
    %v3380 = vadd.f32 %v3292, %v3327
    %v3381 = vadd.f32 %v3293, %v3331
    %v3382 = vadd.f32 %v3294, %v3333
    %v3383 = vadd.f32 %v3295, %v3332
    %v3384 = vadd.f32 %v3296, %v3336
    %v3385 = vadd.f32 %v3297, %v3338
    %v3386 = vadd.f32 %v3298, %v3337
    %v3387 = vmul.f32 %v3363, 0.03802584
    %v3388 = vmul.f32 %v3364, 0.03802584
    %v3389 = vmul.f32 %v3365, 0.03802584
    %v3390 = vmul.f32 %v3366, 0.03802584
    %v3391 = vmul.f32 %v3367, 0.03802584
    %v3392 = vmul.f32 %v3368, 0.03802584
    %v3393 = vmul.f32 %v3369, 0.03802584
    %v3394 = vmul.f32 %v3370, 0.03802584
    %v3395 = vmul.f32 %v3371, 0.03802584
    %v3396 = vmul.f32 %v3372, 0.03802584
    %v3397 = vmul.f32 %v3373, 0.03802584
    %v3398 = vmul.f32 %v3374, 0.03802584
    %v3399 = vmul.f32 %v3375, 0.03802584
    %v3400 = vmul.f32 %v3376, 0.03802584
    %v3401 = vmul.f32 %v3377, 0.03802584
    %v3402 = vmul.f32 %v3378, 0.03802584
    %v3403 = vmul.f32 %v3379, 0.03802584
    %v3404 = vmul.f32 %v3380, 0.03802584
    %v3405 = vmul.f32 %v3381, 0.03802584
    %v3406 = vmul.f32 %v3382, 0.03802584
    %v3407 = vmul.f32 %v3383, 0.03802584
    %v3408 = vmul.f32 %v3384, 0.03802584
    %v3409 = vmul.f32 %v3385, 0.03802584
    %v3410 = vmul.f32 %v3386, 0.03802584
    %v3411 = vmul.f32 %v3363, 0.115512304
    %v3412 = vmul.f32 %v3364, 0.115512304
    %v3413 = vmul.f32 %v3365, 0.115512304
    %v3414 = vmul.f32 %v3366, 0.115512304
    %v3415 = vmul.f32 %v3367, 0.115512304
    %v3416 = vmul.f32 %v3368, 0.115512304
    %v3417 = vmul.f32 %v3369, 0.115512304
    %v3418 = vmul.f32 %v3370, 0.115512304
    %v3419 = vmul.f32 %v3371, 0.115512304
    %v3420 = vmul.f32 %v3372, 0.115512304
    %v3421 = vmul.f32 %v3373, 0.115512304
    %v3422 = vmul.f32 %v3374, 0.115512304
    %v3423 = vmul.f32 %v3375, 0.115512304
    %v3424 = vmul.f32 %v3376, 0.115512304
    %v3425 = vmul.f32 %v3377, 0.115512304
    %v3426 = vmul.f32 %v3378, 0.115512304
    %v3427 = vmul.f32 %v3379, 0.115512304
    %v3428 = vmul.f32 %v3380, 0.115512304
    %v3429 = vmul.f32 %v3381, 0.115512304
    %v3430 = vmul.f32 %v3382, 0.115512304
    %v3431 = vmul.f32 %v3383, 0.115512304
    %v3432 = vmul.f32 %v3384, 0.115512304
    %v3433 = vmul.f32 %v3385, 0.115512304
    %v3434 = vmul.f32 %v3386, 0.115512304
    %3459 = vrot.lane.b32.xlu0 %v3411, 127
    %v3460 = vpop.permute.xlu0 %3459
    %3461 = vrot.lane.b32.xlu0 %v3412, 127
    %v3462 = vpop.permute.xlu0 %3461
    %3463 = vrot.lane.b32.xlu0 %v3413, 127
    %v3464 = vpop.permute.xlu0 %3463
    %3465 = vrot.lane.b32.xlu0 %v3414, 127
    %v3466 = vpop.permute.xlu0 %3465
    %3467 = vrot.lane.b32.xlu0 %v3415, 127
    %v3468 = vpop.permute.xlu0 %3467
    %3469 = vrot.lane.b32.xlu0 %v3416, 127
    %v3470 = vpop.permute.xlu0 %3469
    %3471 = vrot.lane.b32.xlu0 %v3417, 127
    %v3472 = vpop.permute.xlu0 %3471
    %3473 = vrot.lane.b32.xlu0 %v3418, 127
    %v3474 = vpop.permute.xlu0 %3473
    %3475 = vrot.lane.b32.xlu0 %v3419, 127
    %v3476 = vpop.permute.xlu0 %3475
    %3477 = vrot.lane.b32.xlu0 %v3420, 127
    %v3478 = vpop.permute.xlu0 %3477
    %3479 = vrot.lane.b32.xlu0 %v3421, 127
    %v3480 = vpop.permute.xlu0 %3479
    %3481 = vrot.lane.b32.xlu0 %v3422, 127
    %v3482 = vpop.permute.xlu0 %3481
    %3483 = vrot.lane.b32.xlu0 %v3423, 127
    %v3484 = vpop.permute.xlu0 %3483
    %3485 = vrot.lane.b32.xlu0 %v3424, 127
    %v3486 = vpop.permute.xlu0 %3485
    %3487 = vrot.lane.b32.xlu0 %v3425, 127
    %v3488 = vpop.permute.xlu0 %3487
    %3489 = vrot.lane.b32.xlu0 %v3426, 127
    %v3490 = vpop.permute.xlu0 %3489
    %3491 = vrot.lane.b32.xlu0 %v3427, 127
    %v3492 = vpop.permute.xlu0 %3491
    %3493 = vrot.lane.b32.xlu0 %v3428, 127
    %v3494 = vpop.permute.xlu0 %3493
    %3495 = vrot.lane.b32.xlu0 %v3429, 127
    %v3496 = vpop.permute.xlu0 %3495
    %3497 = vrot.lane.b32.xlu0 %v3430, 127
    %v3498 = vpop.permute.xlu0 %3497
    %3499 = vrot.lane.b32.xlu0 %v3431, 127
    %v3500 = vpop.permute.xlu0 %3499
    %3501 = vrot.lane.b32.xlu0 %v3432, 127
    %v3502 = vpop.permute.xlu0 %3501
    %3503 = vrot.lane.b32.xlu0 %v3433, 127
    %v3504 = vpop.permute.xlu0 %3503
    %3505 = vrot.lane.b32.xlu0 %v3434, 127
    %v3506 = vpop.permute.xlu0 %3505
    %v3531 = vadd.f32 %v3387, %v3460
    %v3532 = vadd.f32 %v3388, %v3462
    %v3533 = vadd.f32 %v3389, %v3464
    %v3534 = vadd.f32 %v3390, %v3466
    %v3535 = vadd.f32 %v3391, %v3468
    %v3536 = vadd.f32 %v3392, %v3470
    %v3537 = vadd.f32 %v3393, %v3472
    %v3538 = vadd.f32 %v3394, %v3474
    %v3539 = vadd.f32 %v3395, %v3476
    %v3540 = vadd.f32 %v3396, %v3478
    %v3541 = vadd.f32 %v3397, %v3480
    %v3542 = vadd.f32 %v3398, %v3482
    %v3543 = vadd.f32 %v3399, %v3484
    %v3544 = vadd.f32 %v3400, %v3486
    %v3545 = vadd.f32 %v3401, %v3488
    %v3546 = vadd.f32 %v3402, %v3490
    %v3547 = vadd.f32 %v3403, %v3492
    %v3548 = vadd.f32 %v3404, %v3494
    %v3549 = vadd.f32 %v3405, %v3496
    %v3550 = vadd.f32 %v3406, %v3498
    %v3551 = vadd.f32 %v3407, %v3500
    %v3552 = vadd.f32 %v3408, %v3502
    %v3553 = vadd.f32 %v3409, %v3504
    %v3554 = vadd.f32 %v3410, %v3506
    %v3555 = vmul.f32 %v3363, 0.22498724
    %v3556 = vmul.f32 %v3364, 0.22498724
    %v3557 = vmul.f32 %v3365, 0.22498724
    %v3558 = vmul.f32 %v3366, 0.22498724
    %v3559 = vmul.f32 %v3367, 0.22498724
    %v3560 = vmul.f32 %v3368, 0.22498724
    %v3561 = vmul.f32 %v3369, 0.22498724
    %v3562 = vmul.f32 %v3370, 0.22498724
    %v3563 = vmul.f32 %v3371, 0.22498724
    %v3564 = vmul.f32 %v3372, 0.22498724
    %v3565 = vmul.f32 %v3373, 0.22498724
    %v3566 = vmul.f32 %v3374, 0.22498724
    %v3567 = vmul.f32 %v3375, 0.22498724
    %v3568 = vmul.f32 %v3376, 0.22498724
    %v3569 = vmul.f32 %v3377, 0.22498724
    %v3570 = vmul.f32 %v3378, 0.22498724
    %v3571 = vmul.f32 %v3379, 0.22498724
    %v3572 = vmul.f32 %v3380, 0.22498724
    %v3573 = vmul.f32 %v3381, 0.22498724
    %v3574 = vmul.f32 %v3382, 0.22498724
    %v3575 = vmul.f32 %v3383, 0.22498724
    %v3576 = vmul.f32 %v3384, 0.22498724
    %v3577 = vmul.f32 %v3385, 0.22498724
    %v3578 = vmul.f32 %v3386, 0.22498724
    %3603 = vrot.lane.b32.xlu0 %v3555, 126
    %v3604 = vpop.permute.xlu0 %3603
    %3605 = vrot.lane.b32.xlu0 %v3556, 126
    %v3606 = vpop.permute.xlu0 %3605
    %3607 = vrot.lane.b32.xlu0 %v3557, 126
    %v3608 = vpop.permute.xlu0 %3607
    %3609 = vrot.lane.b32.xlu0 %v3558, 126
    %v3610 = vpop.permute.xlu0 %3609
    %3611 = vrot.lane.b32.xlu0 %v3559, 126
    %v3612 = vpop.permute.xlu0 %3611
    %3613 = vrot.lane.b32.xlu0 %v3560, 126
    %v3614 = vpop.permute.xlu0 %3613
    %3615 = vrot.lane.b32.xlu0 %v3561, 126
    %v3616 = vpop.permute.xlu0 %3615
    %3617 = vrot.lane.b32.xlu0 %v3562, 126
    %v3618 = vpop.permute.xlu0 %3617
    %3619 = vrot.lane.b32.xlu0 %v3563, 126
    %v3620 = vpop.permute.xlu0 %3619
    %3621 = vrot.lane.b32.xlu0 %v3564, 126
    %v3622 = vpop.permute.xlu0 %3621
    %3623 = vrot.lane.b32.xlu0 %v3565, 126
    %v3624 = vpop.permute.xlu0 %3623
    %3625 = vrot.lane.b32.xlu0 %v3566, 126
    %v3626 = vpop.permute.xlu0 %3625
    %3627 = vrot.lane.b32.xlu0 %v3567, 126
    %v3628 = vpop.permute.xlu0 %3627
    %3629 = vrot.lane.b32.xlu0 %v3568, 126
    %v3630 = vpop.permute.xlu0 %3629
    %3631 = vrot.lane.b32.xlu0 %v3569, 126
    %v3632 = vpop.permute.xlu0 %3631
    %3633 = vrot.lane.b32.xlu0 %v3570, 126
    %v3634 = vpop.permute.xlu0 %3633
    %3635 = vrot.lane.b32.xlu0 %v3571, 126
    %v3636 = vpop.permute.xlu0 %3635
    %3637 = vrot.lane.b32.xlu0 %v3572, 126
    %v3638 = vpop.permute.xlu0 %3637
    %3639 = vrot.lane.b32.xlu0 %v3573, 126
    %v3640 = vpop.permute.xlu0 %3639
    %3641 = vrot.lane.b32.xlu0 %v3574, 126
    %v3642 = vpop.permute.xlu0 %3641
    %3643 = vrot.lane.b32.xlu0 %v3575, 126
    %v3644 = vpop.permute.xlu0 %3643
    %3645 = vrot.lane.b32.xlu0 %v3576, 126
    %v3646 = vpop.permute.xlu0 %3645
    %3647 = vrot.lane.b32.xlu0 %v3577, 126
    %v3648 = vpop.permute.xlu0 %3647
    %3649 = vrot.lane.b32.xlu0 %v3578, 126
    %v3650 = vpop.permute.xlu0 %3649
    %v3675 = vadd.f32 %v3531, %v3604
    %v3676 = vadd.f32 %v3532, %v3606
    %v3677 = vadd.f32 %v3533, %v3608
    %v3678 = vadd.f32 %v3534, %v3610
    %v3679 = vadd.f32 %v3535, %v3612
    %v3680 = vadd.f32 %v3536, %v3614
    %v3681 = vadd.f32 %v3537, %v3616
    %v3682 = vadd.f32 %v3538, %v3618
    %v3683 = vadd.f32 %v3539, %v3620
    %v3684 = vadd.f32 %v3540, %v3622
    %v3685 = vadd.f32 %v3541, %v3624
    %v3686 = vadd.f32 %v3542, %v3626
    %v3687 = vadd.f32 %v3543, %v3628
    %v3688 = vadd.f32 %v3544, %v3630
    %v3689 = vadd.f32 %v3545, %v3632
    %v3690 = vadd.f32 %v3546, %v3634
    %v3691 = vadd.f32 %v3547, %v3636
    %v3692 = vadd.f32 %v3548, %v3638
    %v3693 = vadd.f32 %v3549, %v3640
    %v3694 = vadd.f32 %v3550, %v3642
    %v3695 = vadd.f32 %v3551, %v3644
    %v3696 = vadd.f32 %v3552, %v3646
    %v3697 = vadd.f32 %v3553, %v3648
    %v3698 = vadd.f32 %v3554, %v3650
    %v3699 = vmul.f32 %v3363, 0.28097507
    %v3700 = vmul.f32 %v3364, 0.28097507
    %v3701 = vmul.f32 %v3365, 0.28097507
    %v3702 = vmul.f32 %v3366, 0.28097507
    %v3703 = vmul.f32 %v3367, 0.28097507
    %v3704 = vmul.f32 %v3368, 0.28097507
    %v3705 = vmul.f32 %v3369, 0.28097507
    %v3706 = vmul.f32 %v3370, 0.28097507
    %v3707 = vmul.f32 %v3371, 0.28097507
    %v3708 = vmul.f32 %v3372, 0.28097507
    %v3709 = vmul.f32 %v3373, 0.28097507
    %v3710 = vmul.f32 %v3374, 0.28097507
    %v3711 = vmul.f32 %v3375, 0.28097507
    %v3712 = vmul.f32 %v3376, 0.28097507
    %v3713 = vmul.f32 %v3377, 0.28097507
    %v3714 = vmul.f32 %v3378, 0.28097507
    %v3715 = vmul.f32 %v3379, 0.28097507
    %v3716 = vmul.f32 %v3380, 0.28097507
    %v3717 = vmul.f32 %v3381, 0.28097507
    %v3718 = vmul.f32 %v3382, 0.28097507
    %v3719 = vmul.f32 %v3383, 0.28097507
    %v3720 = vmul.f32 %v3384, 0.28097507
    %v3721 = vmul.f32 %v3385, 0.28097507
    %v3722 = vmul.f32 %v3386, 0.28097507
    %3747 = vrot.lane.b32.xlu0 %v3699, 125
    %v3748 = vpop.permute.xlu0 %3747
    %3749 = vrot.lane.b32.xlu0 %v3700, 125
    %v3750 = vpop.permute.xlu0 %3749
    %3751 = vrot.lane.b32.xlu0 %v3701, 125
    %v3752 = vpop.permute.xlu0 %3751
    %3753 = vrot.lane.b32.xlu0 %v3702, 125
    %v3754 = vpop.permute.xlu0 %3753
    %3755 = vrot.lane.b32.xlu0 %v3703, 125
    %v3756 = vpop.permute.xlu0 %3755
    %3757 = vrot.lane.b32.xlu0 %v3704, 125
    %v3758 = vpop.permute.xlu0 %3757
    %3759 = vrot.lane.b32.xlu0 %v3705, 125
    %v3760 = vpop.permute.xlu0 %3759
    %3761 = vrot.lane.b32.xlu0 %v3706, 125
    %v3762 = vpop.permute.xlu0 %3761
    %3763 = vrot.lane.b32.xlu0 %v3707, 125
    %v3764 = vpop.permute.xlu0 %3763
    %3765 = vrot.lane.b32.xlu0 %v3708, 125
    %v3766 = vpop.permute.xlu0 %3765
    %3767 = vrot.lane.b32.xlu0 %v3709, 125
    %v3768 = vpop.permute.xlu0 %3767
    %3769 = vrot.lane.b32.xlu0 %v3710, 125
    %v3770 = vpop.permute.xlu0 %3769
    %3771 = vrot.lane.b32.xlu0 %v3711, 125
    %v3772 = vpop.permute.xlu0 %3771
    %3773 = vrot.lane.b32.xlu0 %v3712, 125
    %v3774 = vpop.permute.xlu0 %3773
    %3775 = vrot.lane.b32.xlu0 %v3713, 125
    %v3776 = vpop.permute.xlu0 %3775
    %3777 = vrot.lane.b32.xlu0 %v3714, 125
    %v3778 = vpop.permute.xlu0 %3777
    %3779 = vrot.lane.b32.xlu0 %v3715, 125
    %v3780 = vpop.permute.xlu0 %3779
    %3781 = vrot.lane.b32.xlu0 %v3716, 125
    %v3782 = vpop.permute.xlu0 %3781
    %3783 = vrot.lane.b32.xlu0 %v3717, 125
    %v3784 = vpop.permute.xlu0 %3783
    %3785 = vrot.lane.b32.xlu0 %v3718, 125
    %v3786 = vpop.permute.xlu0 %3785
    %3787 = vrot.lane.b32.xlu0 %v3719, 125
    %v3788 = vpop.permute.xlu0 %3787
    %3789 = vrot.lane.b32.xlu0 %v3720, 125
    %v3790 = vpop.permute.xlu0 %3789
    %3791 = vrot.lane.b32.xlu0 %v3721, 125
    %v3792 = vpop.permute.xlu0 %3791
    %3793 = vrot.lane.b32.xlu0 %v3722, 125
    %v3794 = vpop.permute.xlu0 %3793
    %v3819 = vadd.f32 %v3675, %v3748
    %v3820 = vadd.f32 %v3676, %v3750
    %v3821 = vadd.f32 %v3677, %v3752
    %v3822 = vadd.f32 %v3678, %v3754
    %v3823 = vadd.f32 %v3679, %v3756
    %v3824 = vadd.f32 %v3680, %v3758
    %v3825 = vadd.f32 %v3681, %v3760
    %v3826 = vadd.f32 %v3682, %v3762
    %v3827 = vadd.f32 %v3683, %v3764
    %v3828 = vadd.f32 %v3684, %v3766
    %v3829 = vadd.f32 %v3685, %v3768
    %v3830 = vadd.f32 %v3686, %v3770
    %v3831 = vadd.f32 %v3687, %v3772
    %v3832 = vadd.f32 %v3688, %v3774
    %v3833 = vadd.f32 %v3689, %v3776
    %v3834 = vadd.f32 %v3690, %v3778
    %v3835 = vadd.f32 %v3691, %v3780
    %v3836 = vadd.f32 %v3692, %v3782
    %v3837 = vadd.f32 %v3693, %v3784
    %v3838 = vadd.f32 %v3694, %v3786
    %v3839 = vadd.f32 %v3695, %v3788
    %v3840 = vadd.f32 %v3696, %v3790
    %v3841 = vadd.f32 %v3697, %v3792
    %v3842 = vadd.f32 %v3698, %v3794
    %3843 = vrot.lane.b32.xlu0 %v3555, 124
    %v3844 = vpop.permute.xlu0 %3843
    %3845 = vrot.lane.b32.xlu0 %v3556, 124
    %v3846 = vpop.permute.xlu0 %3845
    %3847 = vrot.lane.b32.xlu0 %v3557, 124
    %v3848 = vpop.permute.xlu0 %3847
    %3849 = vrot.lane.b32.xlu0 %v3558, 124
    %v3850 = vpop.permute.xlu0 %3849
    %3851 = vrot.lane.b32.xlu0 %v3559, 124
    %v3852 = vpop.permute.xlu0 %3851
    %3853 = vrot.lane.b32.xlu0 %v3560, 124
    %v3854 = vpop.permute.xlu0 %3853
    %3855 = vrot.lane.b32.xlu0 %v3561, 124
    %v3856 = vpop.permute.xlu0 %3855
    %3857 = vrot.lane.b32.xlu0 %v3562, 124
    %v3858 = vpop.permute.xlu0 %3857
    %3859 = vrot.lane.b32.xlu0 %v3563, 124
    %v3860 = vpop.permute.xlu0 %3859
    %3861 = vrot.lane.b32.xlu0 %v3564, 124
    %v3862 = vpop.permute.xlu0 %3861
    %3863 = vrot.lane.b32.xlu0 %v3565, 124
    %v3864 = vpop.permute.xlu0 %3863
    %3865 = vrot.lane.b32.xlu0 %v3566, 124
    %v3866 = vpop.permute.xlu0 %3865
    %3867 = vrot.lane.b32.xlu0 %v3567, 124
    %v3868 = vpop.permute.xlu0 %3867
    %3869 = vrot.lane.b32.xlu0 %v3568, 124
    %v3870 = vpop.permute.xlu0 %3869
    %3871 = vrot.lane.b32.xlu0 %v3569, 124
    %v3872 = vpop.permute.xlu0 %3871
    %3873 = vrot.lane.b32.xlu0 %v3570, 124
    %v3874 = vpop.permute.xlu0 %3873
    %3875 = vrot.lane.b32.xlu0 %v3571, 124
    %v3876 = vpop.permute.xlu0 %3875
    %3877 = vrot.lane.b32.xlu0 %v3572, 124
    %v3878 = vpop.permute.xlu0 %3877
    %3879 = vrot.lane.b32.xlu0 %v3573, 124
    %v3880 = vpop.permute.xlu0 %3879
    %3881 = vrot.lane.b32.xlu0 %v3574, 124
    %v3882 = vpop.permute.xlu0 %3881
    %3883 = vrot.lane.b32.xlu0 %v3575, 124
    %v3884 = vpop.permute.xlu0 %3883
    %3885 = vrot.lane.b32.xlu0 %v3576, 124
    %v3886 = vpop.permute.xlu0 %3885
    %3887 = vrot.lane.b32.xlu0 %v3577, 124
    %v3888 = vpop.permute.xlu0 %3887
    %3889 = vrot.lane.b32.xlu0 %v3578, 124
    %v3890 = vpop.permute.xlu0 %3889
    %v3915 = vadd.f32 %v3819, %v3844
    %v3916 = vadd.f32 %v3820, %v3846
    %v3917 = vadd.f32 %v3821, %v3848
    %v3918 = vadd.f32 %v3822, %v3850
    %v3919 = vadd.f32 %v3823, %v3852
    %v3920 = vadd.f32 %v3824, %v3854
    %v3921 = vadd.f32 %v3825, %v3856
    %v3922 = vadd.f32 %v3826, %v3858
    %v3923 = vadd.f32 %v3827, %v3860
    %v3924 = vadd.f32 %v3828, %v3862
    %v3925 = vadd.f32 %v3829, %v3864
    %v3926 = vadd.f32 %v3830, %v3866
    %v3927 = vadd.f32 %v3831, %v3868
    %v3928 = vadd.f32 %v3832, %v3870
    %v3929 = vadd.f32 %v3833, %v3872
    %v3930 = vadd.f32 %v3834, %v3874
    %v3931 = vadd.f32 %v3835, %v3876
    %v3932 = vadd.f32 %v3836, %v3878
    %v3933 = vadd.f32 %v3837, %v3880
    %v3934 = vadd.f32 %v3838, %v3882
    %v3935 = vadd.f32 %v3839, %v3884
    %v3936 = vadd.f32 %v3840, %v3886
    %v3937 = vadd.f32 %v3841, %v3888
    %v3938 = vadd.f32 %v3842, %v3890
    %3939 = vrot.lane.b32.xlu0 %v3411, 123
    %v3940 = vpop.permute.xlu0 %3939
    %3941 = vrot.lane.b32.xlu0 %v3412, 123
    %v3942 = vpop.permute.xlu0 %3941
    %3943 = vrot.lane.b32.xlu0 %v3413, 123
    %v3944 = vpop.permute.xlu0 %3943
    %3945 = vrot.lane.b32.xlu0 %v3414, 123
    %v3946 = vpop.permute.xlu0 %3945
    %3947 = vrot.lane.b32.xlu0 %v3415, 123
    %v3948 = vpop.permute.xlu0 %3947
    %3949 = vrot.lane.b32.xlu0 %v3416, 123
    %v3950 = vpop.permute.xlu0 %3949
    %3951 = vrot.lane.b32.xlu0 %v3417, 123
    %v3952 = vpop.permute.xlu0 %3951
    %3953 = vrot.lane.b32.xlu0 %v3418, 123
    %v3954 = vpop.permute.xlu0 %3953
    %3955 = vrot.lane.b32.xlu0 %v3419, 123
    %v3956 = vpop.permute.xlu0 %3955
    %3957 = vrot.lane.b32.xlu0 %v3420, 123
    %v3958 = vpop.permute.xlu0 %3957
    %3959 = vrot.lane.b32.xlu0 %v3421, 123
    %v3960 = vpop.permute.xlu0 %3959
    %3961 = vrot.lane.b32.xlu0 %v3422, 123
    %v3962 = vpop.permute.xlu0 %3961
    %3963 = vrot.lane.b32.xlu0 %v3423, 123
    %v3964 = vpop.permute.xlu0 %3963
    %3965 = vrot.lane.b32.xlu0 %v3424, 123
    %v3966 = vpop.permute.xlu0 %3965
    %3967 = vrot.lane.b32.xlu0 %v3425, 123
    %v3968 = vpop.permute.xlu0 %3967
    %3969 = vrot.lane.b32.xlu0 %v3426, 123
    %v3970 = vpop.permute.xlu0 %3969
    %3971 = vrot.lane.b32.xlu0 %v3427, 123
    %v3972 = vpop.permute.xlu0 %3971
    %3973 = vrot.lane.b32.xlu0 %v3428, 123
    %v3974 = vpop.permute.xlu0 %3973
    %3975 = vrot.lane.b32.xlu0 %v3429, 123
    %v3976 = vpop.permute.xlu0 %3975
    %3977 = vrot.lane.b32.xlu0 %v3430, 123
    %v3978 = vpop.permute.xlu0 %3977
    %3979 = vrot.lane.b32.xlu0 %v3431, 123
    %v3980 = vpop.permute.xlu0 %3979
    %3981 = vrot.lane.b32.xlu0 %v3432, 123
    %v3982 = vpop.permute.xlu0 %3981
    %3983 = vrot.lane.b32.xlu0 %v3433, 123
    %v3984 = vpop.permute.xlu0 %3983
    %3985 = vrot.lane.b32.xlu0 %v3434, 123
    %v3986 = vpop.permute.xlu0 %3985
    %v4011 = vadd.f32 %v3915, %v3940
    %v4012 = vadd.f32 %v3916, %v3942
    %v4013 = vadd.f32 %v3917, %v3944
    %v4014 = vadd.f32 %v3918, %v3946
    %v4015 = vadd.f32 %v3919, %v3948
    %v4016 = vadd.f32 %v3920, %v3950
    %v4017 = vadd.f32 %v3921, %v3952
    %v4018 = vadd.f32 %v3922, %v3954
    %v4019 = vadd.f32 %v3923, %v3956
    %v4020 = vadd.f32 %v3924, %v3958
    %v4021 = vadd.f32 %v3925, %v3960
    %v4022 = vadd.f32 %v3926, %v3962
    %v4023 = vadd.f32 %v3927, %v3964
    %v4024 = vadd.f32 %v3928, %v3966
    %v4025 = vadd.f32 %v3929, %v3968
    %v4026 = vadd.f32 %v3930, %v3970
    %v4027 = vadd.f32 %v3931, %v3972
    %v4028 = vadd.f32 %v3932, %v3974
    %v4029 = vadd.f32 %v3933, %v3976
    %v4030 = vadd.f32 %v3934, %v3978
    %v4031 = vadd.f32 %v3935, %v3980
    %v4032 = vadd.f32 %v3936, %v3982
    %v4033 = vadd.f32 %v3937, %v3984
    %v4034 = vadd.f32 %v3938, %v3986
    %v4035 = vsub.f32 %v4011, %v2683
    %v4036 = vsub.f32 %v4012, %v2684
    %v4037 = vsub.f32 %v4013, %v2685
    %v4038 = vsub.f32 %v4014, %v2686
    %v4039 = vsub.f32 %v4015, %v2687
    %v4040 = vsub.f32 %v4016, %v2688
    %v4041 = vsub.f32 %v4017, %v2689
    %v4042 = vsub.f32 %v4018, %v2690
    %v4043 = vsub.f32 %v4019, %v2691
    %v4044 = vsub.f32 %v4020, %v2692
    %v4045 = vsub.f32 %v4021, %v2693
    %v4046 = vsub.f32 %v4022, %v2694
    %v4047 = vsub.f32 %v4023, %v2695
    %v4048 = vsub.f32 %v4024, %v2696
    %v4049 = vsub.f32 %v4025, %v2697
    %v4050 = vsub.f32 %v4026, %v2698
    %v4051 = vsub.f32 %v4027, %v2699
    %v4052 = vsub.f32 %v4028, %v2700
    %v4053 = vsub.f32 %v4029, %v2701
    %v4054 = vsub.f32 %v4030, %v2702
    %v4055 = vsub.f32 %v4031, %v2703
    %v4056 = vsub.f32 %v4032, %v2704
    %v4057 = vsub.f32 %v4033, %v2705
    %v4058 = vsub.f32 %v4034, %v2706
    %v4059 = vmul.f32 %v36, %v36
    %v4060 = vmul.f32 %v37, %v37
    %v4061 = vmul.f32 %v38, %v38
    %v4062 = vmul.f32 %v39, %v39
    %v4063 = vmul.f32 %v40, %v40
    %v4064 = vmul.f32 %v41, %v41
    %v4065 = vmul.f32 %v42, %v42
    %v4066 = vmul.f32 %v43, %v43
    %v4067 = vmul.f32 %v44, %v44
    %v4068 = vmul.f32 %v45, %v45
    %v4069 = vmul.f32 %v46, %v46
    %v4070 = vmul.f32 %v47, %v47
    %v4071 = vmul.f32 %v48, %v48
    %v4072 = vmul.f32 %v49, %v49
    %v4073 = vmul.f32 %v50, %v50
    %v4074 = vmul.f32 %v51, %v51
    %v4075 = vmul.f32 %v52, %v52
    %v4076 = vmul.f32 %v53, %v53
    %v4077 = vmul.f32 %v54, %v54
    %v4078 = vmul.f32 %v55, %v55
    %v4079 = vmul.f32 %v56, %v56
    %v4080 = vmul.f32 %v57, %v57
    %v4081 = vmul.f32 %v58, %v58
    %v4082 = vmul.f32 %v59, %v59
    %v4083 = vmul.f32 %v4059, 0.03802584
    %v4084 = vmul.f32 %v4060, 0.03802584
    %v4085 = vmul.f32 %v4061, 0.03802584
    %v4086 = vmul.f32 %v4062, 0.03802584
    %v4087 = vmul.f32 %v4063, 0.03802584
    %v4088 = vmul.f32 %v4064, 0.03802584
    %v4089 = vmul.f32 %v4065, 0.03802584
    %v4090 = vmul.f32 %v4066, 0.03802584
    %v4091 = vmul.f32 %v4067, 0.03802584
    %v4092 = vmul.f32 %v4068, 0.03802584
    %v4093 = vmul.f32 %v4069, 0.03802584
    %v4094 = vmul.f32 %v4070, 0.03802584
    %v4095 = vmul.f32 %v4071, 0.03802584
    %v4096 = vmul.f32 %v4072, 0.03802584
    %v4097 = vmul.f32 %v4073, 0.03802584
    %v4098 = vmul.f32 %v4074, 0.03802584
    %v4099 = vmul.f32 %v4075, 0.03802584
    %v4100 = vmul.f32 %v4076, 0.03802584
    %v4101 = vmul.f32 %v4077, 0.03802584
    %v4102 = vmul.f32 %v4078, 0.03802584
    %v4103 = vmul.f32 %v4079, 0.03802584
    %v4104 = vmul.f32 %v4080, 0.03802584
    %v4105 = vmul.f32 %v4081, 0.03802584
    %v4106 = vmul.f32 %v4082, 0.03802584
    %v4107 = vmul.f32 %v4059, 0.115512304
    %v4108 = vmul.f32 %v4060, 0.115512304
    %v4109 = vmul.f32 %v4061, 0.115512304
    %v4110 = vmul.f32 %v4062, 0.115512304
    %v4111 = vmul.f32 %v4063, 0.115512304
    %v4112 = vmul.f32 %v4064, 0.115512304
    %v4113 = vmul.f32 %v4065, 0.115512304
    %v4114 = vmul.f32 %v4066, 0.115512304
    %v4115 = vmul.f32 %v4067, 0.115512304
    %v4116 = vmul.f32 %v4068, 0.115512304
    %v4117 = vmul.f32 %v4069, 0.115512304
    %v4118 = vmul.f32 %v4070, 0.115512304
    %v4119 = vmul.f32 %v4071, 0.115512304
    %v4120 = vmul.f32 %v4072, 0.115512304
    %v4121 = vmul.f32 %v4073, 0.115512304
    %v4122 = vmul.f32 %v4074, 0.115512304
    %v4123 = vmul.f32 %v4075, 0.115512304
    %v4124 = vmul.f32 %v4076, 0.115512304
    %v4125 = vmul.f32 %v4077, 0.115512304
    %v4126 = vmul.f32 %v4078, 0.115512304
    %v4127 = vmul.f32 %v4079, 0.115512304
    %v4128 = vmul.f32 %v4080, 0.115512304
    %v4129 = vmul.f32 %v4081, 0.115512304
    %v4130 = vmul.f32 %v4082, 0.115512304
    %v4155 = vrot.slane %v4107, 1
    %v4156 = vrot.slane %v4108, 1
    %v4157 = vsel %vm238, %v4155, %v4156
    %v4158 = vrot.slane %v4109, 1
    %v4159 = vsel %vm238, %v4156, %v4158
    %v4160 = vrot.slane %v4110, 1
    %v4161 = vrot.slane %v4111, 1
    %v4162 = vsel %vm238, %v4160, %v4161
    %v4163 = vrot.slane %v4112, 1
    %v4164 = vsel %vm238, %v4161, %v4163
    %v4165 = vrot.slane %v4113, 1
    %v4166 = vrot.slane %v4114, 1
    %v4167 = vsel %vm238, %v4165, %v4166
    %v4168 = vrot.slane %v4115, 1
    %v4169 = vsel %vm238, %v4166, %v4168
    %v4170 = vrot.slane %v4116, 1
    %v4171 = vrot.slane %v4117, 1
    %v4172 = vsel %vm238, %v4170, %v4171
    %v4173 = vrot.slane %v4118, 1
    %v4174 = vsel %vm238, %v4171, %v4173
    %v4175 = vrot.slane %v4119, 1
    %v4176 = vrot.slane %v4120, 1
    %v4177 = vsel %vm238, %v4175, %v4176
    %v4178 = vrot.slane %v4121, 1
    %v4179 = vsel %vm238, %v4176, %v4178
    %v4180 = vrot.slane %v4122, 1
    %v4181 = vrot.slane %v4123, 1
    %v4182 = vsel %vm238, %v4180, %v4181
    %v4183 = vrot.slane %v4124, 1
    %v4184 = vsel %vm238, %v4181, %v4183
    %v4185 = vrot.slane %v4125, 1
    %v4186 = vrot.slane %v4126, 1
    %v4187 = vsel %vm238, %v4185, %v4186
    %v4188 = vrot.slane %v4127, 1
    %v4189 = vsel %vm238, %v4186, %v4188
    %v4190 = vrot.slane %v4128, 1
    %v4191 = vrot.slane %v4129, 1
    %v4192 = vsel %vm238, %v4190, %v4191
    %v4193 = vrot.slane %v4130, 1
    %v4194 = vsel %vm238, %v4191, %v4193
    %v4219 = vadd.f32 %v4083, %v4157
    %v4220 = vadd.f32 %v4084, %v4159
    %v4221 = vadd.f32 %v4085, %v4158
    %v4222 = vadd.f32 %v4086, %v4162
    %v4223 = vadd.f32 %v4087, %v4164
    %v4224 = vadd.f32 %v4088, %v4163
    %v4225 = vadd.f32 %v4089, %v4167
    %v4226 = vadd.f32 %v4090, %v4169
    %v4227 = vadd.f32 %v4091, %v4168
    %v4228 = vadd.f32 %v4092, %v4172
    %v4229 = vadd.f32 %v4093, %v4174
    %v4230 = vadd.f32 %v4094, %v4173
    %v4231 = vadd.f32 %v4095, %v4177
    %v4232 = vadd.f32 %v4096, %v4179
    %v4233 = vadd.f32 %v4097, %v4178
    %v4234 = vadd.f32 %v4098, %v4182
    %v4235 = vadd.f32 %v4099, %v4184
    %v4236 = vadd.f32 %v4100, %v4183
    %v4237 = vadd.f32 %v4101, %v4187
    %v4238 = vadd.f32 %v4102, %v4189
    %v4239 = vadd.f32 %v4103, %v4188
    %v4240 = vadd.f32 %v4104, %v4192
    %v4241 = vadd.f32 %v4105, %v4194
    %v4242 = vadd.f32 %v4106, %v4193
    %v4243 = vmul.f32 %v4059, 0.22498724
    %v4244 = vmul.f32 %v4060, 0.22498724
    %v4245 = vmul.f32 %v4061, 0.22498724
    %v4246 = vmul.f32 %v4062, 0.22498724
    %v4247 = vmul.f32 %v4063, 0.22498724
    %v4248 = vmul.f32 %v4064, 0.22498724
    %v4249 = vmul.f32 %v4065, 0.22498724
    %v4250 = vmul.f32 %v4066, 0.22498724
    %v4251 = vmul.f32 %v4067, 0.22498724
    %v4252 = vmul.f32 %v4068, 0.22498724
    %v4253 = vmul.f32 %v4069, 0.22498724
    %v4254 = vmul.f32 %v4070, 0.22498724
    %v4255 = vmul.f32 %v4071, 0.22498724
    %v4256 = vmul.f32 %v4072, 0.22498724
    %v4257 = vmul.f32 %v4073, 0.22498724
    %v4258 = vmul.f32 %v4074, 0.22498724
    %v4259 = vmul.f32 %v4075, 0.22498724
    %v4260 = vmul.f32 %v4076, 0.22498724
    %v4261 = vmul.f32 %v4077, 0.22498724
    %v4262 = vmul.f32 %v4078, 0.22498724
    %v4263 = vmul.f32 %v4079, 0.22498724
    %v4264 = vmul.f32 %v4080, 0.22498724
    %v4265 = vmul.f32 %v4081, 0.22498724
    %v4266 = vmul.f32 %v4082, 0.22498724
    %v4291 = vrot.slane %v4243, 2
    %v4292 = vrot.slane %v4244, 2
    %v4293 = vsel %vm375, %v4291, %v4292
    %v4294 = vrot.slane %v4245, 2
    %v4295 = vsel %vm375, %v4292, %v4294
    %v4296 = vrot.slane %v4246, 2
    %v4297 = vrot.slane %v4247, 2
    %v4298 = vsel %vm375, %v4296, %v4297
    %v4299 = vrot.slane %v4248, 2
    %v4300 = vsel %vm375, %v4297, %v4299
    %v4301 = vrot.slane %v4249, 2
    %v4302 = vrot.slane %v4250, 2
    %v4303 = vsel %vm375, %v4301, %v4302
    %v4304 = vrot.slane %v4251, 2
    %v4305 = vsel %vm375, %v4302, %v4304
    %v4306 = vrot.slane %v4252, 2
    %v4307 = vrot.slane %v4253, 2
    %v4308 = vsel %vm375, %v4306, %v4307
    %v4309 = vrot.slane %v4254, 2
    %v4310 = vsel %vm375, %v4307, %v4309
    %v4311 = vrot.slane %v4255, 2
    %v4312 = vrot.slane %v4256, 2
    %v4313 = vsel %vm375, %v4311, %v4312
    %v4314 = vrot.slane %v4257, 2
    %v4315 = vsel %vm375, %v4312, %v4314
    %v4316 = vrot.slane %v4258, 2
    %v4317 = vrot.slane %v4259, 2
    %v4318 = vsel %vm375, %v4316, %v4317
    %v4319 = vrot.slane %v4260, 2
    %v4320 = vsel %vm375, %v4317, %v4319
    %v4321 = vrot.slane %v4261, 2
    %v4322 = vrot.slane %v4262, 2
    %v4323 = vsel %vm375, %v4321, %v4322
    %v4324 = vrot.slane %v4263, 2
    %v4325 = vsel %vm375, %v4322, %v4324
    %v4326 = vrot.slane %v4264, 2
    %v4327 = vrot.slane %v4265, 2
    %v4328 = vsel %vm375, %v4326, %v4327
    %v4329 = vrot.slane %v4266, 2
    %v4330 = vsel %vm375, %v4327, %v4329
    %v4355 = vadd.f32 %v4219, %v4293
    %v4356 = vadd.f32 %v4220, %v4295
    %v4357 = vadd.f32 %v4221, %v4294
    %v4358 = vadd.f32 %v4222, %v4298
    %v4359 = vadd.f32 %v4223, %v4300
    %v4360 = vadd.f32 %v4224, %v4299
    %v4361 = vadd.f32 %v4225, %v4303
    %v4362 = vadd.f32 %v4226, %v4305
    %v4363 = vadd.f32 %v4227, %v4304
    %v4364 = vadd.f32 %v4228, %v4308
    %v4365 = vadd.f32 %v4229, %v4310
    %v4366 = vadd.f32 %v4230, %v4309
    %v4367 = vadd.f32 %v4231, %v4313
    %v4368 = vadd.f32 %v4232, %v4315
    %v4369 = vadd.f32 %v4233, %v4314
    %v4370 = vadd.f32 %v4234, %v4318
    %v4371 = vadd.f32 %v4235, %v4320
    %v4372 = vadd.f32 %v4236, %v4319
    %v4373 = vadd.f32 %v4237, %v4323
    %v4374 = vadd.f32 %v4238, %v4325
    %v4375 = vadd.f32 %v4239, %v4324
    %v4376 = vadd.f32 %v4240, %v4328
    %v4377 = vadd.f32 %v4241, %v4330
    %v4378 = vadd.f32 %v4242, %v4329
    %v4379 = vmul.f32 %v4059, 0.28097507
    %v4380 = vmul.f32 %v4060, 0.28097507
    %v4381 = vmul.f32 %v4061, 0.28097507
    %v4382 = vmul.f32 %v4062, 0.28097507
    %v4383 = vmul.f32 %v4063, 0.28097507
    %v4384 = vmul.f32 %v4064, 0.28097507
    %v4385 = vmul.f32 %v4065, 0.28097507
    %v4386 = vmul.f32 %v4066, 0.28097507
    %v4387 = vmul.f32 %v4067, 0.28097507
    %v4388 = vmul.f32 %v4068, 0.28097507
    %v4389 = vmul.f32 %v4069, 0.28097507
    %v4390 = vmul.f32 %v4070, 0.28097507
    %v4391 = vmul.f32 %v4071, 0.28097507
    %v4392 = vmul.f32 %v4072, 0.28097507
    %v4393 = vmul.f32 %v4073, 0.28097507
    %v4394 = vmul.f32 %v4074, 0.28097507
    %v4395 = vmul.f32 %v4075, 0.28097507
    %v4396 = vmul.f32 %v4076, 0.28097507
    %v4397 = vmul.f32 %v4077, 0.28097507
    %v4398 = vmul.f32 %v4078, 0.28097507
    %v4399 = vmul.f32 %v4079, 0.28097507
    %v4400 = vmul.f32 %v4080, 0.28097507
    %v4401 = vmul.f32 %v4081, 0.28097507
    %v4402 = vmul.f32 %v4082, 0.28097507
    %v4427 = vrot.slane %v4379, 3
    %v4428 = vrot.slane %v4380, 3
    %v4429 = vsel %vm512, %v4427, %v4428
    %v4430 = vrot.slane %v4381, 3
    %v4431 = vsel %vm512, %v4428, %v4430
    %v4432 = vrot.slane %v4382, 3
    %v4433 = vrot.slane %v4383, 3
    %v4434 = vsel %vm512, %v4432, %v4433
    %v4435 = vrot.slane %v4384, 3
    %v4436 = vsel %vm512, %v4433, %v4435
    %v4437 = vrot.slane %v4385, 3
    %v4438 = vrot.slane %v4386, 3
    %v4439 = vsel %vm512, %v4437, %v4438
    %v4440 = vrot.slane %v4387, 3
    %v4441 = vsel %vm512, %v4438, %v4440
    %v4442 = vrot.slane %v4388, 3
    %v4443 = vrot.slane %v4389, 3
    %v4444 = vsel %vm512, %v4442, %v4443
    %v4445 = vrot.slane %v4390, 3
    %v4446 = vsel %vm512, %v4443, %v4445
    %v4447 = vrot.slane %v4391, 3
    %v4448 = vrot.slane %v4392, 3
    %v4449 = vsel %vm512, %v4447, %v4448
    %v4450 = vrot.slane %v4393, 3
    %v4451 = vsel %vm512, %v4448, %v4450
    %v4452 = vrot.slane %v4394, 3
    %v4453 = vrot.slane %v4395, 3
    %v4454 = vsel %vm512, %v4452, %v4453
    %v4455 = vrot.slane %v4396, 3
    %v4456 = vsel %vm512, %v4453, %v4455
    %v4457 = vrot.slane %v4397, 3
    %v4458 = vrot.slane %v4398, 3
    %v4459 = vsel %vm512, %v4457, %v4458
    %v4460 = vrot.slane %v4399, 3
    %v4461 = vsel %vm512, %v4458, %v4460
    %v4462 = vrot.slane %v4400, 3
    %v4463 = vrot.slane %v4401, 3
    %v4464 = vsel %vm512, %v4462, %v4463
    %v4465 = vrot.slane %v4402, 3
    %v4466 = vsel %vm512, %v4463, %v4465
    %v4491 = vadd.f32 %v4355, %v4429
    %v4492 = vadd.f32 %v4356, %v4431
    %v4493 = vadd.f32 %v4357, %v4430
    %v4494 = vadd.f32 %v4358, %v4434
    %v4495 = vadd.f32 %v4359, %v4436
    %v4496 = vadd.f32 %v4360, %v4435
    %v4497 = vadd.f32 %v4361, %v4439
    %v4498 = vadd.f32 %v4362, %v4441
    %v4499 = vadd.f32 %v4363, %v4440
    %v4500 = vadd.f32 %v4364, %v4444
    %v4501 = vadd.f32 %v4365, %v4446
    %v4502 = vadd.f32 %v4366, %v4445
    %v4503 = vadd.f32 %v4367, %v4449
    %v4504 = vadd.f32 %v4368, %v4451
    %v4505 = vadd.f32 %v4369, %v4450
    %v4506 = vadd.f32 %v4370, %v4454
    %v4507 = vadd.f32 %v4371, %v4456
    %v4508 = vadd.f32 %v4372, %v4455
    %v4509 = vadd.f32 %v4373, %v4459
    %v4510 = vadd.f32 %v4374, %v4461
    %v4511 = vadd.f32 %v4375, %v4460
    %v4512 = vadd.f32 %v4376, %v4464
    %v4513 = vadd.f32 %v4377, %v4466
    %v4514 = vadd.f32 %v4378, %v4465
    %v4515 = vrot.slane %v4243, 4
    %v4516 = vrot.slane %v4244, 4
    %v4517 = vsel %vm601, %v4515, %v4516
    %v4518 = vrot.slane %v4245, 4
    %v4519 = vsel %vm601, %v4516, %v4518
    %v4520 = vrot.slane %v4246, 4
    %v4521 = vrot.slane %v4247, 4
    %v4522 = vsel %vm601, %v4520, %v4521
    %v4523 = vrot.slane %v4248, 4
    %v4524 = vsel %vm601, %v4521, %v4523
    %v4525 = vrot.slane %v4249, 4
    %v4526 = vrot.slane %v4250, 4
    %v4527 = vsel %vm601, %v4525, %v4526
    %v4528 = vrot.slane %v4251, 4
    %v4529 = vsel %vm601, %v4526, %v4528
    %v4530 = vrot.slane %v4252, 4
    %v4531 = vrot.slane %v4253, 4
    %v4532 = vsel %vm601, %v4530, %v4531
    %v4533 = vrot.slane %v4254, 4
    %v4534 = vsel %vm601, %v4531, %v4533
    %v4535 = vrot.slane %v4255, 4
    %v4536 = vrot.slane %v4256, 4
    %v4537 = vsel %vm601, %v4535, %v4536
    %v4538 = vrot.slane %v4257, 4
    %v4539 = vsel %vm601, %v4536, %v4538
    %v4540 = vrot.slane %v4258, 4
    %v4541 = vrot.slane %v4259, 4
    %v4542 = vsel %vm601, %v4540, %v4541
    %v4543 = vrot.slane %v4260, 4
    %v4544 = vsel %vm601, %v4541, %v4543
    %v4545 = vrot.slane %v4261, 4
    %v4546 = vrot.slane %v4262, 4
    %v4547 = vsel %vm601, %v4545, %v4546
    %v4548 = vrot.slane %v4263, 4
    %v4549 = vsel %vm601, %v4546, %v4548
    %v4550 = vrot.slane %v4264, 4
    %v4551 = vrot.slane %v4265, 4
    %v4552 = vsel %vm601, %v4550, %v4551
    %v4553 = vrot.slane %v4266, 4
    %v4554 = vsel %vm601, %v4551, %v4553
    %v4579 = vadd.f32 %v4491, %v4517
    %v4580 = vadd.f32 %v4492, %v4519
    %v4581 = vadd.f32 %v4493, %v4518
    %v4582 = vadd.f32 %v4494, %v4522
    %v4583 = vadd.f32 %v4495, %v4524
    %v4584 = vadd.f32 %v4496, %v4523
    %v4585 = vadd.f32 %v4497, %v4527
    %v4586 = vadd.f32 %v4498, %v4529
    %v4587 = vadd.f32 %v4499, %v4528
    %v4588 = vadd.f32 %v4500, %v4532
    %v4589 = vadd.f32 %v4501, %v4534
    %v4590 = vadd.f32 %v4502, %v4533
    %v4591 = vadd.f32 %v4503, %v4537
    %v4592 = vadd.f32 %v4504, %v4539
    %v4593 = vadd.f32 %v4505, %v4538
    %v4594 = vadd.f32 %v4506, %v4542
    %v4595 = vadd.f32 %v4507, %v4544
    %v4596 = vadd.f32 %v4508, %v4543
    %v4597 = vadd.f32 %v4509, %v4547
    %v4598 = vadd.f32 %v4510, %v4549
    %v4599 = vadd.f32 %v4511, %v4548
    %v4600 = vadd.f32 %v4512, %v4552
    %v4601 = vadd.f32 %v4513, %v4554
    %v4602 = vadd.f32 %v4514, %v4553
    %v4603 = vrot.slane %v4107, 5
    %v4604 = vrot.slane %v4108, 5
    %v4605 = vsel %vm690, %v4603, %v4604
    %v4606 = vrot.slane %v4109, 5
    %v4607 = vsel %vm690, %v4604, %v4606
    %v4608 = vrot.slane %v4110, 5
    %v4609 = vrot.slane %v4111, 5
    %v4610 = vsel %vm690, %v4608, %v4609
    %v4611 = vrot.slane %v4112, 5
    %v4612 = vsel %vm690, %v4609, %v4611
    %v4613 = vrot.slane %v4113, 5
    %v4614 = vrot.slane %v4114, 5
    %v4615 = vsel %vm690, %v4613, %v4614
    %v4616 = vrot.slane %v4115, 5
    %v4617 = vsel %vm690, %v4614, %v4616
    %v4618 = vrot.slane %v4116, 5
    %v4619 = vrot.slane %v4117, 5
    %v4620 = vsel %vm690, %v4618, %v4619
    %v4621 = vrot.slane %v4118, 5
    %v4622 = vsel %vm690, %v4619, %v4621
    %v4623 = vrot.slane %v4119, 5
    %v4624 = vrot.slane %v4120, 5
    %v4625 = vsel %vm690, %v4623, %v4624
    %v4626 = vrot.slane %v4121, 5
    %v4627 = vsel %vm690, %v4624, %v4626
    %v4628 = vrot.slane %v4122, 5
    %v4629 = vrot.slane %v4123, 5
    %v4630 = vsel %vm690, %v4628, %v4629
    %v4631 = vrot.slane %v4124, 5
    %v4632 = vsel %vm690, %v4629, %v4631
    %v4633 = vrot.slane %v4125, 5
    %v4634 = vrot.slane %v4126, 5
    %v4635 = vsel %vm690, %v4633, %v4634
    %v4636 = vrot.slane %v4127, 5
    %v4637 = vsel %vm690, %v4634, %v4636
    %v4638 = vrot.slane %v4128, 5
    %v4639 = vrot.slane %v4129, 5
    %v4640 = vsel %vm690, %v4638, %v4639
    %v4641 = vrot.slane %v4130, 5
    %v4642 = vsel %vm690, %v4639, %v4641
    %v4667 = vadd.f32 %v4579, %v4605
    %v4668 = vadd.f32 %v4580, %v4607
    %v4669 = vadd.f32 %v4581, %v4606
    %v4670 = vadd.f32 %v4582, %v4610
    %v4671 = vadd.f32 %v4583, %v4612
    %v4672 = vadd.f32 %v4584, %v4611
    %v4673 = vadd.f32 %v4585, %v4615
    %v4674 = vadd.f32 %v4586, %v4617
    %v4675 = vadd.f32 %v4587, %v4616
    %v4676 = vadd.f32 %v4588, %v4620
    %v4677 = vadd.f32 %v4589, %v4622
    %v4678 = vadd.f32 %v4590, %v4621
    %v4679 = vadd.f32 %v4591, %v4625
    %v4680 = vadd.f32 %v4592, %v4627
    %v4681 = vadd.f32 %v4593, %v4626
    %v4682 = vadd.f32 %v4594, %v4630
    %v4683 = vadd.f32 %v4595, %v4632
    %v4684 = vadd.f32 %v4596, %v4631
    %v4685 = vadd.f32 %v4597, %v4635
    %v4686 = vadd.f32 %v4598, %v4637
    %v4687 = vadd.f32 %v4599, %v4636
    %v4688 = vadd.f32 %v4600, %v4640
    %v4689 = vadd.f32 %v4601, %v4642
    %v4690 = vadd.f32 %v4602, %v4641
    %v4691 = vmul.f32 %v4667, 0.03802584
    %v4692 = vmul.f32 %v4668, 0.03802584
    %v4693 = vmul.f32 %v4669, 0.03802584
    %v4694 = vmul.f32 %v4670, 0.03802584
    %v4695 = vmul.f32 %v4671, 0.03802584
    %v4696 = vmul.f32 %v4672, 0.03802584
    %v4697 = vmul.f32 %v4673, 0.03802584
    %v4698 = vmul.f32 %v4674, 0.03802584
    %v4699 = vmul.f32 %v4675, 0.03802584
    %v4700 = vmul.f32 %v4676, 0.03802584
    %v4701 = vmul.f32 %v4677, 0.03802584
    %v4702 = vmul.f32 %v4678, 0.03802584
    %v4703 = vmul.f32 %v4679, 0.03802584
    %v4704 = vmul.f32 %v4680, 0.03802584
    %v4705 = vmul.f32 %v4681, 0.03802584
    %v4706 = vmul.f32 %v4682, 0.03802584
    %v4707 = vmul.f32 %v4683, 0.03802584
    %v4708 = vmul.f32 %v4684, 0.03802584
    %v4709 = vmul.f32 %v4685, 0.03802584
    %v4710 = vmul.f32 %v4686, 0.03802584
    %v4711 = vmul.f32 %v4687, 0.03802584
    %v4712 = vmul.f32 %v4688, 0.03802584
    %v4713 = vmul.f32 %v4689, 0.03802584
    %v4714 = vmul.f32 %v4690, 0.03802584
    %v4715 = vmul.f32 %v4667, 0.115512304
    %v4716 = vmul.f32 %v4668, 0.115512304
    %v4717 = vmul.f32 %v4669, 0.115512304
    %v4718 = vmul.f32 %v4670, 0.115512304
    %v4719 = vmul.f32 %v4671, 0.115512304
    %v4720 = vmul.f32 %v4672, 0.115512304
    %v4721 = vmul.f32 %v4673, 0.115512304
    %v4722 = vmul.f32 %v4674, 0.115512304
    %v4723 = vmul.f32 %v4675, 0.115512304
    %v4724 = vmul.f32 %v4676, 0.115512304
    %v4725 = vmul.f32 %v4677, 0.115512304
    %v4726 = vmul.f32 %v4678, 0.115512304
    %v4727 = vmul.f32 %v4679, 0.115512304
    %v4728 = vmul.f32 %v4680, 0.115512304
    %v4729 = vmul.f32 %v4681, 0.115512304
    %v4730 = vmul.f32 %v4682, 0.115512304
    %v4731 = vmul.f32 %v4683, 0.115512304
    %v4732 = vmul.f32 %v4684, 0.115512304
    %v4733 = vmul.f32 %v4685, 0.115512304
    %v4734 = vmul.f32 %v4686, 0.115512304
    %v4735 = vmul.f32 %v4687, 0.115512304
    %v4736 = vmul.f32 %v4688, 0.115512304
    %v4737 = vmul.f32 %v4689, 0.115512304
    %v4738 = vmul.f32 %v4690, 0.115512304
    %4763 = vrot.lane.b32.xlu0 %v4715, 127
    %v4764 = vpop.permute.xlu0 %4763
    %4765 = vrot.lane.b32.xlu0 %v4716, 127
    %v4766 = vpop.permute.xlu0 %4765
    %4767 = vrot.lane.b32.xlu0 %v4717, 127
    %v4768 = vpop.permute.xlu0 %4767
    %4769 = vrot.lane.b32.xlu0 %v4718, 127
    %v4770 = vpop.permute.xlu0 %4769
    %4771 = vrot.lane.b32.xlu0 %v4719, 127
    %v4772 = vpop.permute.xlu0 %4771
    %4773 = vrot.lane.b32.xlu0 %v4720, 127
    %v4774 = vpop.permute.xlu0 %4773
    %4775 = vrot.lane.b32.xlu0 %v4721, 127
    %v4776 = vpop.permute.xlu0 %4775
    %4777 = vrot.lane.b32.xlu0 %v4722, 127
    %v4778 = vpop.permute.xlu0 %4777
    %4779 = vrot.lane.b32.xlu0 %v4723, 127
    %v4780 = vpop.permute.xlu0 %4779
    %4781 = vrot.lane.b32.xlu0 %v4724, 127
    %v4782 = vpop.permute.xlu0 %4781
    %4783 = vrot.lane.b32.xlu0 %v4725, 127
    %v4784 = vpop.permute.xlu0 %4783
    %4785 = vrot.lane.b32.xlu0 %v4726, 127
    %v4786 = vpop.permute.xlu0 %4785
    %4787 = vrot.lane.b32.xlu0 %v4727, 127
    %v4788 = vpop.permute.xlu0 %4787
    %4789 = vrot.lane.b32.xlu0 %v4728, 127
    %v4790 = vpop.permute.xlu0 %4789
    %4791 = vrot.lane.b32.xlu0 %v4729, 127
    %v4792 = vpop.permute.xlu0 %4791
    %4793 = vrot.lane.b32.xlu0 %v4730, 127
    %v4794 = vpop.permute.xlu0 %4793
    %4795 = vrot.lane.b32.xlu0 %v4731, 127
    %v4796 = vpop.permute.xlu0 %4795
    %4797 = vrot.lane.b32.xlu0 %v4732, 127
    %v4798 = vpop.permute.xlu0 %4797
    %4799 = vrot.lane.b32.xlu0 %v4733, 127
    %v4800 = vpop.permute.xlu0 %4799
    %4801 = vrot.lane.b32.xlu0 %v4734, 127
    %v4802 = vpop.permute.xlu0 %4801
    %4803 = vrot.lane.b32.xlu0 %v4735, 127
    %v4804 = vpop.permute.xlu0 %4803
    %4805 = vrot.lane.b32.xlu0 %v4736, 127
    %v4806 = vpop.permute.xlu0 %4805
    %4807 = vrot.lane.b32.xlu0 %v4737, 127
    %v4808 = vpop.permute.xlu0 %4807
    %4809 = vrot.lane.b32.xlu0 %v4738, 127
    %v4810 = vpop.permute.xlu0 %4809
    %v4835 = vadd.f32 %v4691, %v4764
    %v4836 = vadd.f32 %v4692, %v4766
    %v4837 = vadd.f32 %v4693, %v4768
    %v4838 = vadd.f32 %v4694, %v4770
    %v4839 = vadd.f32 %v4695, %v4772
    %v4840 = vadd.f32 %v4696, %v4774
    %v4841 = vadd.f32 %v4697, %v4776
    %v4842 = vadd.f32 %v4698, %v4778
    %v4843 = vadd.f32 %v4699, %v4780
    %v4844 = vadd.f32 %v4700, %v4782
    %v4845 = vadd.f32 %v4701, %v4784
    %v4846 = vadd.f32 %v4702, %v4786
    %v4847 = vadd.f32 %v4703, %v4788
    %v4848 = vadd.f32 %v4704, %v4790
    %v4849 = vadd.f32 %v4705, %v4792
    %v4850 = vadd.f32 %v4706, %v4794
    %v4851 = vadd.f32 %v4707, %v4796
    %v4852 = vadd.f32 %v4708, %v4798
    %v4853 = vadd.f32 %v4709, %v4800
    %v4854 = vadd.f32 %v4710, %v4802
    %v4855 = vadd.f32 %v4711, %v4804
    %v4856 = vadd.f32 %v4712, %v4806
    %v4857 = vadd.f32 %v4713, %v4808
    %v4858 = vadd.f32 %v4714, %v4810
    %v4859 = vmul.f32 %v4667, 0.22498724
    %v4860 = vmul.f32 %v4668, 0.22498724
    %v4861 = vmul.f32 %v4669, 0.22498724
    %v4862 = vmul.f32 %v4670, 0.22498724
    %v4863 = vmul.f32 %v4671, 0.22498724
    %v4864 = vmul.f32 %v4672, 0.22498724
    %v4865 = vmul.f32 %v4673, 0.22498724
    %v4866 = vmul.f32 %v4674, 0.22498724
    %v4867 = vmul.f32 %v4675, 0.22498724
    %v4868 = vmul.f32 %v4676, 0.22498724
    %v4869 = vmul.f32 %v4677, 0.22498724
    %v4870 = vmul.f32 %v4678, 0.22498724
    %v4871 = vmul.f32 %v4679, 0.22498724
    %v4872 = vmul.f32 %v4680, 0.22498724
    %v4873 = vmul.f32 %v4681, 0.22498724
    %v4874 = vmul.f32 %v4682, 0.22498724
    %v4875 = vmul.f32 %v4683, 0.22498724
    %v4876 = vmul.f32 %v4684, 0.22498724
    %v4877 = vmul.f32 %v4685, 0.22498724
    %v4878 = vmul.f32 %v4686, 0.22498724
    %v4879 = vmul.f32 %v4687, 0.22498724
    %v4880 = vmul.f32 %v4688, 0.22498724
    %v4881 = vmul.f32 %v4689, 0.22498724
    %v4882 = vmul.f32 %v4690, 0.22498724
    %4907 = vrot.lane.b32.xlu0 %v4859, 126
    %v4908 = vpop.permute.xlu0 %4907
    %4909 = vrot.lane.b32.xlu0 %v4860, 126
    %v4910 = vpop.permute.xlu0 %4909
    %4911 = vrot.lane.b32.xlu0 %v4861, 126
    %v4912 = vpop.permute.xlu0 %4911
    %4913 = vrot.lane.b32.xlu0 %v4862, 126
    %v4914 = vpop.permute.xlu0 %4913
    %4915 = vrot.lane.b32.xlu0 %v4863, 126
    %v4916 = vpop.permute.xlu0 %4915
    %4917 = vrot.lane.b32.xlu0 %v4864, 126
    %v4918 = vpop.permute.xlu0 %4917
    %4919 = vrot.lane.b32.xlu0 %v4865, 126
    %v4920 = vpop.permute.xlu0 %4919
    %4921 = vrot.lane.b32.xlu0 %v4866, 126
    %v4922 = vpop.permute.xlu0 %4921
    %4923 = vrot.lane.b32.xlu0 %v4867, 126
    %v4924 = vpop.permute.xlu0 %4923
    %4925 = vrot.lane.b32.xlu0 %v4868, 126
    %v4926 = vpop.permute.xlu0 %4925
    %4927 = vrot.lane.b32.xlu0 %v4869, 126
    %v4928 = vpop.permute.xlu0 %4927
    %4929 = vrot.lane.b32.xlu0 %v4870, 126
    %v4930 = vpop.permute.xlu0 %4929
    %4931 = vrot.lane.b32.xlu0 %v4871, 126
    %v4932 = vpop.permute.xlu0 %4931
    %4933 = vrot.lane.b32.xlu0 %v4872, 126
    %v4934 = vpop.permute.xlu0 %4933
    %4935 = vrot.lane.b32.xlu0 %v4873, 126
    %v4936 = vpop.permute.xlu0 %4935
    %4937 = vrot.lane.b32.xlu0 %v4874, 126
    %v4938 = vpop.permute.xlu0 %4937
    %4939 = vrot.lane.b32.xlu0 %v4875, 126
    %v4940 = vpop.permute.xlu0 %4939
    %4941 = vrot.lane.b32.xlu0 %v4876, 126
    %v4942 = vpop.permute.xlu0 %4941
    %4943 = vrot.lane.b32.xlu0 %v4877, 126
    %v4944 = vpop.permute.xlu0 %4943
    %4945 = vrot.lane.b32.xlu0 %v4878, 126
    %v4946 = vpop.permute.xlu0 %4945
    %4947 = vrot.lane.b32.xlu0 %v4879, 126
    %v4948 = vpop.permute.xlu0 %4947
    %4949 = vrot.lane.b32.xlu0 %v4880, 126
    %v4950 = vpop.permute.xlu0 %4949
    %4951 = vrot.lane.b32.xlu0 %v4881, 126
    %v4952 = vpop.permute.xlu0 %4951
    %4953 = vrot.lane.b32.xlu0 %v4882, 126
    %v4954 = vpop.permute.xlu0 %4953
    %v4979 = vadd.f32 %v4835, %v4908
    %v4980 = vadd.f32 %v4836, %v4910
    %v4981 = vadd.f32 %v4837, %v4912
    %v4982 = vadd.f32 %v4838, %v4914
    %v4983 = vadd.f32 %v4839, %v4916
    %v4984 = vadd.f32 %v4840, %v4918
    %v4985 = vadd.f32 %v4841, %v4920
    %v4986 = vadd.f32 %v4842, %v4922
    %v4987 = vadd.f32 %v4843, %v4924
    %v4988 = vadd.f32 %v4844, %v4926
    %v4989 = vadd.f32 %v4845, %v4928
    %v4990 = vadd.f32 %v4846, %v4930
    %v4991 = vadd.f32 %v4847, %v4932
    %v4992 = vadd.f32 %v4848, %v4934
    %v4993 = vadd.f32 %v4849, %v4936
    %v4994 = vadd.f32 %v4850, %v4938
    %v4995 = vadd.f32 %v4851, %v4940
    %v4996 = vadd.f32 %v4852, %v4942
    %v4997 = vadd.f32 %v4853, %v4944
    %v4998 = vadd.f32 %v4854, %v4946
    %v4999 = vadd.f32 %v4855, %v4948
    %v5000 = vadd.f32 %v4856, %v4950
    %v5001 = vadd.f32 %v4857, %v4952
    %v5002 = vadd.f32 %v4858, %v4954
    %v5003 = vmul.f32 %v4667, 0.28097507
    %v5004 = vmul.f32 %v4668, 0.28097507
    %v5005 = vmul.f32 %v4669, 0.28097507
    %v5006 = vmul.f32 %v4670, 0.28097507
    %v5007 = vmul.f32 %v4671, 0.28097507
    %v5008 = vmul.f32 %v4672, 0.28097507
    %v5009 = vmul.f32 %v4673, 0.28097507
    %v5010 = vmul.f32 %v4674, 0.28097507
    %v5011 = vmul.f32 %v4675, 0.28097507
    %v5012 = vmul.f32 %v4676, 0.28097507
    %v5013 = vmul.f32 %v4677, 0.28097507
    %v5014 = vmul.f32 %v4678, 0.28097507
    %v5015 = vmul.f32 %v4679, 0.28097507
    %v5016 = vmul.f32 %v4680, 0.28097507
    %v5017 = vmul.f32 %v4681, 0.28097507
    %v5018 = vmul.f32 %v4682, 0.28097507
    %v5019 = vmul.f32 %v4683, 0.28097507
    %v5020 = vmul.f32 %v4684, 0.28097507
    %v5021 = vmul.f32 %v4685, 0.28097507
    %v5022 = vmul.f32 %v4686, 0.28097507
    %v5023 = vmul.f32 %v4687, 0.28097507
    %v5024 = vmul.f32 %v4688, 0.28097507
    %v5025 = vmul.f32 %v4689, 0.28097507
    %v5026 = vmul.f32 %v4690, 0.28097507
    %5051 = vrot.lane.b32.xlu0 %v5003, 125
    %v5052 = vpop.permute.xlu0 %5051
    %5053 = vrot.lane.b32.xlu0 %v5004, 125
    %v5054 = vpop.permute.xlu0 %5053
    %5055 = vrot.lane.b32.xlu0 %v5005, 125
    %v5056 = vpop.permute.xlu0 %5055
    %5057 = vrot.lane.b32.xlu0 %v5006, 125
    %v5058 = vpop.permute.xlu0 %5057
    %5059 = vrot.lane.b32.xlu0 %v5007, 125
    %v5060 = vpop.permute.xlu0 %5059
    %5061 = vrot.lane.b32.xlu0 %v5008, 125
    %v5062 = vpop.permute.xlu0 %5061
    %5063 = vrot.lane.b32.xlu0 %v5009, 125
    %v5064 = vpop.permute.xlu0 %5063
    %5065 = vrot.lane.b32.xlu0 %v5010, 125
    %v5066 = vpop.permute.xlu0 %5065
    %5067 = vrot.lane.b32.xlu0 %v5011, 125
    %v5068 = vpop.permute.xlu0 %5067
    %5069 = vrot.lane.b32.xlu0 %v5012, 125
    %v5070 = vpop.permute.xlu0 %5069
    %5071 = vrot.lane.b32.xlu0 %v5013, 125
    %v5072 = vpop.permute.xlu0 %5071
    %5073 = vrot.lane.b32.xlu0 %v5014, 125
    %v5074 = vpop.permute.xlu0 %5073
    %5075 = vrot.lane.b32.xlu0 %v5015, 125
    %v5076 = vpop.permute.xlu0 %5075
    %5077 = vrot.lane.b32.xlu0 %v5016, 125
    %v5078 = vpop.permute.xlu0 %5077
    %5079 = vrot.lane.b32.xlu0 %v5017, 125
    %v5080 = vpop.permute.xlu0 %5079
    %5081 = vrot.lane.b32.xlu0 %v5018, 125
    %v5082 = vpop.permute.xlu0 %5081
    %5083 = vrot.lane.b32.xlu0 %v5019, 125
    %v5084 = vpop.permute.xlu0 %5083
    %5085 = vrot.lane.b32.xlu0 %v5020, 125
    %v5086 = vpop.permute.xlu0 %5085
    %5087 = vrot.lane.b32.xlu0 %v5021, 125
    %v5088 = vpop.permute.xlu0 %5087
    %5089 = vrot.lane.b32.xlu0 %v5022, 125
    %v5090 = vpop.permute.xlu0 %5089
    %5091 = vrot.lane.b32.xlu0 %v5023, 125
    %v5092 = vpop.permute.xlu0 %5091
    %5093 = vrot.lane.b32.xlu0 %v5024, 125
    %v5094 = vpop.permute.xlu0 %5093
    %5095 = vrot.lane.b32.xlu0 %v5025, 125
    %v5096 = vpop.permute.xlu0 %5095
    %5097 = vrot.lane.b32.xlu0 %v5026, 125
    %v5098 = vpop.permute.xlu0 %5097
    %v5123 = vadd.f32 %v4979, %v5052
    %v5124 = vadd.f32 %v4980, %v5054
    %v5125 = vadd.f32 %v4981, %v5056
    %v5126 = vadd.f32 %v4982, %v5058
    %v5127 = vadd.f32 %v4983, %v5060
    %v5128 = vadd.f32 %v4984, %v5062
    %v5129 = vadd.f32 %v4985, %v5064
    %v5130 = vadd.f32 %v4986, %v5066
    %v5131 = vadd.f32 %v4987, %v5068
    %v5132 = vadd.f32 %v4988, %v5070
    %v5133 = vadd.f32 %v4989, %v5072
    %v5134 = vadd.f32 %v4990, %v5074
    %v5135 = vadd.f32 %v4991, %v5076
    %v5136 = vadd.f32 %v4992, %v5078
    %v5137 = vadd.f32 %v4993, %v5080
    %v5138 = vadd.f32 %v4994, %v5082
    %v5139 = vadd.f32 %v4995, %v5084
    %v5140 = vadd.f32 %v4996, %v5086
    %v5141 = vadd.f32 %v4997, %v5088
    %v5142 = vadd.f32 %v4998, %v5090
    %v5143 = vadd.f32 %v4999, %v5092
    %v5144 = vadd.f32 %v5000, %v5094
    %v5145 = vadd.f32 %v5001, %v5096
    %v5146 = vadd.f32 %v5002, %v5098
    %5147 = vrot.lane.b32.xlu0 %v4859, 124
    %v5148 = vpop.permute.xlu0 %5147
    %5149 = vrot.lane.b32.xlu0 %v4860, 124
    %v5150 = vpop.permute.xlu0 %5149
    %5151 = vrot.lane.b32.xlu0 %v4861, 124
    %v5152 = vpop.permute.xlu0 %5151
    %5153 = vrot.lane.b32.xlu0 %v4862, 124
    %v5154 = vpop.permute.xlu0 %5153
    %5155 = vrot.lane.b32.xlu0 %v4863, 124
    %v5156 = vpop.permute.xlu0 %5155
    %5157 = vrot.lane.b32.xlu0 %v4864, 124
    %v5158 = vpop.permute.xlu0 %5157
    %5159 = vrot.lane.b32.xlu0 %v4865, 124
    %v5160 = vpop.permute.xlu0 %5159
    %5161 = vrot.lane.b32.xlu0 %v4866, 124
    %v5162 = vpop.permute.xlu0 %5161
    %5163 = vrot.lane.b32.xlu0 %v4867, 124
    %v5164 = vpop.permute.xlu0 %5163
    %5165 = vrot.lane.b32.xlu0 %v4868, 124
    %v5166 = vpop.permute.xlu0 %5165
    %5167 = vrot.lane.b32.xlu0 %v4869, 124
    %v5168 = vpop.permute.xlu0 %5167
    %5169 = vrot.lane.b32.xlu0 %v4870, 124
    %v5170 = vpop.permute.xlu0 %5169
    %5171 = vrot.lane.b32.xlu0 %v4871, 124
    %v5172 = vpop.permute.xlu0 %5171
    %5173 = vrot.lane.b32.xlu0 %v4872, 124
    %v5174 = vpop.permute.xlu0 %5173
    %5175 = vrot.lane.b32.xlu0 %v4873, 124
    %v5176 = vpop.permute.xlu0 %5175
    %5177 = vrot.lane.b32.xlu0 %v4874, 124
    %v5178 = vpop.permute.xlu0 %5177
    %5179 = vrot.lane.b32.xlu0 %v4875, 124
    %v5180 = vpop.permute.xlu0 %5179
    %5181 = vrot.lane.b32.xlu0 %v4876, 124
    %v5182 = vpop.permute.xlu0 %5181
    %5183 = vrot.lane.b32.xlu0 %v4877, 124
    %v5184 = vpop.permute.xlu0 %5183
    %5185 = vrot.lane.b32.xlu0 %v4878, 124
    %v5186 = vpop.permute.xlu0 %5185
    %5187 = vrot.lane.b32.xlu0 %v4879, 124
    %v5188 = vpop.permute.xlu0 %5187
    %5189 = vrot.lane.b32.xlu0 %v4880, 124
    %v5190 = vpop.permute.xlu0 %5189
    %5191 = vrot.lane.b32.xlu0 %v4881, 124
    %v5192 = vpop.permute.xlu0 %5191
    %5193 = vrot.lane.b32.xlu0 %v4882, 124
    %v5194 = vpop.permute.xlu0 %5193
    %v5219 = vadd.f32 %v5123, %v5148
    %v5220 = vadd.f32 %v5124, %v5150
    %v5221 = vadd.f32 %v5125, %v5152
    %v5222 = vadd.f32 %v5126, %v5154
    %v5223 = vadd.f32 %v5127, %v5156
    %v5224 = vadd.f32 %v5128, %v5158
    %v5225 = vadd.f32 %v5129, %v5160
    %v5226 = vadd.f32 %v5130, %v5162
    %v5227 = vadd.f32 %v5131, %v5164
    %v5228 = vadd.f32 %v5132, %v5166
    %v5229 = vadd.f32 %v5133, %v5168
    %v5230 = vadd.f32 %v5134, %v5170
    %v5231 = vadd.f32 %v5135, %v5172
    %v5232 = vadd.f32 %v5136, %v5174
    %v5233 = vadd.f32 %v5137, %v5176
    %v5234 = vadd.f32 %v5138, %v5178
    %v5235 = vadd.f32 %v5139, %v5180
    %v5236 = vadd.f32 %v5140, %v5182
    %v5237 = vadd.f32 %v5141, %v5184
    %v5238 = vadd.f32 %v5142, %v5186
    %v5239 = vadd.f32 %v5143, %v5188
    %v5240 = vadd.f32 %v5144, %v5190
    %v5241 = vadd.f32 %v5145, %v5192
    %v5242 = vadd.f32 %v5146, %v5194
    %5243 = vrot.lane.b32.xlu0 %v4715, 123
    %v5244 = vpop.permute.xlu0 %5243
    %5245 = vrot.lane.b32.xlu0 %v4716, 123
    %v5246 = vpop.permute.xlu0 %5245
    %5247 = vrot.lane.b32.xlu0 %v4717, 123
    %v5248 = vpop.permute.xlu0 %5247
    %5249 = vrot.lane.b32.xlu0 %v4718, 123
    %v5250 = vpop.permute.xlu0 %5249
    %5251 = vrot.lane.b32.xlu0 %v4719, 123
    %v5252 = vpop.permute.xlu0 %5251
    %5253 = vrot.lane.b32.xlu0 %v4720, 123
    %v5254 = vpop.permute.xlu0 %5253
    %5255 = vrot.lane.b32.xlu0 %v4721, 123
    %v5256 = vpop.permute.xlu0 %5255
    %5257 = vrot.lane.b32.xlu0 %v4722, 123
    %v5258 = vpop.permute.xlu0 %5257
    %5259 = vrot.lane.b32.xlu0 %v4723, 123
    %v5260 = vpop.permute.xlu0 %5259
    %5261 = vrot.lane.b32.xlu0 %v4724, 123
    %v5262 = vpop.permute.xlu0 %5261
    %5263 = vrot.lane.b32.xlu0 %v4725, 123
    %v5264 = vpop.permute.xlu0 %5263
    %5265 = vrot.lane.b32.xlu0 %v4726, 123
    %v5266 = vpop.permute.xlu0 %5265
    %5267 = vrot.lane.b32.xlu0 %v4727, 123
    %v5268 = vpop.permute.xlu0 %5267
    %5269 = vrot.lane.b32.xlu0 %v4728, 123
    %v5270 = vpop.permute.xlu0 %5269
    %5271 = vrot.lane.b32.xlu0 %v4729, 123
    %v5272 = vpop.permute.xlu0 %5271
    %5273 = vrot.lane.b32.xlu0 %v4730, 123
    %v5274 = vpop.permute.xlu0 %5273
    %5275 = vrot.lane.b32.xlu0 %v4731, 123
    %v5276 = vpop.permute.xlu0 %5275
    %5277 = vrot.lane.b32.xlu0 %v4732, 123
    %v5278 = vpop.permute.xlu0 %5277
    %5279 = vrot.lane.b32.xlu0 %v4733, 123
    %v5280 = vpop.permute.xlu0 %5279
    %5281 = vrot.lane.b32.xlu0 %v4734, 123
    %v5282 = vpop.permute.xlu0 %5281
    %5283 = vrot.lane.b32.xlu0 %v4735, 123
    %v5284 = vpop.permute.xlu0 %5283
    %5285 = vrot.lane.b32.xlu0 %v4736, 123
    %v5286 = vpop.permute.xlu0 %5285
    %5287 = vrot.lane.b32.xlu0 %v4737, 123
    %v5288 = vpop.permute.xlu0 %5287
    %5289 = vrot.lane.b32.xlu0 %v4738, 123
    %v5290 = vpop.permute.xlu0 %5289
    %v5315 = vadd.f32 %v5219, %v5244
    %v5316 = vadd.f32 %v5220, %v5246
    %v5317 = vadd.f32 %v5221, %v5248
    %v5318 = vadd.f32 %v5222, %v5250
    %v5319 = vadd.f32 %v5223, %v5252
    %v5320 = vadd.f32 %v5224, %v5254
    %v5321 = vadd.f32 %v5225, %v5256
    %v5322 = vadd.f32 %v5226, %v5258
    %v5323 = vadd.f32 %v5227, %v5260
    %v5324 = vadd.f32 %v5228, %v5262
    %v5325 = vadd.f32 %v5229, %v5264
    %v5326 = vadd.f32 %v5230, %v5266
    %v5327 = vadd.f32 %v5231, %v5268
    %v5328 = vadd.f32 %v5232, %v5270
    %v5329 = vadd.f32 %v5233, %v5272
    %v5330 = vadd.f32 %v5234, %v5274
    %v5331 = vadd.f32 %v5235, %v5276
    %v5332 = vadd.f32 %v5236, %v5278
    %v5333 = vadd.f32 %v5237, %v5280
    %v5334 = vadd.f32 %v5238, %v5282
    %v5335 = vadd.f32 %v5239, %v5284
    %v5336 = vadd.f32 %v5240, %v5286
    %v5337 = vadd.f32 %v5241, %v5288
    %v5338 = vadd.f32 %v5242, %v5290
    %v5339 = vsub.f32 %v5315, %v2707
    %v5340 = vsub.f32 %v5316, %v2708
    %v5341 = vsub.f32 %v5317, %v2709
    %v5342 = vsub.f32 %v5318, %v2710
    %v5343 = vsub.f32 %v5319, %v2711
    %v5344 = vsub.f32 %v5320, %v2712
    %v5345 = vsub.f32 %v5321, %v2713
    %v5346 = vsub.f32 %v5322, %v2714
    %v5347 = vsub.f32 %v5323, %v2715
    %v5348 = vsub.f32 %v5324, %v2716
    %v5349 = vsub.f32 %v5325, %v2717
    %v5350 = vsub.f32 %v5326, %v2718
    %v5351 = vsub.f32 %v5327, %v2719
    %v5352 = vsub.f32 %v5328, %v2720
    %v5353 = vsub.f32 %v5329, %v2721
    %v5354 = vsub.f32 %v5330, %v2722
    %v5355 = vsub.f32 %v5331, %v2723
    %v5356 = vsub.f32 %v5332, %v2724
    %v5357 = vsub.f32 %v5333, %v2725
    %v5358 = vsub.f32 %v5334, %v2726
    %v5359 = vsub.f32 %v5335, %v2727
    %v5360 = vsub.f32 %v5336, %v2728
    %v5361 = vsub.f32 %v5337, %v2729
    %v5362 = vsub.f32 %v5338, %v2730
    %v5363 = vmul.f32 %v12, %v36
    %v5364 = vmul.f32 %v13, %v37
    %v5365 = vmul.f32 %v14, %v38
    %v5366 = vmul.f32 %v15, %v39
    %v5367 = vmul.f32 %v16, %v40
    %v5368 = vmul.f32 %v17, %v41
    %v5369 = vmul.f32 %v18, %v42
    %v5370 = vmul.f32 %v19, %v43
    %v5371 = vmul.f32 %v20, %v44
    %v5372 = vmul.f32 %v21, %v45
    %v5373 = vmul.f32 %v22, %v46
    %v5374 = vmul.f32 %v23, %v47
    %v5375 = vmul.f32 %v24, %v48
    %v5376 = vmul.f32 %v25, %v49
    %v5377 = vmul.f32 %v26, %v50
    %v5378 = vmul.f32 %v27, %v51
    %v5379 = vmul.f32 %v28, %v52
    %v5380 = vmul.f32 %v29, %v53
    %v5381 = vmul.f32 %v30, %v54
    %v5382 = vmul.f32 %v31, %v55
    %v5383 = vmul.f32 %v32, %v56
    %v5384 = vmul.f32 %v33, %v57
    %v5385 = vmul.f32 %v34, %v58
    %v5386 = vmul.f32 %v35, %v59
    %v5387 = vmul.f32 %v5363, 0.03802584
    %v5388 = vmul.f32 %v5364, 0.03802584
    %v5389 = vmul.f32 %v5365, 0.03802584
    %v5390 = vmul.f32 %v5366, 0.03802584
    %v5391 = vmul.f32 %v5367, 0.03802584
    %v5392 = vmul.f32 %v5368, 0.03802584
    %v5393 = vmul.f32 %v5369, 0.03802584
    %v5394 = vmul.f32 %v5370, 0.03802584
    %v5395 = vmul.f32 %v5371, 0.03802584
    %v5396 = vmul.f32 %v5372, 0.03802584
    %v5397 = vmul.f32 %v5373, 0.03802584
    %v5398 = vmul.f32 %v5374, 0.03802584
    %v5399 = vmul.f32 %v5375, 0.03802584
    %v5400 = vmul.f32 %v5376, 0.03802584
    %v5401 = vmul.f32 %v5377, 0.03802584
    %v5402 = vmul.f32 %v5378, 0.03802584
    %v5403 = vmul.f32 %v5379, 0.03802584
    %v5404 = vmul.f32 %v5380, 0.03802584
    %v5405 = vmul.f32 %v5381, 0.03802584
    %v5406 = vmul.f32 %v5382, 0.03802584
    %v5407 = vmul.f32 %v5383, 0.03802584
    %v5408 = vmul.f32 %v5384, 0.03802584
    %v5409 = vmul.f32 %v5385, 0.03802584
    %v5410 = vmul.f32 %v5386, 0.03802584
    %v5411 = vmul.f32 %v5363, 0.115512304
    %v5412 = vmul.f32 %v5364, 0.115512304
    %v5413 = vmul.f32 %v5365, 0.115512304
    %v5414 = vmul.f32 %v5366, 0.115512304
    %v5415 = vmul.f32 %v5367, 0.115512304
    %v5416 = vmul.f32 %v5368, 0.115512304
    %v5417 = vmul.f32 %v5369, 0.115512304
    %v5418 = vmul.f32 %v5370, 0.115512304
    %v5419 = vmul.f32 %v5371, 0.115512304
    %v5420 = vmul.f32 %v5372, 0.115512304
    %v5421 = vmul.f32 %v5373, 0.115512304
    %v5422 = vmul.f32 %v5374, 0.115512304
    %v5423 = vmul.f32 %v5375, 0.115512304
    %v5424 = vmul.f32 %v5376, 0.115512304
    %v5425 = vmul.f32 %v5377, 0.115512304
    %v5426 = vmul.f32 %v5378, 0.115512304
    %v5427 = vmul.f32 %v5379, 0.115512304
    %v5428 = vmul.f32 %v5380, 0.115512304
    %v5429 = vmul.f32 %v5381, 0.115512304
    %v5430 = vmul.f32 %v5382, 0.115512304
    %v5431 = vmul.f32 %v5383, 0.115512304
    %v5432 = vmul.f32 %v5384, 0.115512304
    %v5433 = vmul.f32 %v5385, 0.115512304
    %v5434 = vmul.f32 %v5386, 0.115512304
    %v5459 = vrot.slane %v5411, 1
    %v5460 = vrot.slane %v5412, 1
    %v5461 = vsel %vm238, %v5459, %v5460
    %v5462 = vrot.slane %v5413, 1
    %v5463 = vsel %vm238, %v5460, %v5462
    %v5464 = vrot.slane %v5414, 1
    %v5465 = vrot.slane %v5415, 1
    %v5466 = vsel %vm238, %v5464, %v5465
    %v5467 = vrot.slane %v5416, 1
    %v5468 = vsel %vm238, %v5465, %v5467
    %v5469 = vrot.slane %v5417, 1
    %v5470 = vrot.slane %v5418, 1
    %v5471 = vsel %vm238, %v5469, %v5470
    %v5472 = vrot.slane %v5419, 1
    %v5473 = vsel %vm238, %v5470, %v5472
    %v5474 = vrot.slane %v5420, 1
    %v5475 = vrot.slane %v5421, 1
    %v5476 = vsel %vm238, %v5474, %v5475
    %v5477 = vrot.slane %v5422, 1
    %v5478 = vsel %vm238, %v5475, %v5477
    %v5479 = vrot.slane %v5423, 1
    %v5480 = vrot.slane %v5424, 1
    %v5481 = vsel %vm238, %v5479, %v5480
    %v5482 = vrot.slane %v5425, 1
    %v5483 = vsel %vm238, %v5480, %v5482
    %v5484 = vrot.slane %v5426, 1
    %v5485 = vrot.slane %v5427, 1
    %v5486 = vsel %vm238, %v5484, %v5485
    %v5487 = vrot.slane %v5428, 1
    %v5488 = vsel %vm238, %v5485, %v5487
    %v5489 = vrot.slane %v5429, 1
    %v5490 = vrot.slane %v5430, 1
    %v5491 = vsel %vm238, %v5489, %v5490
    %v5492 = vrot.slane %v5431, 1
    %v5493 = vsel %vm238, %v5490, %v5492
    %v5494 = vrot.slane %v5432, 1
    %v5495 = vrot.slane %v5433, 1
    %v5496 = vsel %vm238, %v5494, %v5495
    %v5497 = vrot.slane %v5434, 1
    %v5498 = vsel %vm238, %v5495, %v5497
    %v5523 = vadd.f32 %v5387, %v5461
    %v5524 = vadd.f32 %v5388, %v5463
    %v5525 = vadd.f32 %v5389, %v5462
    %v5526 = vadd.f32 %v5390, %v5466
    %v5527 = vadd.f32 %v5391, %v5468
    %v5528 = vadd.f32 %v5392, %v5467
    %v5529 = vadd.f32 %v5393, %v5471
    %v5530 = vadd.f32 %v5394, %v5473
    %v5531 = vadd.f32 %v5395, %v5472
    %v5532 = vadd.f32 %v5396, %v5476
    %v5533 = vadd.f32 %v5397, %v5478
    %v5534 = vadd.f32 %v5398, %v5477
    %v5535 = vadd.f32 %v5399, %v5481
    %v5536 = vadd.f32 %v5400, %v5483
    %v5537 = vadd.f32 %v5401, %v5482
    %v5538 = vadd.f32 %v5402, %v5486
    %v5539 = vadd.f32 %v5403, %v5488
    %v5540 = vadd.f32 %v5404, %v5487
    %v5541 = vadd.f32 %v5405, %v5491
    %v5542 = vadd.f32 %v5406, %v5493
    %v5543 = vadd.f32 %v5407, %v5492
    %v5544 = vadd.f32 %v5408, %v5496
    %v5545 = vadd.f32 %v5409, %v5498
    %v5546 = vadd.f32 %v5410, %v5497
    %v5547 = vmul.f32 %v5363, 0.22498724
    %v5548 = vmul.f32 %v5364, 0.22498724
    %v5549 = vmul.f32 %v5365, 0.22498724
    %v5550 = vmul.f32 %v5366, 0.22498724
    %v5551 = vmul.f32 %v5367, 0.22498724
    %v5552 = vmul.f32 %v5368, 0.22498724
    %v5553 = vmul.f32 %v5369, 0.22498724
    %v5554 = vmul.f32 %v5370, 0.22498724
    %v5555 = vmul.f32 %v5371, 0.22498724
    %v5556 = vmul.f32 %v5372, 0.22498724
    %v5557 = vmul.f32 %v5373, 0.22498724
    %v5558 = vmul.f32 %v5374, 0.22498724
    %v5559 = vmul.f32 %v5375, 0.22498724
    %v5560 = vmul.f32 %v5376, 0.22498724
    %v5561 = vmul.f32 %v5377, 0.22498724
    %v5562 = vmul.f32 %v5378, 0.22498724
    %v5563 = vmul.f32 %v5379, 0.22498724
    %v5564 = vmul.f32 %v5380, 0.22498724
    %v5565 = vmul.f32 %v5381, 0.22498724
    %v5566 = vmul.f32 %v5382, 0.22498724
    %v5567 = vmul.f32 %v5383, 0.22498724
    %v5568 = vmul.f32 %v5384, 0.22498724
    %v5569 = vmul.f32 %v5385, 0.22498724
    %v5570 = vmul.f32 %v5386, 0.22498724
    %v5595 = vrot.slane %v5547, 2
    %v5596 = vrot.slane %v5548, 2
    %v5597 = vsel %vm375, %v5595, %v5596
    %v5598 = vrot.slane %v5549, 2
    %v5599 = vsel %vm375, %v5596, %v5598
    %v5600 = vrot.slane %v5550, 2
    %v5601 = vrot.slane %v5551, 2
    %v5602 = vsel %vm375, %v5600, %v5601
    %v5603 = vrot.slane %v5552, 2
    %v5604 = vsel %vm375, %v5601, %v5603
    %v5605 = vrot.slane %v5553, 2
    %v5606 = vrot.slane %v5554, 2
    %v5607 = vsel %vm375, %v5605, %v5606
    %v5608 = vrot.slane %v5555, 2
    %v5609 = vsel %vm375, %v5606, %v5608
    %v5610 = vrot.slane %v5556, 2
    %v5611 = vrot.slane %v5557, 2
    %v5612 = vsel %vm375, %v5610, %v5611
    %v5613 = vrot.slane %v5558, 2
    %v5614 = vsel %vm375, %v5611, %v5613
    %v5615 = vrot.slane %v5559, 2
    %v5616 = vrot.slane %v5560, 2
    %v5617 = vsel %vm375, %v5615, %v5616
    %v5618 = vrot.slane %v5561, 2
    %v5619 = vsel %vm375, %v5616, %v5618
    %v5620 = vrot.slane %v5562, 2
    %v5621 = vrot.slane %v5563, 2
    %v5622 = vsel %vm375, %v5620, %v5621
    %v5623 = vrot.slane %v5564, 2
    %v5624 = vsel %vm375, %v5621, %v5623
    %v5625 = vrot.slane %v5565, 2
    %v5626 = vrot.slane %v5566, 2
    %v5627 = vsel %vm375, %v5625, %v5626
    %v5628 = vrot.slane %v5567, 2
    %v5629 = vsel %vm375, %v5626, %v5628
    %v5630 = vrot.slane %v5568, 2
    %v5631 = vrot.slane %v5569, 2
    %v5632 = vsel %vm375, %v5630, %v5631
    %v5633 = vrot.slane %v5570, 2
    %v5634 = vsel %vm375, %v5631, %v5633
    %v5659 = vadd.f32 %v5523, %v5597
    %v5660 = vadd.f32 %v5524, %v5599
    %v5661 = vadd.f32 %v5525, %v5598
    %v5662 = vadd.f32 %v5526, %v5602
    %v5663 = vadd.f32 %v5527, %v5604
    %v5664 = vadd.f32 %v5528, %v5603
    %v5665 = vadd.f32 %v5529, %v5607
    %v5666 = vadd.f32 %v5530, %v5609
    %v5667 = vadd.f32 %v5531, %v5608
    %v5668 = vadd.f32 %v5532, %v5612
    %v5669 = vadd.f32 %v5533, %v5614
    %v5670 = vadd.f32 %v5534, %v5613
    %v5671 = vadd.f32 %v5535, %v5617
    %v5672 = vadd.f32 %v5536, %v5619
    %v5673 = vadd.f32 %v5537, %v5618
    %v5674 = vadd.f32 %v5538, %v5622
    %v5675 = vadd.f32 %v5539, %v5624
    %v5676 = vadd.f32 %v5540, %v5623
    %v5677 = vadd.f32 %v5541, %v5627
    %v5678 = vadd.f32 %v5542, %v5629
    %v5679 = vadd.f32 %v5543, %v5628
    %v5680 = vadd.f32 %v5544, %v5632
    %v5681 = vadd.f32 %v5545, %v5634
    %v5682 = vadd.f32 %v5546, %v5633
    %v5683 = vmul.f32 %v5363, 0.28097507
    %v5684 = vmul.f32 %v5364, 0.28097507
    %v5685 = vmul.f32 %v5365, 0.28097507
    %v5686 = vmul.f32 %v5366, 0.28097507
    %v5687 = vmul.f32 %v5367, 0.28097507
    %v5688 = vmul.f32 %v5368, 0.28097507
    %v5689 = vmul.f32 %v5369, 0.28097507
    %v5690 = vmul.f32 %v5370, 0.28097507
    %v5691 = vmul.f32 %v5371, 0.28097507
    %v5692 = vmul.f32 %v5372, 0.28097507
    %v5693 = vmul.f32 %v5373, 0.28097507
    %v5694 = vmul.f32 %v5374, 0.28097507
    %v5695 = vmul.f32 %v5375, 0.28097507
    %v5696 = vmul.f32 %v5376, 0.28097507
    %v5697 = vmul.f32 %v5377, 0.28097507
    %v5698 = vmul.f32 %v5378, 0.28097507
    %v5699 = vmul.f32 %v5379, 0.28097507
    %v5700 = vmul.f32 %v5380, 0.28097507
    %v5701 = vmul.f32 %v5381, 0.28097507
    %v5702 = vmul.f32 %v5382, 0.28097507
    %v5703 = vmul.f32 %v5383, 0.28097507
    %v5704 = vmul.f32 %v5384, 0.28097507
    %v5705 = vmul.f32 %v5385, 0.28097507
    %v5706 = vmul.f32 %v5386, 0.28097507
    %v5731 = vrot.slane %v5683, 3
    %v5732 = vrot.slane %v5684, 3
    %v5733 = vsel %vm512, %v5731, %v5732
    %v5734 = vrot.slane %v5685, 3
    %v5735 = vsel %vm512, %v5732, %v5734
    %v5736 = vrot.slane %v5686, 3
    %v5737 = vrot.slane %v5687, 3
    %v5738 = vsel %vm512, %v5736, %v5737
    %v5739 = vrot.slane %v5688, 3
    %v5740 = vsel %vm512, %v5737, %v5739
    %v5741 = vrot.slane %v5689, 3
    %v5742 = vrot.slane %v5690, 3
    %v5743 = vsel %vm512, %v5741, %v5742
    %v5744 = vrot.slane %v5691, 3
    %v5745 = vsel %vm512, %v5742, %v5744
    %v5746 = vrot.slane %v5692, 3
    %v5747 = vrot.slane %v5693, 3
    %v5748 = vsel %vm512, %v5746, %v5747
    %v5749 = vrot.slane %v5694, 3
    %v5750 = vsel %vm512, %v5747, %v5749
    %v5751 = vrot.slane %v5695, 3
    %v5752 = vrot.slane %v5696, 3
    %v5753 = vsel %vm512, %v5751, %v5752
    %v5754 = vrot.slane %v5697, 3
    %v5755 = vsel %vm512, %v5752, %v5754
    %v5756 = vrot.slane %v5698, 3
    %v5757 = vrot.slane %v5699, 3
    %v5758 = vsel %vm512, %v5756, %v5757
    %v5759 = vrot.slane %v5700, 3
    %v5760 = vsel %vm512, %v5757, %v5759
    %v5761 = vrot.slane %v5701, 3
    %v5762 = vrot.slane %v5702, 3
    %v5763 = vsel %vm512, %v5761, %v5762
    %v5764 = vrot.slane %v5703, 3
    %v5765 = vsel %vm512, %v5762, %v5764
    %v5766 = vrot.slane %v5704, 3
    %v5767 = vrot.slane %v5705, 3
    %v5768 = vsel %vm512, %v5766, %v5767
    %v5769 = vrot.slane %v5706, 3
    %v5770 = vsel %vm512, %v5767, %v5769
    %v5795 = vadd.f32 %v5659, %v5733
    %v5796 = vadd.f32 %v5660, %v5735
    %v5797 = vadd.f32 %v5661, %v5734
    %v5798 = vadd.f32 %v5662, %v5738
    %v5799 = vadd.f32 %v5663, %v5740
    %v5800 = vadd.f32 %v5664, %v5739
    %v5801 = vadd.f32 %v5665, %v5743
    %v5802 = vadd.f32 %v5666, %v5745
    %v5803 = vadd.f32 %v5667, %v5744
    %v5804 = vadd.f32 %v5668, %v5748
    %v5805 = vadd.f32 %v5669, %v5750
    %v5806 = vadd.f32 %v5670, %v5749
    %v5807 = vadd.f32 %v5671, %v5753
    %v5808 = vadd.f32 %v5672, %v5755
    %v5809 = vadd.f32 %v5673, %v5754
    %v5810 = vadd.f32 %v5674, %v5758
    %v5811 = vadd.f32 %v5675, %v5760
    %v5812 = vadd.f32 %v5676, %v5759
    %v5813 = vadd.f32 %v5677, %v5763
    %v5814 = vadd.f32 %v5678, %v5765
    %v5815 = vadd.f32 %v5679, %v5764
    %v5816 = vadd.f32 %v5680, %v5768
    %v5817 = vadd.f32 %v5681, %v5770
    %v5818 = vadd.f32 %v5682, %v5769
    %v5819 = vrot.slane %v5547, 4
    %v5820 = vrot.slane %v5548, 4
    %v5821 = vsel %vm601, %v5819, %v5820
    %v5822 = vrot.slane %v5549, 4
    %v5823 = vsel %vm601, %v5820, %v5822
    %v5824 = vrot.slane %v5550, 4
    %v5825 = vrot.slane %v5551, 4
    %v5826 = vsel %vm601, %v5824, %v5825
    %v5827 = vrot.slane %v5552, 4
    %v5828 = vsel %vm601, %v5825, %v5827
    %v5829 = vrot.slane %v5553, 4
    %v5830 = vrot.slane %v5554, 4
    %v5831 = vsel %vm601, %v5829, %v5830
    %v5832 = vrot.slane %v5555, 4
    %v5833 = vsel %vm601, %v5830, %v5832
    %v5834 = vrot.slane %v5556, 4
    %v5835 = vrot.slane %v5557, 4
    %v5836 = vsel %vm601, %v5834, %v5835
    %v5837 = vrot.slane %v5558, 4
    %v5838 = vsel %vm601, %v5835, %v5837
    %v5839 = vrot.slane %v5559, 4
    %v5840 = vrot.slane %v5560, 4
    %v5841 = vsel %vm601, %v5839, %v5840
    %v5842 = vrot.slane %v5561, 4
    %v5843 = vsel %vm601, %v5840, %v5842
    %v5844 = vrot.slane %v5562, 4
    %v5845 = vrot.slane %v5563, 4
    %v5846 = vsel %vm601, %v5844, %v5845
    %v5847 = vrot.slane %v5564, 4
    %v5848 = vsel %vm601, %v5845, %v5847
    %v5849 = vrot.slane %v5565, 4
    %v5850 = vrot.slane %v5566, 4
    %v5851 = vsel %vm601, %v5849, %v5850
    %v5852 = vrot.slane %v5567, 4
    %v5853 = vsel %vm601, %v5850, %v5852
    %v5854 = vrot.slane %v5568, 4
    %v5855 = vrot.slane %v5569, 4
    %v5856 = vsel %vm601, %v5854, %v5855
    %v5857 = vrot.slane %v5570, 4
    %v5858 = vsel %vm601, %v5855, %v5857
    %v5883 = vadd.f32 %v5795, %v5821
    %v5884 = vadd.f32 %v5796, %v5823
    %v5885 = vadd.f32 %v5797, %v5822
    %v5886 = vadd.f32 %v5798, %v5826
    %v5887 = vadd.f32 %v5799, %v5828
    %v5888 = vadd.f32 %v5800, %v5827
    %v5889 = vadd.f32 %v5801, %v5831
    %v5890 = vadd.f32 %v5802, %v5833
    %v5891 = vadd.f32 %v5803, %v5832
    %v5892 = vadd.f32 %v5804, %v5836
    %v5893 = vadd.f32 %v5805, %v5838
    %v5894 = vadd.f32 %v5806, %v5837
    %v5895 = vadd.f32 %v5807, %v5841
    %v5896 = vadd.f32 %v5808, %v5843
    %v5897 = vadd.f32 %v5809, %v5842
    %v5898 = vadd.f32 %v5810, %v5846
    %v5899 = vadd.f32 %v5811, %v5848
    %v5900 = vadd.f32 %v5812, %v5847
    %v5901 = vadd.f32 %v5813, %v5851
    %v5902 = vadd.f32 %v5814, %v5853
    %v5903 = vadd.f32 %v5815, %v5852
    %v5904 = vadd.f32 %v5816, %v5856
    %v5905 = vadd.f32 %v5817, %v5858
    %v5906 = vadd.f32 %v5818, %v5857
    %v5907 = vrot.slane %v5411, 5
    %v5908 = vrot.slane %v5412, 5
    %v5909 = vsel %vm690, %v5907, %v5908
    %v5910 = vrot.slane %v5413, 5
    %v5911 = vsel %vm690, %v5908, %v5910
    %v5912 = vrot.slane %v5414, 5
    %v5913 = vrot.slane %v5415, 5
    %v5914 = vsel %vm690, %v5912, %v5913
    %v5915 = vrot.slane %v5416, 5
    %v5916 = vsel %vm690, %v5913, %v5915
    %v5917 = vrot.slane %v5417, 5
    %v5918 = vrot.slane %v5418, 5
    %v5919 = vsel %vm690, %v5917, %v5918
    %v5920 = vrot.slane %v5419, 5
    %v5921 = vsel %vm690, %v5918, %v5920
    %v5922 = vrot.slane %v5420, 5
    %v5923 = vrot.slane %v5421, 5
    %v5924 = vsel %vm690, %v5922, %v5923
    %v5925 = vrot.slane %v5422, 5
    %v5926 = vsel %vm690, %v5923, %v5925
    %v5927 = vrot.slane %v5423, 5
    %v5928 = vrot.slane %v5424, 5
    %v5929 = vsel %vm690, %v5927, %v5928
    %v5930 = vrot.slane %v5425, 5
    %v5931 = vsel %vm690, %v5928, %v5930
    %v5932 = vrot.slane %v5426, 5
    %v5933 = vrot.slane %v5427, 5
    %v5934 = vsel %vm690, %v5932, %v5933
    %v5935 = vrot.slane %v5428, 5
    %v5936 = vsel %vm690, %v5933, %v5935
    %v5937 = vrot.slane %v5429, 5
    %v5938 = vrot.slane %v5430, 5
    %v5939 = vsel %vm690, %v5937, %v5938
    %v5940 = vrot.slane %v5431, 5
    %v5941 = vsel %vm690, %v5938, %v5940
    %v5942 = vrot.slane %v5432, 5
    %v5943 = vrot.slane %v5433, 5
    %v5944 = vsel %vm690, %v5942, %v5943
    %v5945 = vrot.slane %v5434, 5
    %v5946 = vsel %vm690, %v5943, %v5945
    %v5971 = vadd.f32 %v5883, %v5909
    %v5972 = vadd.f32 %v5884, %v5911
    %v5973 = vadd.f32 %v5885, %v5910
    %v5974 = vadd.f32 %v5886, %v5914
    %v5975 = vadd.f32 %v5887, %v5916
    %v5976 = vadd.f32 %v5888, %v5915
    %v5977 = vadd.f32 %v5889, %v5919
    %v5978 = vadd.f32 %v5890, %v5921
    %v5979 = vadd.f32 %v5891, %v5920
    %v5980 = vadd.f32 %v5892, %v5924
    %v5981 = vadd.f32 %v5893, %v5926
    %v5982 = vadd.f32 %v5894, %v5925
    %v5983 = vadd.f32 %v5895, %v5929
    %v5984 = vadd.f32 %v5896, %v5931
    %v5985 = vadd.f32 %v5897, %v5930
    %v5986 = vadd.f32 %v5898, %v5934
    %v5987 = vadd.f32 %v5899, %v5936
    %v5988 = vadd.f32 %v5900, %v5935
    %v5989 = vadd.f32 %v5901, %v5939
    %v5990 = vadd.f32 %v5902, %v5941
    %v5991 = vadd.f32 %v5903, %v5940
    %v5992 = vadd.f32 %v5904, %v5944
    %v5993 = vadd.f32 %v5905, %v5946
    %v5994 = vadd.f32 %v5906, %v5945
    %v5995 = vmul.f32 %v5971, 0.03802584
    %v5996 = vmul.f32 %v5972, 0.03802584
    %v5997 = vmul.f32 %v5973, 0.03802584
    %v5998 = vmul.f32 %v5974, 0.03802584
    %v5999 = vmul.f32 %v5975, 0.03802584
    %v6000 = vmul.f32 %v5976, 0.03802584
    %v6001 = vmul.f32 %v5977, 0.03802584
    %v6002 = vmul.f32 %v5978, 0.03802584
    %v6003 = vmul.f32 %v5979, 0.03802584
    %v6004 = vmul.f32 %v5980, 0.03802584
    %v6005 = vmul.f32 %v5981, 0.03802584
    %v6006 = vmul.f32 %v5982, 0.03802584
    %v6007 = vmul.f32 %v5983, 0.03802584
    %v6008 = vmul.f32 %v5984, 0.03802584
    %v6009 = vmul.f32 %v5985, 0.03802584
    %v6010 = vmul.f32 %v5986, 0.03802584
    %v6011 = vmul.f32 %v5987, 0.03802584
    %v6012 = vmul.f32 %v5988, 0.03802584
    %v6013 = vmul.f32 %v5989, 0.03802584
    %v6014 = vmul.f32 %v5990, 0.03802584
    %v6015 = vmul.f32 %v5991, 0.03802584
    %v6016 = vmul.f32 %v5992, 0.03802584
    %v6017 = vmul.f32 %v5993, 0.03802584
    %v6018 = vmul.f32 %v5994, 0.03802584
    %v6019 = vmul.f32 %v5971, 0.115512304
    %v6020 = vmul.f32 %v5972, 0.115512304
    %v6021 = vmul.f32 %v5973, 0.115512304
    %v6022 = vmul.f32 %v5974, 0.115512304
    %v6023 = vmul.f32 %v5975, 0.115512304
    %v6024 = vmul.f32 %v5976, 0.115512304
    %v6025 = vmul.f32 %v5977, 0.115512304
    %v6026 = vmul.f32 %v5978, 0.115512304
    %v6027 = vmul.f32 %v5979, 0.115512304
    %v6028 = vmul.f32 %v5980, 0.115512304
    %v6029 = vmul.f32 %v5981, 0.115512304
    %v6030 = vmul.f32 %v5982, 0.115512304
    %v6031 = vmul.f32 %v5983, 0.115512304
    %v6032 = vmul.f32 %v5984, 0.115512304
    %v6033 = vmul.f32 %v5985, 0.115512304
    %v6034 = vmul.f32 %v5986, 0.115512304
    %v6035 = vmul.f32 %v5987, 0.115512304
    %v6036 = vmul.f32 %v5988, 0.115512304
    %v6037 = vmul.f32 %v5989, 0.115512304
    %v6038 = vmul.f32 %v5990, 0.115512304
    %v6039 = vmul.f32 %v5991, 0.115512304
    %v6040 = vmul.f32 %v5992, 0.115512304
    %v6041 = vmul.f32 %v5993, 0.115512304
    %v6042 = vmul.f32 %v5994, 0.115512304
    %6067 = vrot.lane.b32.xlu0 %v6019, 127
    %v6068 = vpop.permute.xlu0 %6067
    %6069 = vrot.lane.b32.xlu0 %v6020, 127
    %v6070 = vpop.permute.xlu0 %6069
    %6071 = vrot.lane.b32.xlu0 %v6021, 127
    %v6072 = vpop.permute.xlu0 %6071
    %6073 = vrot.lane.b32.xlu0 %v6022, 127
    %v6074 = vpop.permute.xlu0 %6073
    %6075 = vrot.lane.b32.xlu0 %v6023, 127
    %v6076 = vpop.permute.xlu0 %6075
    %6077 = vrot.lane.b32.xlu0 %v6024, 127
    %v6078 = vpop.permute.xlu0 %6077
    %6079 = vrot.lane.b32.xlu0 %v6025, 127
    %v6080 = vpop.permute.xlu0 %6079
    %6081 = vrot.lane.b32.xlu0 %v6026, 127
    %v6082 = vpop.permute.xlu0 %6081
    %6083 = vrot.lane.b32.xlu0 %v6027, 127
    %v6084 = vpop.permute.xlu0 %6083
    %6085 = vrot.lane.b32.xlu0 %v6028, 127
    %v6086 = vpop.permute.xlu0 %6085
    %6087 = vrot.lane.b32.xlu0 %v6029, 127
    %v6088 = vpop.permute.xlu0 %6087
    %6089 = vrot.lane.b32.xlu0 %v6030, 127
    %v6090 = vpop.permute.xlu0 %6089
    %6091 = vrot.lane.b32.xlu0 %v6031, 127
    %v6092 = vpop.permute.xlu0 %6091
    %6093 = vrot.lane.b32.xlu0 %v6032, 127
    %v6094 = vpop.permute.xlu0 %6093
    %6095 = vrot.lane.b32.xlu0 %v6033, 127
    %v6096 = vpop.permute.xlu0 %6095
    %6097 = vrot.lane.b32.xlu0 %v6034, 127
    %v6098 = vpop.permute.xlu0 %6097
    %6099 = vrot.lane.b32.xlu0 %v6035, 127
    %v6100 = vpop.permute.xlu0 %6099
    %6101 = vrot.lane.b32.xlu0 %v6036, 127
    %v6102 = vpop.permute.xlu0 %6101
    %6103 = vrot.lane.b32.xlu0 %v6037, 127
    %v6104 = vpop.permute.xlu0 %6103
    %6105 = vrot.lane.b32.xlu0 %v6038, 127
    %v6106 = vpop.permute.xlu0 %6105
    %6107 = vrot.lane.b32.xlu0 %v6039, 127
    %v6108 = vpop.permute.xlu0 %6107
    %6109 = vrot.lane.b32.xlu0 %v6040, 127
    %v6110 = vpop.permute.xlu0 %6109
    %6111 = vrot.lane.b32.xlu0 %v6041, 127
    %v6112 = vpop.permute.xlu0 %6111
    %6113 = vrot.lane.b32.xlu0 %v6042, 127
    %v6114 = vpop.permute.xlu0 %6113
    %v6139 = vadd.f32 %v5995, %v6068
    %v6140 = vadd.f32 %v5996, %v6070
    %v6141 = vadd.f32 %v5997, %v6072
    %v6142 = vadd.f32 %v5998, %v6074
    %v6143 = vadd.f32 %v5999, %v6076
    %v6144 = vadd.f32 %v6000, %v6078
    %v6145 = vadd.f32 %v6001, %v6080
    %v6146 = vadd.f32 %v6002, %v6082
    %v6147 = vadd.f32 %v6003, %v6084
    %v6148 = vadd.f32 %v6004, %v6086
    %v6149 = vadd.f32 %v6005, %v6088
    %v6150 = vadd.f32 %v6006, %v6090
    %v6151 = vadd.f32 %v6007, %v6092
    %v6152 = vadd.f32 %v6008, %v6094
    %v6153 = vadd.f32 %v6009, %v6096
    %v6154 = vadd.f32 %v6010, %v6098
    %v6155 = vadd.f32 %v6011, %v6100
    %v6156 = vadd.f32 %v6012, %v6102
    %v6157 = vadd.f32 %v6013, %v6104
    %v6158 = vadd.f32 %v6014, %v6106
    %v6159 = vadd.f32 %v6015, %v6108
    %v6160 = vadd.f32 %v6016, %v6110
    %v6161 = vadd.f32 %v6017, %v6112
    %v6162 = vadd.f32 %v6018, %v6114
    %v6163 = vmul.f32 %v5971, 0.22498724
    %v6164 = vmul.f32 %v5972, 0.22498724
    %v6165 = vmul.f32 %v5973, 0.22498724
    %v6166 = vmul.f32 %v5974, 0.22498724
    %v6167 = vmul.f32 %v5975, 0.22498724
    %v6168 = vmul.f32 %v5976, 0.22498724
    %v6169 = vmul.f32 %v5977, 0.22498724
    %v6170 = vmul.f32 %v5978, 0.22498724
    %v6171 = vmul.f32 %v5979, 0.22498724
    %v6172 = vmul.f32 %v5980, 0.22498724
    %v6173 = vmul.f32 %v5981, 0.22498724
    %v6174 = vmul.f32 %v5982, 0.22498724
    %v6175 = vmul.f32 %v5983, 0.22498724
    %v6176 = vmul.f32 %v5984, 0.22498724
    %v6177 = vmul.f32 %v5985, 0.22498724
    %v6178 = vmul.f32 %v5986, 0.22498724
    %v6179 = vmul.f32 %v5987, 0.22498724
    %v6180 = vmul.f32 %v5988, 0.22498724
    %v6181 = vmul.f32 %v5989, 0.22498724
    %v6182 = vmul.f32 %v5990, 0.22498724
    %v6183 = vmul.f32 %v5991, 0.22498724
    %v6184 = vmul.f32 %v5992, 0.22498724
    %v6185 = vmul.f32 %v5993, 0.22498724
    %v6186 = vmul.f32 %v5994, 0.22498724
    %6211 = vrot.lane.b32.xlu0 %v6163, 126
    %v6212 = vpop.permute.xlu0 %6211
    %6213 = vrot.lane.b32.xlu0 %v6164, 126
    %v6214 = vpop.permute.xlu0 %6213
    %6215 = vrot.lane.b32.xlu0 %v6165, 126
    %v6216 = vpop.permute.xlu0 %6215
    %6217 = vrot.lane.b32.xlu0 %v6166, 126
    %v6218 = vpop.permute.xlu0 %6217
    %6219 = vrot.lane.b32.xlu0 %v6167, 126
    %v6220 = vpop.permute.xlu0 %6219
    %6221 = vrot.lane.b32.xlu0 %v6168, 126
    %v6222 = vpop.permute.xlu0 %6221
    %6223 = vrot.lane.b32.xlu0 %v6169, 126
    %v6224 = vpop.permute.xlu0 %6223
    %6225 = vrot.lane.b32.xlu0 %v6170, 126
    %v6226 = vpop.permute.xlu0 %6225
    %6227 = vrot.lane.b32.xlu0 %v6171, 126
    %v6228 = vpop.permute.xlu0 %6227
    %6229 = vrot.lane.b32.xlu0 %v6172, 126
    %v6230 = vpop.permute.xlu0 %6229
    %6231 = vrot.lane.b32.xlu0 %v6173, 126
    %v6232 = vpop.permute.xlu0 %6231
    %6233 = vrot.lane.b32.xlu0 %v6174, 126
    %v6234 = vpop.permute.xlu0 %6233
    %6235 = vrot.lane.b32.xlu0 %v6175, 126
    %v6236 = vpop.permute.xlu0 %6235
    %6237 = vrot.lane.b32.xlu0 %v6176, 126
    %v6238 = vpop.permute.xlu0 %6237
    %6239 = vrot.lane.b32.xlu0 %v6177, 126
    %v6240 = vpop.permute.xlu0 %6239
    %6241 = vrot.lane.b32.xlu0 %v6178, 126
    %v6242 = vpop.permute.xlu0 %6241
    %6243 = vrot.lane.b32.xlu0 %v6179, 126
    %v6244 = vpop.permute.xlu0 %6243
    %6245 = vrot.lane.b32.xlu0 %v6180, 126
    %v6246 = vpop.permute.xlu0 %6245
    %6247 = vrot.lane.b32.xlu0 %v6181, 126
    %v6248 = vpop.permute.xlu0 %6247
    %6249 = vrot.lane.b32.xlu0 %v6182, 126
    %v6250 = vpop.permute.xlu0 %6249
    %6251 = vrot.lane.b32.xlu0 %v6183, 126
    %v6252 = vpop.permute.xlu0 %6251
    %6253 = vrot.lane.b32.xlu0 %v6184, 126
    %v6254 = vpop.permute.xlu0 %6253
    %6255 = vrot.lane.b32.xlu0 %v6185, 126
    %v6256 = vpop.permute.xlu0 %6255
    %6257 = vrot.lane.b32.xlu0 %v6186, 126
    %v6258 = vpop.permute.xlu0 %6257
    %v6283 = vadd.f32 %v6139, %v6212
    %v6284 = vadd.f32 %v6140, %v6214
    %v6285 = vadd.f32 %v6141, %v6216
    %v6286 = vadd.f32 %v6142, %v6218
    %v6287 = vadd.f32 %v6143, %v6220
    %v6288 = vadd.f32 %v6144, %v6222
    %v6289 = vadd.f32 %v6145, %v6224
    %v6290 = vadd.f32 %v6146, %v6226
    %v6291 = vadd.f32 %v6147, %v6228
    %v6292 = vadd.f32 %v6148, %v6230
    %v6293 = vadd.f32 %v6149, %v6232
    %v6294 = vadd.f32 %v6150, %v6234
    %v6295 = vadd.f32 %v6151, %v6236
    %v6296 = vadd.f32 %v6152, %v6238
    %v6297 = vadd.f32 %v6153, %v6240
    %v6298 = vadd.f32 %v6154, %v6242
    %v6299 = vadd.f32 %v6155, %v6244
    %v6300 = vadd.f32 %v6156, %v6246
    %v6301 = vadd.f32 %v6157, %v6248
    %v6302 = vadd.f32 %v6158, %v6250
    %v6303 = vadd.f32 %v6159, %v6252
    %v6304 = vadd.f32 %v6160, %v6254
    %v6305 = vadd.f32 %v6161, %v6256
    %v6306 = vadd.f32 %v6162, %v6258
    %v6307 = vmul.f32 %v5971, 0.28097507
    %v6308 = vmul.f32 %v5972, 0.28097507
    %v6309 = vmul.f32 %v5973, 0.28097507
    %v6310 = vmul.f32 %v5974, 0.28097507
    %v6311 = vmul.f32 %v5975, 0.28097507
    %v6312 = vmul.f32 %v5976, 0.28097507
    %v6313 = vmul.f32 %v5977, 0.28097507
    %v6314 = vmul.f32 %v5978, 0.28097507
    %v6315 = vmul.f32 %v5979, 0.28097507
    %v6316 = vmul.f32 %v5980, 0.28097507
    %v6317 = vmul.f32 %v5981, 0.28097507
    %v6318 = vmul.f32 %v5982, 0.28097507
    %v6319 = vmul.f32 %v5983, 0.28097507
    %v6320 = vmul.f32 %v5984, 0.28097507
    %v6321 = vmul.f32 %v5985, 0.28097507
    %v6322 = vmul.f32 %v5986, 0.28097507
    %v6323 = vmul.f32 %v5987, 0.28097507
    %v6324 = vmul.f32 %v5988, 0.28097507
    %v6325 = vmul.f32 %v5989, 0.28097507
    %v6326 = vmul.f32 %v5990, 0.28097507
    %v6327 = vmul.f32 %v5991, 0.28097507
    %v6328 = vmul.f32 %v5992, 0.28097507
    %v6329 = vmul.f32 %v5993, 0.28097507
    %v6330 = vmul.f32 %v5994, 0.28097507
    %6355 = vrot.lane.b32.xlu0 %v6307, 125
    %v6356 = vpop.permute.xlu0 %6355
    %6357 = vrot.lane.b32.xlu0 %v6308, 125
    %v6358 = vpop.permute.xlu0 %6357
    %6359 = vrot.lane.b32.xlu0 %v6309, 125
    %v6360 = vpop.permute.xlu0 %6359
    %6361 = vrot.lane.b32.xlu0 %v6310, 125
    %v6362 = vpop.permute.xlu0 %6361
    %6363 = vrot.lane.b32.xlu0 %v6311, 125
    %v6364 = vpop.permute.xlu0 %6363
    %6365 = vrot.lane.b32.xlu0 %v6312, 125
    %v6366 = vpop.permute.xlu0 %6365
    %6367 = vrot.lane.b32.xlu0 %v6313, 125
    %v6368 = vpop.permute.xlu0 %6367
    %6369 = vrot.lane.b32.xlu0 %v6314, 125
    %v6370 = vpop.permute.xlu0 %6369
    %6371 = vrot.lane.b32.xlu0 %v6315, 125
    %v6372 = vpop.permute.xlu0 %6371
    %6373 = vrot.lane.b32.xlu0 %v6316, 125
    %v6374 = vpop.permute.xlu0 %6373
    %6375 = vrot.lane.b32.xlu0 %v6317, 125
    %v6376 = vpop.permute.xlu0 %6375
    %6377 = vrot.lane.b32.xlu0 %v6318, 125
    %v6378 = vpop.permute.xlu0 %6377
    %6379 = vrot.lane.b32.xlu0 %v6319, 125
    %v6380 = vpop.permute.xlu0 %6379
    %6381 = vrot.lane.b32.xlu0 %v6320, 125
    %v6382 = vpop.permute.xlu0 %6381
    %6383 = vrot.lane.b32.xlu0 %v6321, 125
    %v6384 = vpop.permute.xlu0 %6383
    %6385 = vrot.lane.b32.xlu0 %v6322, 125
    %v6386 = vpop.permute.xlu0 %6385
    %6387 = vrot.lane.b32.xlu0 %v6323, 125
    %v6388 = vpop.permute.xlu0 %6387
    %6389 = vrot.lane.b32.xlu0 %v6324, 125
    %v6390 = vpop.permute.xlu0 %6389
    %6391 = vrot.lane.b32.xlu0 %v6325, 125
    %v6392 = vpop.permute.xlu0 %6391
    %6393 = vrot.lane.b32.xlu0 %v6326, 125
    %v6394 = vpop.permute.xlu0 %6393
    %6395 = vrot.lane.b32.xlu0 %v6327, 125
    %v6396 = vpop.permute.xlu0 %6395
    %6397 = vrot.lane.b32.xlu0 %v6328, 125
    %v6398 = vpop.permute.xlu0 %6397
    %6399 = vrot.lane.b32.xlu0 %v6329, 125
    %v6400 = vpop.permute.xlu0 %6399
    %6401 = vrot.lane.b32.xlu0 %v6330, 125
    %v6402 = vpop.permute.xlu0 %6401
    %v6427 = vadd.f32 %v6283, %v6356
    %v6428 = vadd.f32 %v6284, %v6358
    %v6429 = vadd.f32 %v6285, %v6360
    %v6430 = vadd.f32 %v6286, %v6362
    %v6431 = vadd.f32 %v6287, %v6364
    %v6432 = vadd.f32 %v6288, %v6366
    %v6433 = vadd.f32 %v6289, %v6368
    %v6434 = vadd.f32 %v6290, %v6370
    %v6435 = vadd.f32 %v6291, %v6372
    %v6436 = vadd.f32 %v6292, %v6374
    %v6437 = vadd.f32 %v6293, %v6376
    %v6438 = vadd.f32 %v6294, %v6378
    %v6439 = vadd.f32 %v6295, %v6380
    %v6440 = vadd.f32 %v6296, %v6382
    %v6441 = vadd.f32 %v6297, %v6384
    %v6442 = vadd.f32 %v6298, %v6386
    %v6443 = vadd.f32 %v6299, %v6388
    %v6444 = vadd.f32 %v6300, %v6390
    %v6445 = vadd.f32 %v6301, %v6392
    %v6446 = vadd.f32 %v6302, %v6394
    %v6447 = vadd.f32 %v6303, %v6396
    %v6448 = vadd.f32 %v6304, %v6398
    %v6449 = vadd.f32 %v6305, %v6400
    %v6450 = vadd.f32 %v6306, %v6402
    %6451 = vrot.lane.b32.xlu0 %v6163, 124
    %v6452 = vpop.permute.xlu0 %6451
    %6453 = vrot.lane.b32.xlu0 %v6164, 124
    %v6454 = vpop.permute.xlu0 %6453
    %6455 = vrot.lane.b32.xlu0 %v6165, 124
    %v6456 = vpop.permute.xlu0 %6455
    %6457 = vrot.lane.b32.xlu0 %v6166, 124
    %v6458 = vpop.permute.xlu0 %6457
    %6459 = vrot.lane.b32.xlu0 %v6167, 124
    %v6460 = vpop.permute.xlu0 %6459
    %6461 = vrot.lane.b32.xlu0 %v6168, 124
    %v6462 = vpop.permute.xlu0 %6461
    %6463 = vrot.lane.b32.xlu0 %v6169, 124
    %v6464 = vpop.permute.xlu0 %6463
    %6465 = vrot.lane.b32.xlu0 %v6170, 124
    %v6466 = vpop.permute.xlu0 %6465
    %6467 = vrot.lane.b32.xlu0 %v6171, 124
    %v6468 = vpop.permute.xlu0 %6467
    %6469 = vrot.lane.b32.xlu0 %v6172, 124
    %v6470 = vpop.permute.xlu0 %6469
    %6471 = vrot.lane.b32.xlu0 %v6173, 124
    %v6472 = vpop.permute.xlu0 %6471
    %6473 = vrot.lane.b32.xlu0 %v6174, 124
    %v6474 = vpop.permute.xlu0 %6473
    %6475 = vrot.lane.b32.xlu0 %v6175, 124
    %v6476 = vpop.permute.xlu0 %6475
    %6477 = vrot.lane.b32.xlu0 %v6176, 124
    %v6478 = vpop.permute.xlu0 %6477
    %6479 = vrot.lane.b32.xlu0 %v6177, 124
    %v6480 = vpop.permute.xlu0 %6479
    %6481 = vrot.lane.b32.xlu0 %v6178, 124
    %v6482 = vpop.permute.xlu0 %6481
    %6483 = vrot.lane.b32.xlu0 %v6179, 124
    %v6484 = vpop.permute.xlu0 %6483
    %6485 = vrot.lane.b32.xlu0 %v6180, 124
    %v6486 = vpop.permute.xlu0 %6485
    %6487 = vrot.lane.b32.xlu0 %v6181, 124
    %v6488 = vpop.permute.xlu0 %6487
    %6489 = vrot.lane.b32.xlu0 %v6182, 124
    %v6490 = vpop.permute.xlu0 %6489
    %6491 = vrot.lane.b32.xlu0 %v6183, 124
    %v6492 = vpop.permute.xlu0 %6491
    %6493 = vrot.lane.b32.xlu0 %v6184, 124
    %v6494 = vpop.permute.xlu0 %6493
    %6495 = vrot.lane.b32.xlu0 %v6185, 124
    %v6496 = vpop.permute.xlu0 %6495
    %6497 = vrot.lane.b32.xlu0 %v6186, 124
    %v6498 = vpop.permute.xlu0 %6497
    %v6523 = vadd.f32 %v6427, %v6452
    %v6524 = vadd.f32 %v6428, %v6454
    %v6525 = vadd.f32 %v6429, %v6456
    %v6526 = vadd.f32 %v6430, %v6458
    %v6527 = vadd.f32 %v6431, %v6460
    %v6528 = vadd.f32 %v6432, %v6462
    %v6529 = vadd.f32 %v6433, %v6464
    %v6530 = vadd.f32 %v6434, %v6466
    %v6531 = vadd.f32 %v6435, %v6468
    %v6532 = vadd.f32 %v6436, %v6470
    %v6533 = vadd.f32 %v6437, %v6472
    %v6534 = vadd.f32 %v6438, %v6474
    %v6535 = vadd.f32 %v6439, %v6476
    %v6536 = vadd.f32 %v6440, %v6478
    %v6537 = vadd.f32 %v6441, %v6480
    %v6538 = vadd.f32 %v6442, %v6482
    %v6539 = vadd.f32 %v6443, %v6484
    %v6540 = vadd.f32 %v6444, %v6486
    %v6541 = vadd.f32 %v6445, %v6488
    %v6542 = vadd.f32 %v6446, %v6490
    %v6543 = vadd.f32 %v6447, %v6492
    %v6544 = vadd.f32 %v6448, %v6494
    %v6545 = vadd.f32 %v6449, %v6496
    %v6546 = vadd.f32 %v6450, %v6498
    %6547 = vrot.lane.b32.xlu0 %v6019, 123
    %v6548 = vpop.permute.xlu0 %6547
    %6549 = vrot.lane.b32.xlu0 %v6020, 123
    %v6550 = vpop.permute.xlu0 %6549
    %6551 = vrot.lane.b32.xlu0 %v6021, 123
    %v6552 = vpop.permute.xlu0 %6551
    %6553 = vrot.lane.b32.xlu0 %v6022, 123
    %v6554 = vpop.permute.xlu0 %6553
    %6555 = vrot.lane.b32.xlu0 %v6023, 123
    %v6556 = vpop.permute.xlu0 %6555
    %6557 = vrot.lane.b32.xlu0 %v6024, 123
    %v6558 = vpop.permute.xlu0 %6557
    %6559 = vrot.lane.b32.xlu0 %v6025, 123
    %v6560 = vpop.permute.xlu0 %6559
    %6561 = vrot.lane.b32.xlu0 %v6026, 123
    %v6562 = vpop.permute.xlu0 %6561
    %6563 = vrot.lane.b32.xlu0 %v6027, 123
    %v6564 = vpop.permute.xlu0 %6563
    %6565 = vrot.lane.b32.xlu0 %v6028, 123
    %v6566 = vpop.permute.xlu0 %6565
    %6567 = vrot.lane.b32.xlu0 %v6029, 123
    %v6568 = vpop.permute.xlu0 %6567
    %6569 = vrot.lane.b32.xlu0 %v6030, 123
    %v6570 = vpop.permute.xlu0 %6569
    %6571 = vrot.lane.b32.xlu0 %v6031, 123
    %v6572 = vpop.permute.xlu0 %6571
    %6573 = vrot.lane.b32.xlu0 %v6032, 123
    %v6574 = vpop.permute.xlu0 %6573
    %6575 = vrot.lane.b32.xlu0 %v6033, 123
    %v6576 = vpop.permute.xlu0 %6575
    %6577 = vrot.lane.b32.xlu0 %v6034, 123
    %v6578 = vpop.permute.xlu0 %6577
    %6579 = vrot.lane.b32.xlu0 %v6035, 123
    %v6580 = vpop.permute.xlu0 %6579
    %6581 = vrot.lane.b32.xlu0 %v6036, 123
    %v6582 = vpop.permute.xlu0 %6581
    %6583 = vrot.lane.b32.xlu0 %v6037, 123
    %v6584 = vpop.permute.xlu0 %6583
    %6585 = vrot.lane.b32.xlu0 %v6038, 123
    %v6586 = vpop.permute.xlu0 %6585
    %6587 = vrot.lane.b32.xlu0 %v6039, 123
    %v6588 = vpop.permute.xlu0 %6587
    %6589 = vrot.lane.b32.xlu0 %v6040, 123
    %v6590 = vpop.permute.xlu0 %6589
    %6591 = vrot.lane.b32.xlu0 %v6041, 123
    %v6592 = vpop.permute.xlu0 %6591
    %6593 = vrot.lane.b32.xlu0 %v6042, 123
    %v6594 = vpop.permute.xlu0 %6593
    %v6619 = vadd.f32 %v6523, %v6548
    %v6620 = vadd.f32 %v6524, %v6550
    %v6621 = vadd.f32 %v6525, %v6552
    %v6622 = vadd.f32 %v6526, %v6554
    %v6623 = vadd.f32 %v6527, %v6556
    %v6624 = vadd.f32 %v6528, %v6558
    %v6625 = vadd.f32 %v6529, %v6560
    %v6626 = vadd.f32 %v6530, %v6562
    %v6627 = vadd.f32 %v6531, %v6564
    %v6628 = vadd.f32 %v6532, %v6566
    %v6629 = vadd.f32 %v6533, %v6568
    %v6630 = vadd.f32 %v6534, %v6570
    %v6631 = vadd.f32 %v6535, %v6572
    %v6632 = vadd.f32 %v6536, %v6574
    %v6633 = vadd.f32 %v6537, %v6576
    %v6634 = vadd.f32 %v6538, %v6578
    %v6635 = vadd.f32 %v6539, %v6580
    %v6636 = vadd.f32 %v6540, %v6582
    %v6637 = vadd.f32 %v6541, %v6584
    %v6638 = vadd.f32 %v6542, %v6586
    %v6639 = vadd.f32 %v6543, %v6588
    %v6640 = vadd.f32 %v6544, %v6590
    %v6641 = vadd.f32 %v6545, %v6592
    %v6642 = vadd.f32 %v6546, %v6594
    %v6643 = vsub.f32 %v6619, %v2731
    %v6644 = vsub.f32 %v6620, %v2732
    %v6645 = vsub.f32 %v6621, %v2733
    %v6646 = vsub.f32 %v6622, %v2734
    %v6647 = vsub.f32 %v6623, %v2735
    %v6648 = vsub.f32 %v6624, %v2736
    %v6649 = vsub.f32 %v6625, %v2737
    %v6650 = vsub.f32 %v6626, %v2738
    %v6651 = vsub.f32 %v6627, %v2739
    %v6652 = vsub.f32 %v6628, %v2740
    %v6653 = vsub.f32 %v6629, %v2741
    %v6654 = vsub.f32 %v6630, %v2742
    %v6655 = vsub.f32 %v6631, %v2743
    %v6656 = vsub.f32 %v6632, %v2744
    %v6657 = vsub.f32 %v6633, %v2745
    %v6658 = vsub.f32 %v6634, %v2746
    %v6659 = vsub.f32 %v6635, %v2747
    %v6660 = vsub.f32 %v6636, %v2748
    %v6661 = vsub.f32 %v6637, %v2749
    %v6662 = vsub.f32 %v6638, %v2750
    %v6663 = vsub.f32 %v6639, %v2751
    %v6664 = vsub.f32 %v6640, %v2752
    %v6665 = vsub.f32 %v6641, %v2753
    %v6666 = vsub.f32 %v6642, %v2754
    %v6667 = vmul.f32 %v2731, 2.0
    %v6668 = vmul.f32 %v2732, 2.0
    %v6669 = vmul.f32 %v2733, 2.0
    %v6670 = vmul.f32 %v2734, 2.0
    %v6671 = vmul.f32 %v2735, 2.0
    %v6672 = vmul.f32 %v2736, 2.0
    %v6673 = vmul.f32 %v2737, 2.0
    %v6674 = vmul.f32 %v2738, 2.0
    %v6675 = vmul.f32 %v2739, 2.0
    %v6676 = vmul.f32 %v2740, 2.0
    %v6677 = vmul.f32 %v2741, 2.0
    %v6678 = vmul.f32 %v2742, 2.0
    %v6679 = vmul.f32 %v2743, 2.0
    %v6680 = vmul.f32 %v2744, 2.0
    %v6681 = vmul.f32 %v2745, 2.0
    %v6682 = vmul.f32 %v2746, 2.0
    %v6683 = vmul.f32 %v2747, 2.0
    %v6684 = vmul.f32 %v2748, 2.0
    %v6685 = vmul.f32 %v2749, 2.0
    %v6686 = vmul.f32 %v2750, 2.0
    %v6687 = vmul.f32 %v2751, 2.0
    %v6688 = vmul.f32 %v2752, 2.0
    %v6689 = vmul.f32 %v2753, 2.0
    %v6690 = vmul.f32 %v2754, 2.0
    %v6691 = vadd.f32 %v6667, 0.0001
    %v6692 = vadd.f32 %v6668, 0.0001
    %v6693 = vadd.f32 %v6669, 0.0001
    %v6694 = vadd.f32 %v6670, 0.0001
    %v6695 = vadd.f32 %v6671, 0.0001
    %v6696 = vadd.f32 %v6672, 0.0001
    %v6697 = vadd.f32 %v6673, 0.0001
    %v6698 = vadd.f32 %v6674, 0.0001
    %v6699 = vadd.f32 %v6675, 0.0001
    %v6700 = vadd.f32 %v6676, 0.0001
    %v6701 = vadd.f32 %v6677, 0.0001
    %v6702 = vadd.f32 %v6678, 0.0001
    %v6703 = vadd.f32 %v6679, 0.0001
    %v6704 = vadd.f32 %v6680, 0.0001
    %v6705 = vadd.f32 %v6681, 0.0001
    %v6706 = vadd.f32 %v6682, 0.0001
    %v6707 = vadd.f32 %v6683, 0.0001
    %v6708 = vadd.f32 %v6684, 0.0001
    %v6709 = vadd.f32 %v6685, 0.0001
    %v6710 = vadd.f32 %v6686, 0.0001
    %v6711 = vadd.f32 %v6687, 0.0001
    %v6712 = vadd.f32 %v6688, 0.0001
    %v6713 = vadd.f32 %v6689, 0.0001
    %v6714 = vadd.f32 %v6690, 0.0001
    %v6715 = vmul.f32 %v6643, 2.0
    %v6716 = vmul.f32 %v6644, 2.0
    %v6717 = vmul.f32 %v6645, 2.0
    %v6718 = vmul.f32 %v6646, 2.0
    %v6719 = vmul.f32 %v6647, 2.0
    %v6720 = vmul.f32 %v6648, 2.0
    %v6721 = vmul.f32 %v6649, 2.0
    %v6722 = vmul.f32 %v6650, 2.0
    %v6723 = vmul.f32 %v6651, 2.0
    %v6724 = vmul.f32 %v6652, 2.0
    %v6725 = vmul.f32 %v6653, 2.0
    %v6726 = vmul.f32 %v6654, 2.0
    %v6727 = vmul.f32 %v6655, 2.0
    %v6728 = vmul.f32 %v6656, 2.0
    %v6729 = vmul.f32 %v6657, 2.0
    %v6730 = vmul.f32 %v6658, 2.0
    %v6731 = vmul.f32 %v6659, 2.0
    %v6732 = vmul.f32 %v6660, 2.0
    %v6733 = vmul.f32 %v6661, 2.0
    %v6734 = vmul.f32 %v6662, 2.0
    %v6735 = vmul.f32 %v6663, 2.0
    %v6736 = vmul.f32 %v6664, 2.0
    %v6737 = vmul.f32 %v6665, 2.0
    %v6738 = vmul.f32 %v6666, 2.0
    %v6739 = vadd.f32 %v6715, 0.0009
    %v6740 = vadd.f32 %v6716, 0.0009
    %v6741 = vadd.f32 %v6717, 0.0009
    %v6742 = vadd.f32 %v6718, 0.0009
    %v6743 = vadd.f32 %v6719, 0.0009
    %v6744 = vadd.f32 %v6720, 0.0009
    %v6745 = vadd.f32 %v6721, 0.0009
    %v6746 = vadd.f32 %v6722, 0.0009
    %v6747 = vadd.f32 %v6723, 0.0009
    %v6748 = vadd.f32 %v6724, 0.0009
    %v6749 = vadd.f32 %v6725, 0.0009
    %v6750 = vadd.f32 %v6726, 0.0009
    %v6751 = vadd.f32 %v6727, 0.0009
    %v6752 = vadd.f32 %v6728, 0.0009
    %v6753 = vadd.f32 %v6729, 0.0009
    %v6754 = vadd.f32 %v6730, 0.0009
    %v6755 = vadd.f32 %v6731, 0.0009
    %v6756 = vadd.f32 %v6732, 0.0009
    %v6757 = vadd.f32 %v6733, 0.0009
    %v6758 = vadd.f32 %v6734, 0.0009
    %v6759 = vadd.f32 %v6735, 0.0009
    %v6760 = vadd.f32 %v6736, 0.0009
    %v6761 = vadd.f32 %v6737, 0.0009
    %v6762 = vadd.f32 %v6738, 0.0009
    %v6763 = vmul.f32 %v6691, %v6739
    %v6764 = vmul.f32 %v6692, %v6740
    %v6765 = vmul.f32 %v6693, %v6741
    %v6766 = vmul.f32 %v6694, %v6742
    %v6767 = vmul.f32 %v6695, %v6743
    %v6768 = vmul.f32 %v6696, %v6744
    %v6769 = vmul.f32 %v6697, %v6745
    %v6770 = vmul.f32 %v6698, %v6746
    %v6771 = vmul.f32 %v6699, %v6747
    %v6772 = vmul.f32 %v6700, %v6748
    %v6773 = vmul.f32 %v6701, %v6749
    %v6774 = vmul.f32 %v6702, %v6750
    %v6775 = vmul.f32 %v6703, %v6751
    %v6776 = vmul.f32 %v6704, %v6752
    %v6777 = vmul.f32 %v6705, %v6753
    %v6778 = vmul.f32 %v6706, %v6754
    %v6779 = vmul.f32 %v6707, %v6755
    %v6780 = vmul.f32 %v6708, %v6756
    %v6781 = vmul.f32 %v6709, %v6757
    %v6782 = vmul.f32 %v6710, %v6758
    %v6783 = vmul.f32 %v6711, %v6759
    %v6784 = vmul.f32 %v6712, %v6760
    %v6785 = vmul.f32 %v6713, %v6761
    %v6786 = vmul.f32 %v6714, %v6762
    %v6787 = vadd.f32 %v2683, %v2707
    %v6788 = vadd.f32 %v2684, %v2708
    %v6789 = vadd.f32 %v2685, %v2709
    %v6790 = vadd.f32 %v2686, %v2710
    %v6791 = vadd.f32 %v2687, %v2711
    %v6792 = vadd.f32 %v2688, %v2712
    %v6793 = vadd.f32 %v2689, %v2713
    %v6794 = vadd.f32 %v2690, %v2714
    %v6795 = vadd.f32 %v2691, %v2715
    %v6796 = vadd.f32 %v2692, %v2716
    %v6797 = vadd.f32 %v2693, %v2717
    %v6798 = vadd.f32 %v2694, %v2718
    %v6799 = vadd.f32 %v2695, %v2719
    %v6800 = vadd.f32 %v2696, %v2720
    %v6801 = vadd.f32 %v2697, %v2721
    %v6802 = vadd.f32 %v2698, %v2722
    %v6803 = vadd.f32 %v2699, %v2723
    %v6804 = vadd.f32 %v2700, %v2724
    %v6805 = vadd.f32 %v2701, %v2725
    %v6806 = vadd.f32 %v2702, %v2726
    %v6807 = vadd.f32 %v2703, %v2727
    %v6808 = vadd.f32 %v2704, %v2728
    %v6809 = vadd.f32 %v2705, %v2729
    %v6810 = vadd.f32 %v2706, %v2730
    %v6811 = vadd.f32 %v6787, 0.0001
    %v6812 = vadd.f32 %v6788, 0.0001
    %v6813 = vadd.f32 %v6789, 0.0001
    %v6814 = vadd.f32 %v6790, 0.0001
    %v6815 = vadd.f32 %v6791, 0.0001
    %v6816 = vadd.f32 %v6792, 0.0001
    %v6817 = vadd.f32 %v6793, 0.0001
    %v6818 = vadd.f32 %v6794, 0.0001
    %v6819 = vadd.f32 %v6795, 0.0001
    %v6820 = vadd.f32 %v6796, 0.0001
    %v6821 = vadd.f32 %v6797, 0.0001
    %v6822 = vadd.f32 %v6798, 0.0001
    %v6823 = vadd.f32 %v6799, 0.0001
    %v6824 = vadd.f32 %v6800, 0.0001
    %v6825 = vadd.f32 %v6801, 0.0001
    %v6826 = vadd.f32 %v6802, 0.0001
    %v6827 = vadd.f32 %v6803, 0.0001
    %v6828 = vadd.f32 %v6804, 0.0001
    %v6829 = vadd.f32 %v6805, 0.0001
    %v6830 = vadd.f32 %v6806, 0.0001
    %v6831 = vadd.f32 %v6807, 0.0001
    %v6832 = vadd.f32 %v6808, 0.0001
    %v6833 = vadd.f32 %v6809, 0.0001
    %v6834 = vadd.f32 %v6810, 0.0001
    %v6835 = vadd.f32 %v4035, %v5339
    %v6836 = vadd.f32 %v4036, %v5340
    %v6837 = vadd.f32 %v4037, %v5341
    %v6838 = vadd.f32 %v4038, %v5342
    %v6839 = vadd.f32 %v4039, %v5343
    %v6840 = vadd.f32 %v4040, %v5344
    %v6841 = vadd.f32 %v4041, %v5345
    %v6842 = vadd.f32 %v4042, %v5346
    %v6843 = vadd.f32 %v4043, %v5347
    %v6844 = vadd.f32 %v4044, %v5348
    %v6845 = vadd.f32 %v4045, %v5349
    %v6846 = vadd.f32 %v4046, %v5350
    %v6847 = vadd.f32 %v4047, %v5351
    %v6848 = vadd.f32 %v4048, %v5352
    %v6849 = vadd.f32 %v4049, %v5353
    %v6850 = vadd.f32 %v4050, %v5354
    %v6851 = vadd.f32 %v4051, %v5355
    %v6852 = vadd.f32 %v4052, %v5356
    %v6853 = vadd.f32 %v4053, %v5357
    %v6854 = vadd.f32 %v4054, %v5358
    %v6855 = vadd.f32 %v4055, %v5359
    %v6856 = vadd.f32 %v4056, %v5360
    %v6857 = vadd.f32 %v4057, %v5361
    %v6858 = vadd.f32 %v4058, %v5362
    %v6859 = vadd.f32 %v6835, 0.0009
    %v6860 = vadd.f32 %v6836, 0.0009
    %v6861 = vadd.f32 %v6837, 0.0009
    %v6862 = vadd.f32 %v6838, 0.0009
    %v6863 = vadd.f32 %v6839, 0.0009
    %v6864 = vadd.f32 %v6840, 0.0009
    %v6865 = vadd.f32 %v6841, 0.0009
    %v6866 = vadd.f32 %v6842, 0.0009
    %v6867 = vadd.f32 %v6843, 0.0009
    %v6868 = vadd.f32 %v6844, 0.0009
    %v6869 = vadd.f32 %v6845, 0.0009
    %v6870 = vadd.f32 %v6846, 0.0009
    %v6871 = vadd.f32 %v6847, 0.0009
    %v6872 = vadd.f32 %v6848, 0.0009
    %v6873 = vadd.f32 %v6849, 0.0009
    %v6874 = vadd.f32 %v6850, 0.0009
    %v6875 = vadd.f32 %v6851, 0.0009
    %v6876 = vadd.f32 %v6852, 0.0009
    %v6877 = vadd.f32 %v6853, 0.0009
    %v6878 = vadd.f32 %v6854, 0.0009
    %v6879 = vadd.f32 %v6855, 0.0009
    %v6880 = vadd.f32 %v6856, 0.0009
    %v6881 = vadd.f32 %v6857, 0.0009
    %v6882 = vadd.f32 %v6858, 0.0009
    %v6883 = vmul.f32 %v6811, %v6859
    %v6884 = vmul.f32 %v6812, %v6860
    %v6885 = vmul.f32 %v6813, %v6861
    %v6886 = vmul.f32 %v6814, %v6862
    %v6887 = vmul.f32 %v6815, %v6863
    %v6888 = vmul.f32 %v6816, %v6864
    %v6889 = vmul.f32 %v6817, %v6865
    %v6890 = vmul.f32 %v6818, %v6866
    %v6891 = vmul.f32 %v6819, %v6867
    %v6892 = vmul.f32 %v6820, %v6868
    %v6893 = vmul.f32 %v6821, %v6869
    %v6894 = vmul.f32 %v6822, %v6870
    %v6895 = vmul.f32 %v6823, %v6871
    %v6896 = vmul.f32 %v6824, %v6872
    %v6897 = vmul.f32 %v6825, %v6873
    %v6898 = vmul.f32 %v6826, %v6874
    %v6899 = vmul.f32 %v6827, %v6875
    %v6900 = vmul.f32 %v6828, %v6876
    %v6901 = vmul.f32 %v6829, %v6877
    %v6902 = vmul.f32 %v6830, %v6878
    %v6903 = vmul.f32 %v6831, %v6879
    %v6904 = vmul.f32 %v6832, %v6880
    %v6905 = vmul.f32 %v6833, %v6881
    %v6906 = vmul.f32 %v6834, %v6882
    %v6907 = vrcp.pop %v6883
    %v6908 = vrcp.pop %v6884
    %v6909 = vrcp.pop %v6885
    %v6910 = vrcp.pop %v6886
    %v6911 = vrcp.pop %v6887
    %v6912 = vrcp.pop %v6888
    %v6913 = vrcp.pop %v6889
    %v6914 = vrcp.pop %v6890
    %v6915 = vrcp.pop %v6891
    %v6916 = vrcp.pop %v6892
    %v6917 = vrcp.pop %v6893
    %v6918 = vrcp.pop %v6894
    %v6919 = vrcp.pop %v6895
    %v6920 = vrcp.pop %v6896
    %v6921 = vrcp.pop %v6897
    %v6922 = vrcp.pop %v6898
    %v6923 = vrcp.pop %v6899
    %v6924 = vrcp.pop %v6900
    %v6925 = vrcp.pop %v6901
    %v6926 = vrcp.pop %v6902
    %v6927 = vrcp.pop %v6903
    %v6928 = vrcp.pop %v6904
    %v6929 = vrcp.pop %v6905
    %v6930 = vrcp.pop %v6906
    %v6931 = vmul.f32 %v6763, %v6907
    %v6932 = vmul.f32 %v6764, %v6908
    %v6933 = vmul.f32 %v6765, %v6909
    %v6934 = vmul.f32 %v6766, %v6910
    %v6935 = vmul.f32 %v6767, %v6911
    %v6936 = vmul.f32 %v6768, %v6912
    %v6937 = vmul.f32 %v6769, %v6913
    %v6938 = vmul.f32 %v6770, %v6914
    %v6939 = vmul.f32 %v6771, %v6915
    %v6940 = vmul.f32 %v6772, %v6916
    %v6941 = vmul.f32 %v6773, %v6917
    %v6942 = vmul.f32 %v6774, %v6918
    %v6943 = vmul.f32 %v6775, %v6919
    %v6944 = vmul.f32 %v6776, %v6920
    %v6945 = vmul.f32 %v6777, %v6921
    %v6946 = vmul.f32 %v6778, %v6922
    %v6947 = vmul.f32 %v6779, %v6923
    %v6948 = vmul.f32 %v6780, %v6924
    %v6949 = vmul.f32 %v6781, %v6925
    %v6950 = vmul.f32 %v6782, %v6926
    %v6951 = vmul.f32 %v6783, %v6927
    %v6952 = vmul.f32 %v6784, %v6928
    %v6953 = vmul.f32 %v6785, %v6929
    %v6954 = vmul.f32 %v6786, %v6930
    %vm6955 = vcmask 138240
    %v6956 = vsel %vm6955, %v6931, 0.0
    %v6957 = vsel %vm6955, %v6932, 0.0
    %v6958 = vadd.f32 %v6956, %v6957
    %vm6959 = vcmask 131072
    %v6960 = vsel %vm6959, %v6933, 0.0
    %v6961 = vadd.f32 %v6958, %v6960
    %v6962 = vsel %vm6955, %v6934, 0.0
    %v6963 = vadd.f32 %v6961, %v6962
    %v6964 = vsel %vm6955, %v6935, 0.0
    %v6965 = vadd.f32 %v6963, %v6964
    %v6966 = vsel %vm6959, %v6936, 0.0
    %v6967 = vadd.f32 %v6965, %v6966
    %v6968 = vsel %vm6955, %v6937, 0.0
    %v6969 = vadd.f32 %v6967, %v6968
    %v6970 = vsel %vm6955, %v6938, 0.0
    %v6971 = vadd.f32 %v6969, %v6970
    %v6972 = vsel %vm6959, %v6939, 0.0
    %v6973 = vadd.f32 %v6971, %v6972
    %v6974 = vsel %vm6955, %v6940, 0.0
    %v6975 = vadd.f32 %v6973, %v6974
    %v6976 = vsel %vm6955, %v6941, 0.0
    %v6977 = vadd.f32 %v6975, %v6976
    %v6978 = vsel %vm6959, %v6942, 0.0
    %v6979 = vadd.f32 %v6977, %v6978
    %v6980 = vsel %vm6955, %v6943, 0.0
    %v6981 = vadd.f32 %v6979, %v6980
    %v6982 = vsel %vm6955, %v6944, 0.0
    %v6983 = vadd.f32 %v6981, %v6982
    %v6984 = vsel %vm6959, %v6945, 0.0
    %v6985 = vadd.f32 %v6983, %v6984
    %v6986 = vsel %vm6955, %v6946, 0.0
    %v6987 = vadd.f32 %v6985, %v6986
    %v6988 = vsel %vm6955, %v6947, 0.0
    %v6989 = vadd.f32 %v6987, %v6988
    %v6990 = vsel %vm6959, %v6948, 0.0
    %v6991 = vadd.f32 %v6989, %v6990
    %v6992 = vsel %vm6955, %v6949, 0.0
    %v6993 = vadd.f32 %v6991, %v6992
    %v6994 = vsel %vm6955, %v6950, 0.0
    %v6995 = vadd.f32 %v6993, %v6994
    %v6996 = vsel %vm6959, %v6951, 0.0
    %v6997 = vadd.f32 %v6995, %v6996
    %v6998 = vsel %vm6955, %v6952, 0.0
    %v6999 = vadd.f32 %v6997, %v6998
    %v7000 = vsel %vm6955, %v6953, 0.0
    %v7001 = vadd.f32 %v6999, %v7000
    %v7002 = vsel %vm6959, %v6954, 0.0
    %v7003 = vadd.f32 %v7001, %v7002
    %7004 = vadd.xlane.f32.xlu0 %v7003
    %v7005 = vpop.xlane.xlu0 %7004
    %v7006 = vrot.slane %v7005, 4
    %v7007 = vadd.f32 %v7005, %v7006
    %v7008 = vrot.slane %v7007, 2
    %v7009 = vadd.f32 %v7007, %v7008
    %v7010 = vrot.slane %v7009, 1
    %v7011 = vadd.f32 %v7009, %v7010
    %s7012 = vtos %v7011
    %v7013 = vlaneseq
    %v7014 = vshrl.u32 %v7013, 7
    %vm7015 = vcmp.eq.s32.totalorder %v7014, 0
    %v7016 = vstv %s165
    %v7017 = vstv %s7012
    %v7018 = vsel %vm7015, %v7016, %v7017
    %7019 = vst [vmem:[#allocation2] sm:$0x3] %v7018
    // Predicated region
    $region10: #{tpu_custom_call.1} parent=1 // pred_check
      _
    $region11: #{tpu_custom_call.1} parent=1 // pred_check_branch
      %7021 = sbr.rel (0) target = $region13
    $region12: #{tpu_custom_call.1} parent=1 // pred_region
      %s7023 = ssub.s32 32, 32
      %7024 = vsyncadd [#allocation3], %s7023
      %s7026 = sshll.u32 [#allocation2], 4
      %s7027 = int_to_ptr.vmem [resolvable:$true] %s7026
      %7029 = dma.vmem_to_hbm [thread:$0]  %s7027, 32, %s2, [#allocation3]
    $region13: #{tpu_custom_call.1} parent=1 // pred_fallthru
      _
    // Predicated region
    $region14: #{tpu_custom_call.1} parent=1 // pred_check
      _
    $region15: #{tpu_custom_call.1} parent=1 // pred_check_branch
      %7031 = sbr.rel (0) target = $region17
    $region16: #{tpu_custom_call.1} parent=1 // pred_region
      %7032 = dma.done [#allocation3], 32
    $region17: #{tpu_custom_call.1} parent=1 // pred_fallthru
      _
    %7033 = vsyncpa [#allocation3], 1

</llo_original>
